<compile_context>
chip_gen: v5e
topology: v5e:2x2
jax: 0.10.0
libtpu: 0.0.40
codegen_flags: <defaults>
</compile_context>

<pallas_src>
import functools

import jax
import jax.numpy as jnp
from jax.experimental import pallas as pl
from jax.experimental.pallas import tpu as pltpu


TM_MAX = 256  # M-tile size (multiple of 8); K/N stay full-extent blocks.


# ----------------------------------------------------------------------------
# Pallas kernels
# ----------------------------------------------------------------------------
def _matmul_bias_kernel(x_ref, w_ref, b_ref, o_ref, *, apply_relu):
    """o = maybe_relu(x @ w + b); x,w bf16, accumulate f32, bias f32."""
    acc = jnp.dot(x_ref[...], w_ref[...], preferred_element_type=jnp.float32)
    y = acc + b_ref[...]
    if apply_relu:
        y = jnp.maximum(y, 0.0)
    o_ref[...] = y.astype(o_ref.dtype)


def _fused_fc_kernel(x_ref, w1_ref, b1_ref, w2_ref, b2_ref, o_ref):
    """o = relu(x @ w1 + b1) @ w2 + b2  (both weight sets VMEM-resident)."""
    h = jnp.dot(x_ref[...], w1_ref[...], preferred_element_type=jnp.float32)
    h = jnp.maximum(h + b1_ref[...], 0.0)
    o = jnp.dot(h.astype(w2_ref.dtype), w2_ref[...],
                preferred_element_type=jnp.float32)
    o_ref[...] = (o + b2_ref[...]).astype(o_ref.dtype)


def _m_tile(m):
    """Pick an M tile: full M if small (block == full dim rule), else TM_MAX."""
    return m if m <= TM_MAX else TM_MAX


def matmul_bias(x, w, bias, *, apply_relu, out_dtype=jnp.float32):
    """x:[M,K] (any float), w:[K,N] bf16, bias:[1,N] f32."""
    M, K = x.shape
    Kw, N = w.shape
    assert K == Kw
    x = x.astype(jnp.bfloat16)
    tm = _m_tile(M)
    grid = (pl.cdiv(M, tm),)
    cost = pl.CostEstimate(
        flops=2 * M * K * N,
        transcendentals=0,
        bytes_accessed=M * K * 2 + K * N * 2 + N * 4
        + M * N * jnp.dtype(out_dtype).itemsize,
    )
    return pl.pallas_call(
        functools.partial(_matmul_bias_kernel, apply_relu=apply_relu),
        out_shape=jax.ShapeDtypeStruct((M, N), out_dtype),
        grid=grid,
        in_specs=[
            pl.BlockSpec((tm, K), lambda i: (i, 0)),   # activation tiles stream
            pl.BlockSpec((K, N), lambda i: (0, 0)),    # weights VMEM-resident
            pl.BlockSpec((1, N), lambda i: (0, 0)),    # bias VMEM-resident
        ],
        out_specs=pl.BlockSpec((tm, N), lambda i: (i, 0)),
        compiler_params=pltpu.CompilerParams(
            dimension_semantics=("parallel",)),
        cost_estimate=cost,
    )(x, w, bias)


def fused_fc(x, w1, b1, w2, b2):
    """relu(x @ w1 + b1) @ w2 + b2 in a single pallas_call."""
    M, K = x.shape
    Kh, H = w1.shape
    Hw, N = w2.shape
    assert K == Kh and H == Hw
    x = x.astype(jnp.bfloat16)
    tm = _m_tile(M)
    grid = (pl.cdiv(M, tm),)
    cost = pl.CostEstimate(
        flops=2 * M * K * H + 2 * M * H * N,
        transcendentals=0,
        bytes_accessed=M * K * 2 + K * H * 2 + H * N * 2 + (H + N) * 4
        + M * N * 4,
    )
    return pl.pallas_call(
        _fused_fc_kernel,
        out_shape=jax.ShapeDtypeStruct((M, N), jnp.float32),
        grid=grid,
        in_specs=[
            pl.BlockSpec((tm, K), lambda i: (i, 0)),
            pl.BlockSpec((K, H), lambda i: (0, 0)),
            pl.BlockSpec((1, H), lambda i: (0, 0)),
            pl.BlockSpec((H, N), lambda i: (0, 0)),
            pl.BlockSpec((1, N), lambda i: (0, 0)),
        ],
        out_specs=pl.BlockSpec((tm, N), lambda i: (i, 0)),
        compiler_params=pltpu.CompilerParams(
            dimension_semantics=("parallel",)),
        cost_estimate=cost,
    )(x, w1, b1, w2, b2)


# ----------------------------------------------------------------------------
# im2col glue (pure slicing/stacking — no compute), NHWC layout
# ----------------------------------------------------------------------------
def im2col_nhwc(x, kh, kw, stride):
    """x:[N,H,W,C] -> patches:[N*OH*OW, kh*kw*C] (row order i*kw*C + j*C + c)."""
    N, H, W, C = x.shape
    OH = (H - kh) // stride + 1
    OW = (W - kw) // stride + 1
    cols = []
    for i in range(kh):
        for j in range(kw):
            cols.append(x[:, i:i + stride * OH:stride,
                             j:j + stride * OW:stride, :])   # [N,OH,OW,C]
    p = jnp.stack(cols, axis=3)                     # [N, OH, OW, kh*kw, C]
    p = p.reshape(N * OH * OW, kh * kw * C)
    return p, OH, OW


def conv_block(x_nhwc, w_mat, bias, kh, kw, stride):
    """Conv(stride, no pad) + folded BN + ReLU; stays NHWC, bf16 activations."""
    n = x_nhwc.shape[0]
    patches, OH, OW = im2col_nhwc(x_nhwc, kh, kw, stride)
    out = matmul_bias(patches, w_mat, bias, apply_relu=True,
                      out_dtype=jnp.bfloat16)
    c_out = w_mat.shape[1]
    return out.reshape(n, OH, OW, c_out)


# ----------------------------------------------------------------------------
# DQN parameters (PyTorch layout) + one-time inference packing
# ----------------------------------------------------------------------------
def init_params(key, action_size):
    ks = jax.random.split(key, 12)
    p = {}
    # conv weights  [C_out, C_in, kh, kw]
    p["w1"] = jax.random.normal(ks[0], (32, 1, 8, 8), jnp.float32) * 0.05
    p["b1"] = jax.random.normal(ks[1], (32,), jnp.float32) * 0.05
    p["w2"] = jax.random.normal(ks[2], (64, 32, 4, 4), jnp.float32) * 0.05
    p["b2"] = jax.random.normal(ks[3], (64,), jnp.float32) * 0.05
    p["w3"] = jax.random.normal(ks[4], (64, 64, 3, 3), jnp.float32) * 0.05
    p["b3"] = jax.random.normal(ks[5], (64,), jnp.float32) * 0.05
    # BatchNorm (eval-mode running stats; non-trivial to exercise the fold)
    for i, c in zip((1, 2, 3), (32, 64, 64)):
        p[f"bn{i}_gamma"] = 1.0 + 0.1 * jax.random.normal(ks[6], (c,), jnp.float32)
        p[f"bn{i}_beta"] = 0.1 * jax.random.normal(ks[7], (c,), jnp.float32)
        p[f"bn{i}_mean"] = 0.1 * jax.random.normal(ks[8], (c,), jnp.float32)
        p[f"bn{i}_var"] = jnp.abs(jax.random.normal(ks[9], (c,), jnp.float32)) + 0.5
    # FC layers (PyTorch Linear layout: [out, in])
    fc1_in = 64 * 6 * 6  # conv stack on 80x80 input -> 64 x 6 x 6 = 2304
    p["fcw1"] = jax.random.normal(ks[10], (512, fc1_in), jnp.float32) * 0.02
    p["fcb1"] = jnp.zeros((512,), jnp.float32)
    p["fcw2"] = jax.random.normal(ks[11], (action_size, 512), jnp.float32) * 0.02
    p["fcb2"] = jnp.zeros((action_size,), jnp.float32)
    return p


def pack_params(p, eps=1e-5):
    """One-time host-side fold: BN into weights/bias, bf16 cast, layout fixups."""
    q = {}

    def conv_pack(w, b, g, be, m, v):
        c_out = w.shape[0]
        inv_std = 1.0 / jnp.sqrt(v + eps)
        scale = g * inv_std                                     # per out-channel
        # [C_out,C_in,kh,kw] -> [kh,kw,C_in,C_out] -> [kh*kw*C_in, C_out]
        w_mat = w.transpose(2, 3, 1, 0).reshape(-1, c_out)
        w_mat = (w_mat * scale[None, :]).astype(jnp.bfloat16)   # fold BN scale
        bias = (be + scale * (b - m)).astype(jnp.float32).reshape(1, c_out)
        return w_mat, bias

    q["w1"], q["b1"] = conv_pack(p["w1"], p["b1"], p["bn1_gamma"],
                                 p["bn1_beta"], p["bn1_mean"], p["bn1_var"])
    q["w2"], q["b2"] = conv_pack(p["w2"], p["b2"], p["bn2_gamma"],
                                 p["bn2_beta"], p["bn2_mean"], p["bn2_var"])
    q["w3"], q["b3"] = conv_pack(p["w3"], p["b3"], p["bn3_gamma"],
                                 p["bn3_beta"], p["bn3_mean"], p["bn3_var"])

    # fc1: permute columns from NCHW flatten (c,h,w) to NHWC flatten (h,w,c),
    # then store as [K, 512] so no transpose happens per forward call.
    C, H, W = 64, 6, 6
    fcw1 = p["fcw1"].reshape(512, C, H, W).transpose(0, 2, 3, 1).reshape(512, -1)
    q["fcw1"] = fcw1.T.astype(jnp.bfloat16)                     # [2304, 512]
    q["fcb1"] = p["fcb1"].astype(jnp.float32).reshape(1, -1)
    q["fcw2"] = p["fcw2"].T.astype(jnp.bfloat16)                # [512, A]
    q["fcb2"] = p["fcb2"].astype(jnp.float32).reshape(1, -1)
    return q


# ----------------------------------------------------------------------------
# Forward pass
# ----------------------------------------------------------------------------
def dqn_forward(q, x_nchw):
    # x: [N, 1, 80, 80] (NCHW to match the PyTorch module) -> NHWC once.
    x = jnp.transpose(x_nchw, (0, 2, 3, 1)).astype(jnp.bfloat16)
    x = conv_block(x, q["w1"], q["b1"], kh=8, kw=8, stride=4)   # [N,19,19,32]
    x = conv_block(x, q["w2"], q["b2"], kh=4, kw=4, stride=2)   # [N, 8, 8,64]
    x = conv_block(x, q["w3"], q["b3"], kh=3, kw=3, stride=1)   # [N, 6, 6,64]
    x = x.reshape(x.shape[0], -1)                               # NHWC flatten
    return fused_fc(x, q["fcw1"], q["fcb1"], q["fcw2"], q["fcb2"])


# ----------------------------------------------------------------------------
# Pure-JAX f32 reference (lax.conv, PyTorch semantics) for correctness check
# ----------------------------------------------------------------------------
def dqn_reference(p, x, eps=1e-5):
    def conv(x, w, b, stride):
        y = jax.lax.conv_general_dilated(
            x, w, window_strides=(stride, stride), padding="VALID",
            dimension_numbers=("NCHW", "OIHW", "NCHW"))
        return y + b[None, :, None, None]

    def bn(x, g, be, m, v):
        return g[None, :, None, None] * (x - m[None, :, None, None]) \
            / jnp.sqrt(v[None, :, None, None] + eps) + be[None, :, None, None]

    x = jax.nn.relu(bn(conv(x, p["w1"], p["b1"], 4),
                       p["bn1_gamma"], p["bn1_beta"], p["bn1_mean"], p["bn1_var"]))
    x = jax.nn.relu(bn(conv(x, p["w2"], p["b2"], 2),
                       p["bn2_gamma"], p["bn2_beta"], p["bn2_mean"], p["bn2_var"]))
    x = jax.nn.relu(bn(conv(x, p["w3"], p["b3"], 1),
                       p["bn3_gamma"], p["bn3_beta"], p["bn3_mean"], p["bn3_var"]))
    x = x.reshape(x.shape[0], -1)
    x = jax.nn.relu(x @ p["fcw1"].T + p["fcb1"])
    return x @ p["fcw2"].T + p["fcb2"]


if __name__ == "__main__":
    action_size = 4
    key = jax.random.PRNGKey(0)
    kx, kp = jax.random.split(key)
    # DQN's fc1 size is derived from an 80x80 input, so spatial dims must be 80.
    x = jax.random.normal(kx, (2, 1, 80, 80), jnp.float32)
    params = init_params(kp, action_size)
    packed = pack_params(params)          # one-time BN fold / bf16 / layout pack

    fwd = jax.jit(dqn_forward)
    out = jax.block_until_ready(fwd(packed, x))
    assert out.shape == (2, action_size), out.shape

    ref = jax.block_until_ready(dqn_reference(params, x))
    err = float(jnp.max(jnp.abs(out - ref)))
    tol = 0.05 * float(jnp.max(jnp.abs(ref))) + 1e-3   # bf16 MXU tolerance
    assert err < tol, f"mismatch vs reference: {err} (tol {tol})"

    print("KERNEL_OK")
</pallas_src>

<mosaic_0001>
module attributes {stable_mosaic.version = 11 : i64} {
  func.func @_matmul_bias_kernel(%arg0: i32, %arg1: memref<256x64xbf16, #tpu.memory_space<vmem>>, %arg2: memref<64x32xbf16, #tpu.memory_space<vmem>>, %arg3: memref<1x32xf32, #tpu.memory_space<vmem>>, %arg4: memref<256x32xbf16, #tpu.memory_space<vmem>>) attributes {dimension_semantics = [#tpu.dimension_semantics<parallel>], iteration_bounds = array<i64: 3>, scalar_prefetch = 0 : i64, scratch_operands = 0 : i64, tpu.core_type = #tpu.core_type<tc>, window_params = [{transform_indices = @transform_0, window_bounds = array<i64: 256, 64>}, {pipeline_mode = #tpu.pipeline_mode<synchronous>, transform_indices = @transform_1, window_bounds = array<i64: 64, 32>}, {pipeline_mode = #tpu.pipeline_mode<synchronous>, transform_indices = @transform_2, window_bounds = array<i64: 1, 32>}, {transform_indices = @transform_3, window_bounds = array<i64: 256, 32>}]} {
    %c0 = arith.constant 0 : index
    %c0_0 = arith.constant 0 : index
    %0 = vector.load %arg1[%c0, %c0_0] : memref<256x64xbf16, #tpu.memory_space<vmem>>, vector<256x64xbf16>
    %c0_1 = arith.constant 0 : index
    %c0_2 = arith.constant 0 : index
    %1 = vector.load %arg2[%c0_1, %c0_2] : memref<64x32xbf16, #tpu.memory_space<vmem>>, vector<64x32xbf16>
    %cst = arith.constant dense<0.000000e+00> : vector<256x32xf32>
    %2 = tpu.matmul %0, %1, %cst {dimension_numbers = #tpu.dot_dimension_numbers<[1], [0], [0], [1], [0, 0, 1, 1], [], []>} : vector<256x64xbf16>, vector<64x32xbf16>, vector<256x32xf32> -> vector<256x32xf32>
    %c0_3 = arith.constant 0 : index
    %c0_4 = arith.constant 0 : index
    %3 = vector.load %arg3[%c0_3, %c0_4] : memref<1x32xf32, #tpu.memory_space<vmem>>, vector<1x32xf32>
    %4 = vector.broadcast %3 : vector<1x32xf32> to vector<256x32xf32>
    %5 = arith.addf %2, %4 : vector<256x32xf32>
    %cst_5 = arith.constant 0.000000e+00 : f32
    %6 = vector.broadcast %cst_5 : f32 to vector<256x32xf32>
    %7 = arith.maximumf %5, %6 : vector<256x32xf32>
    %8 = arith.truncf %7 : vector<256x32xf32> to vector<256x32xbf16>
    %c0_6 = arith.constant 0 : index
    %c0_7 = arith.constant 0 : index
    %9 = vector.load %arg4[%c0_6, %c0_7] : memref<256x32xbf16, #tpu.memory_space<vmem>>, vector<256x32xbf16>
    tpu.vector_store %arg4[%c0_6, %c0_7], %8 {strides = array<i32>} : memref<256x32xbf16, #tpu.memory_space<vmem>>, vector<256x32xbf16>,
    return
  }
  func.func @transform_0(%arg0: i32) -> (i32, i32) {
    %c0_i32 = arith.constant 0 : i32
    %c0_i32_0 = arith.constant 0 : i32
    return %arg0, %c0_i32 : i32, i32
  }
  func.func @transform_1(%arg0: i32) -> (i32, i32) {
    %c0_i32 = arith.constant 0 : i32
    %c0_i32_0 = arith.constant 0 : i32
    %c0_i32_1 = arith.constant 0 : i32
    return %c0_i32, %c0_i32_0 : i32, i32
  }
  func.func @transform_2(%arg0: i32) -> (i32, i32) {
    %c0_i32 = arith.constant 0 : i32
    %c0_i32_0 = arith.constant 0 : i32
    %c0_i32_1 = arith.constant 0 : i32
    return %c0_i32, %c0_i32_0 : i32, i32
  }
  func.func @transform_3(%arg0: i32) -> (i32, i32) {
    %c0_i32 = arith.constant 0 : i32
    %c0_i32_0 = arith.constant 0 : i32
    return %arg0, %c0_i32 : i32, i32
  }
}

module attributes {stable_mosaic.version = 11 : i64} {
  func.func @_matmul_bias_kernel(%arg0: i32, %arg1: memref<128x512xbf16, #tpu.memory_space<vmem>>, %arg2: memref<512x64xbf16, #tpu.memory_space<vmem>>, %arg3: memref<1x64xf32, #tpu.memory_space<vmem>>, %arg4: memref<128x64xbf16, #tpu.memory_space<vmem>>) attributes {dimension_semantics = [#tpu.dimension_semantics<parallel>], iteration_bounds = array<i64: 1>, scalar_prefetch = 0 : i64, scratch_operands = 0 : i64, tpu.core_type = #tpu.core_type<tc>, window_params = [{transform_indices = @transform_0, window_bounds = array<i64: 128, 512>}, {pipeline_mode = #tpu.pipeline_mode<synchronous>, transform_indices = @transform_1, window_bounds = array<i64: 512, 64>}, {pipeline_mode = #tpu.pipeline_mode<synchronous>, transform_indices = @transform_2, window_bounds = array<i64: 1, 64>}, {transform_indices = @transform_3, window_bounds = array<i64: 128, 64>}]} {
    %c0 = arith.constant 0 : index
    %c0_0 = arith.constant 0 : index
    %0 = vector.load %arg1[%c0, %c0_0] : memref<128x512xbf16, #tpu.memory_space<vmem>>, vector<128x512xbf16>
    %c0_1 = arith.constant 0 : index
    %c0_2 = arith.constant 0 : index
    %1 = vector.load %arg2[%c0_1, %c0_2] : memref<512x64xbf16, #tpu.memory_space<vmem>>, vector<512x64xbf16>
    %cst = arith.constant dense<0.000000e+00> : vector<128x64xf32>
    %2 = tpu.matmul %0, %1, %cst {dimension_numbers = #tpu.dot_dimension_numbers<[1], [0], [0], [1], [0, 0, 1, 1], [], []>} : vector<128x512xbf16>, vector<512x64xbf16>, vector<128x64xf32> -> vector<128x64xf32>
    %c0_3 = arith.constant 0 : index
    %c0_4 = arith.constant 0 : index
    %3 = vector.load %arg3[%c0_3, %c0_4] : memref<1x64xf32, #tpu.memory_space<vmem>>, vector<1x64xf32>
    %4 = vector.broadcast %3 : vector<1x64xf32> to vector<128x64xf32>
    %5 = arith.addf %2, %4 : vector<128x64xf32>
    %cst_5 = arith.constant 0.000000e+00 : f32
    %6 = vector.broadcast %cst_5 : f32 to vector<128x64xf32>
    %7 = arith.maximumf %5, %6 : vector<128x64xf32>
    %8 = arith.truncf %7 : vector<128x64xf32> to vector<128x64xbf16>
    %c0_6 = arith.constant 0 : index
    %c0_7 = arith.constant 0 : index
    %9 = vector.load %arg4[%c0_6, %c0_7] : memref<128x64xbf16, #tpu.memory_space<vmem>>, vector<128x64xbf16>
    tpu.vector_store %arg4[%c0_6, %c0_7], %8 {strides = array<i32>} : memref<128x64xbf16, #tpu.memory_space<vmem>>, vector<128x64xbf16>,
    return
  }
  func.func @transform_0(%arg0: i32) -> (i32, i32) {
    %c0_i32 = arith.constant 0 : i32
    %c0_i32_0 = arith.constant 0 : i32
    return %arg0, %c0_i32 : i32, i32
  }
  func.func @transform_1(%arg0: i32) -> (i32, i32) {
    %c0_i32 = arith.constant 0 : i32
    %c0_i32_0 = arith.constant 0 : i32
    %c0_i32_1 = arith.constant 0 : i32
    return %c0_i32, %c0_i32_0 : i32, i32
  }
  func.func @transform_2(%arg0: i32) -> (i32, i32) {
    %c0_i32 = arith.constant 0 : i32
    %c0_i32_0 = arith.constant 0 : i32
    %c0_i32_1 = arith.constant 0 : i32
    return %c0_i32, %c0_i32_0 : i32, i32
  }
  func.func @transform_3(%arg0: i32) -> (i32, i32) {
    %c0_i32 = arith.constant 0 : i32
    %c0_i32_0 = arith.constant 0 : i32
    return %arg0, %c0_i32 : i32, i32
  }
}

module attributes {stable_mosaic.version = 11 : i64} {
  func.func @_matmul_bias_kernel(%arg0: i32, %arg1: memref<72x576xbf16, #tpu.memory_space<vmem>>, %arg2: memref<576x64xbf16, #tpu.memory_space<vmem>>, %arg3: memref<1x64xf32, #tpu.memory_space<vmem>>, %arg4: memref<72x64xbf16, #tpu.memory_space<vmem>>) attributes {dimension_semantics = [#tpu.dimension_semantics<parallel>], iteration_bounds = array<i64: 1>, scalar_prefetch = 0 : i64, scratch_operands = 0 : i64, tpu.core_type = #tpu.core_type<tc>, window_params = [{transform_indices = @transform_0, window_bounds = array<i64: 72, 576>}, {pipeline_mode = #tpu.pipeline_mode<synchronous>, transform_indices = @transform_1, window_bounds = array<i64: 576, 64>}, {pipeline_mode = #tpu.pipeline_mode<synchronous>, transform_indices = @transform_2, window_bounds = array<i64: 1, 64>}, {transform_indices = @transform_3, window_bounds = array<i64: 72, 64>}]} {
    %c0 = arith.constant 0 : index
    %c0_0 = arith.constant 0 : index
    %0 = vector.load %arg1[%c0, %c0_0] : memref<72x576xbf16, #tpu.memory_space<vmem>>, vector<72x576xbf16>
    %c0_1 = arith.constant 0 : index
    %c0_2 = arith.constant 0 : index
    %1 = vector.load %arg2[%c0_1, %c0_2] : memref<576x64xbf16, #tpu.memory_space<vmem>>, vector<576x64xbf16>
    %cst = arith.constant dense<0.000000e+00> : vector<72x64xf32>
    %2 = tpu.matmul %0, %1, %cst {dimension_numbers = #tpu.dot_dimension_numbers<[1], [0], [0], [1], [0, 0, 1, 1], [], []>} : vector<72x576xbf16>, vector<576x64xbf16>, vector<72x64xf32> -> vector<72x64xf32>
    %c0_3 = arith.constant 0 : index
    %c0_4 = arith.constant 0 : index
    %3 = vector.load %arg3[%c0_3, %c0_4] : memref<1x64xf32, #tpu.memory_space<vmem>>, vector<1x64xf32>
    %4 = vector.broadcast %3 : vector<1x64xf32> to vector<72x64xf32>
    %5 = arith.addf %2, %4 : vector<72x64xf32>
    %cst_5 = arith.constant 0.000000e+00 : f32
    %6 = vector.broadcast %cst_5 : f32 to vector<72x64xf32>
    %7 = arith.maximumf %5, %6 : vector<72x64xf32>
    %8 = arith.truncf %7 : vector<72x64xf32> to vector<72x64xbf16>
    %c0_6 = arith.constant 0 : index
    %c0_7 = arith.constant 0 : index
    %9 = vector.load %arg4[%c0_6, %c0_7] : memref<72x64xbf16, #tpu.memory_space<vmem>>, vector<72x64xbf16>
    tpu.vector_store %arg4[%c0_6, %c0_7], %8 {strides = array<i32>} : memref<72x64xbf16, #tpu.memory_space<vmem>>, vector<72x64xbf16>,
    return
  }
  func.func @transform_0(%arg0: i32) -> (i32, i32) {
    %c0_i32 = arith.constant 0 : i32
    %c0_i32_0 = arith.constant 0 : i32
    return %arg0, %c0_i32 : i32, i32
  }
  func.func @transform_1(%arg0: i32) -> (i32, i32) {
    %c0_i32 = arith.constant 0 : i32
    %c0_i32_0 = arith.constant 0 : i32
    %c0_i32_1 = arith.constant 0 : i32
    return %c0_i32, %c0_i32_0 : i32, i32
  }
  func.func @transform_2(%arg0: i32) -> (i32, i32) {
    %c0_i32 = arith.constant 0 : i32
    %c0_i32_0 = arith.constant 0 : i32
    %c0_i32_1 = arith.constant 0 : i32
    return %c0_i32, %c0_i32_0 : i32, i32
  }
  func.func @transform_3(%arg0: i32) -> (i32, i32) {
    %c0_i32 = arith.constant 0 : i32
    %c0_i32_0 = arith.constant 0 : i32
    return %arg0, %c0_i32 : i32, i32
  }
}

module attributes {stable_mosaic.version = 11 : i64} {
  func.func @_fused_fc_kernel(%arg0: i32, %arg1: memref<2x2304xbf16, #tpu.memory_space<vmem>>, %arg2: memref<2304x512xbf16, #tpu.memory_space<vmem>>, %arg3: memref<1x512xf32, #tpu.memory_space<vmem>>, %arg4: memref<512x4xbf16, #tpu.memory_space<vmem>>, %arg5: memref<1x4xf32, #tpu.memory_space<vmem>>, %arg6: memref<2x4xf32, #tpu.memory_space<vmem>>) attributes {dimension_semantics = [#tpu.dimension_semantics<parallel>], iteration_bounds = array<i64: 1>, scalar_prefetch = 0 : i64, scratch_operands = 0 : i64, tpu.core_type = #tpu.core_type<tc>, window_params = [{transform_indices = @transform_0, window_bounds = array<i64: 2, 2304>}, {pipeline_mode = #tpu.pipeline_mode<synchronous>, transform_indices = @transform_1, window_bounds = array<i64: 2304, 512>}, {pipeline_mode = #tpu.pipeline_mode<synchronous>, transform_indices = @transform_2, window_bounds = array<i64: 1, 512>}, {pipeline_mode = #tpu.pipeline_mode<synchronous>, transform_indices = @transform_3, window_bounds = array<i64: 512, 4>}, {pipeline_mode = #tpu.pipeline_mode<synchronous>, transform_indices = @transform_4, window_bounds = array<i64: 1, 4>}, {transform_indices = @transform_5, window_bounds = array<i64: 2, 4>}]} {
    %c0 = arith.constant 0 : index
    %c0_0 = arith.constant 0 : index
    %0 = vector.load %arg1[%c0, %c0_0] : memref<2x2304xbf16, #tpu.memory_space<vmem>>, vector<2x2304xbf16>
    %c0_1 = arith.constant 0 : index
    %c0_2 = arith.constant 0 : index
    %1 = vector.load %arg2[%c0_1, %c0_2] : memref<2304x512xbf16, #tpu.memory_space<vmem>>, vector<2304x512xbf16>
    %cst = arith.constant dense<0.000000e+00> : vector<2x512xf32>
    %2 = tpu.matmul %0, %1, %cst {dimension_numbers = #tpu.dot_dimension_numbers<[1], [0], [0], [1], [0, 0, 1, 1], [], []>} : vector<2x2304xbf16>, vector<2304x512xbf16>, vector<2x512xf32> -> vector<2x512xf32>
    %c0_3 = arith.constant 0 : index
    %c0_4 = arith.constant 0 : index
    %3 = vector.load %arg3[%c0_3, %c0_4] : memref<1x512xf32, #tpu.memory_space<vmem>>, vector<1x512xf32>
    %4 = vector.broadcast %3 : vector<1x512xf32> to vector<2x512xf32>
    %5 = arith.addf %2, %4 : vector<2x512xf32>
    %cst_5 = arith.constant 0.000000e+00 : f32
    %6 = vector.broadcast %cst_5 : f32 to vector<2x512xf32>
    %7 = arith.maximumf %5, %6 : vector<2x512xf32>
    %8 = arith.truncf %7 : vector<2x512xf32> to vector<2x512xbf16>
    %c0_6 = arith.constant 0 : index
    %c0_7 = arith.constant 0 : index
    %9 = vector.load %arg4[%c0_6, %c0_7] : memref<512x4xbf16, #tpu.memory_space<vmem>>, vector<512x4xbf16>
    %cst_8 = arith.constant dense<0.000000e+00> : vector<2x4xf32>
    %10 = tpu.matmul %8, %9, %cst_8 {dimension_numbers = #tpu.dot_dimension_numbers<[1], [0], [0], [1], [0, 0, 1, 1], [], []>} : vector<2x512xbf16>, vector<512x4xbf16>, vector<2x4xf32> -> vector<2x4xf32>
    %c0_9 = arith.constant 0 : index
    %c0_10 = arith.constant 0 : index
    %11 = vector.load %arg5[%c0_9, %c0_10] : memref<1x4xf32, #tpu.memory_space<vmem>>, vector<1x4xf32>
    %12 = vector.broadcast %11 : vector<1x4xf32> to vector<2x4xf32>
    %13 = arith.addf %10, %12 : vector<2x4xf32>
    %c0_11 = arith.constant 0 : index
    %c0_12 = arith.constant 0 : index
    %14 = vector.load %arg6[%c0_11, %c0_12] : memref<2x4xf32, #tpu.memory_space<vmem>>, vector<2x4xf32>
    tpu.vector_store %arg6[%c0_11, %c0_12], %13 {strides = array<i32>} : memref<2x4xf32, #tpu.memory_space<vmem>>, vector<2x4xf32>,
    return
  }
  func.func @transform_0(%arg0: i32) -> (i32, i32) {
    %c0_i32 = arith.constant 0 : i32
    %c0_i32_0 = arith.constant 0 : i32
    return %arg0, %c0_i32 : i32, i32
  }
  func.func @transform_1(%arg0: i32) -> (i32, i32) {
    %c0_i32 = arith.constant 0 : i32
    %c0_i32_0 = arith.constant 0 : i32
    %c0_i32_1 = arith.constant 0 : i32
    return %c0_i32, %c0_i32_0 : i32, i32
  }
  func.func @transform_2(%arg0: i32) -> (i32, i32) {
    %c0_i32 = arith.constant 0 : i32
    %c0_i32_0 = arith.constant 0 : i32
    %c0_i32_1 = arith.constant 0 : i32
    return %c0_i32, %c0_i32_0 : i32, i32
  }
  func.func @transform_3(%arg0: i32) -> (i32, i32) {
    %c0_i32 = arith.constant 0 : i32
    %c0_i32_0 = arith.constant 0 : i32
    %c0_i32_1 = arith.constant 0 : i32
    return %c0_i32, %c0_i32_0 : i32, i32
  }
  func.func @transform_4(%arg0: i32) -> (i32, i32) {
    %c0_i32 = arith.constant 0 : i32
    %c0_i32_0 = arith.constant 0 : i32
    %c0_i32_1 = arith.constant 0 : i32
    return %c0_i32, %c0_i32_0 : i32, i32
  }
  func.func @transform_5(%arg0: i32) -> (i32, i32) {
    %c0_i32 = arith.constant 0 : i32
    %c0_i32_0 = arith.constant 0 : i32
    return %arg0, %c0_i32 : i32, i32
  }
}

</mosaic_0001>

<llo_original>
// kernel: dqn_forward.4
$region0: #{dqn_forward.4}
  #allocation0 [shape = 'u32[]', space=smem, size = 0x4, offset = 0x4, fixed_abs, tag = 'smem constant byte address 0x4 - core index']
  #allocation1 [shape = 'u32[72,128]{1,0:T(1,128)}', space=vmem, size = 0x9000, scoped, tag = 'internal scratch']
  %s0 = inlined_call_operand.vmem [shape: bf16[722,64], index: 0, kind: input, shape index: {}]
  %s1 = inlined_call_operand.vmem [shape: bf16[64,32], index: 1, kind: input, shape index: {}]
  %s2 = inlined_call_operand.vmem [shape: f32[1,32], index: 2, kind: input, shape index: {}]
  %s3 = inlined_call_operand.vmem [shape: bf16[722,32], index: 3, kind: output, shape index: {}]
  %s4 = sld [smem:[#allocation0]]
  $region89: #{dqn_forward.4} parent=0
    _
  %s6 = ssub.s32 1, %s4
  %s7 = scalar_select 0, %s6, %s4
  $region1: #{dqn_forward.4} parent=0
    #allocation2 [shape = 'u8[131072]{0}', space=vmem, size = 0x20000, scoped, tag = 'output window, operand 0']
    loop: start=0, step=1, limit=5
    $region2: #{dqn_forward.4} parent=1 // loop_pre_header
      _
    $region3: #{dqn_forward.4} parent=1 // loop_header
      %s9 = sphi 0, %s13
      %p10 = scmp.ge.s32.totalorder %s9, 5
      %s19 = sphi 0, %s21
      %s22 = sphi 0, %s19
      %s23 = sphi 0, %s22
      %s39 = sphi 0, %s23
      %s43 = sphi 0, %s43
      %s45 = sphi 0, %s43
      %s46 = sphi 0, %s45
      %s60 = sphi 0, %s46
      %s64 = sphi 0, %s64
      %s66 = sphi 0, %s64
      %s67 = sphi 0, %s66
      %s81 = sphi 0, %s67
      %s87 = sphi 0, %s89
      %s90 = sphi 0, %s87
      %s91 = sphi 0, %s90
      %s107 = sphi 0, %s91
    $region4: #{dqn_forward.4} parent=1 // loop_header_branch
      %12 = sbr.rel (%p10) target = $region8
    $region5: #{dqn_forward.4} parent=1 // loop_body
      %s14 = ssub.s32 %s9, 1
      %s15 = ssub.s32 %s9, 2
      %s16 = sadd.s32 %s9, 1
      %s17 = ssub.s32 %s9, %s16
      %p18 = scmp.eq.s32.totalorder %s17, 0
      %s20 = sadd.s32 %s19, 1
      %s21 = scalar_select %p18, %s19, %s20
      %p24 = pneg %p18
      %p25 = scmp.eq.s32.totalorder %s9, 2
      %p26 = por %p24, %p25
      %p27 = scmp.ne.s32.totalorder %s19, %s22
      %p28 = scmp.eq.s32.totalorder %s9, 0
      %p29 = por %p27, %p28
      %p30 = scmp.ne.s32.totalorder %s19, %s22
      %p31 = scmp.eq.s32.totalorder %s14, 2
      %p32 = por %p30, %p31
      %p33 = scmp.ne.s32.totalorder %s22, %s23
      %p34 = scmp.eq.s32.totalorder %s14, 0
      %p35 = por %p33, %p34
      %p36 = scmp.ne.s32.totalorder %s22, %s23
      %p37 = scmp.eq.s32.totalorder %s15, 2
      %p38 = por %p36, %p37
      %p40 = scmp.ne.s32.totalorder %s23, %s39
      %p41 = scmp.eq.s32.totalorder %s15, 0
      %p42 = por %p40, %p41
      %s44 = sadd.s32 %s43, 1
      %p47 = scmp.eq.s32.totalorder %s9, 2
      %p48 = scmp.ne.s32.totalorder %s43, %s45
      %p49 = scmp.eq.s32.totalorder %s9, 0
      %p50 = por %p48, %p49
      %p51 = scmp.ne.s32.totalorder %s43, %s45
      %p52 = scmp.eq.s32.totalorder %s14, 2
      %p53 = por %p51, %p52
      %p54 = scmp.ne.s32.totalorder %s45, %s46
      %p55 = scmp.eq.s32.totalorder %s14, 0
      %p56 = por %p54, %p55
      %p57 = scmp.ne.s32.totalorder %s45, %s46
      %p58 = scmp.eq.s32.totalorder %s15, 2
      %p59 = por %p57, %p58
      %p61 = scmp.ne.s32.totalorder %s46, %s60
      %p62 = scmp.eq.s32.totalorder %s15, 0
      %p63 = por %p61, %p62
      %s65 = sadd.s32 %s64, 1
      %p68 = scmp.eq.s32.totalorder %s9, 2
      %p69 = scmp.ne.s32.totalorder %s64, %s66
      %p70 = scmp.eq.s32.totalorder %s9, 0
      %p71 = por %p69, %p70
      %p72 = scmp.ne.s32.totalorder %s64, %s66
      %p73 = scmp.eq.s32.totalorder %s14, 2
      %p74 = por %p72, %p73
      %p75 = scmp.ne.s32.totalorder %s66, %s67
      %p76 = scmp.eq.s32.totalorder %s14, 0
      %p77 = por %p75, %p76
      %p78 = scmp.ne.s32.totalorder %s66, %s67
      %p79 = scmp.eq.s32.totalorder %s15, 2
      %p80 = por %p78, %p79
      %p82 = scmp.ne.s32.totalorder %s67, %s81
      %p83 = scmp.eq.s32.totalorder %s15, 0
      %p84 = por %p82, %p83
      %s85 = ssub.s32 %s9, %s16
      %p86 = scmp.eq.s32.totalorder %s85, 0
      %s88 = sadd.s32 %s87, 1
      %s89 = scalar_select %p86, %s87, %s88
      %p92 = pneg %p86
      %p93 = scmp.eq.s32.totalorder %s9, 2
      %p94 = por %p92, %p93
      %p95 = scmp.ne.s32.totalorder %s87, %s90
      %p96 = scmp.eq.s32.totalorder %s9, 0
      %p97 = por %p95, %p96
      %p98 = scmp.ne.s32.totalorder %s87, %s90
      %p99 = scmp.eq.s32.totalorder %s14, 2
      %p100 = por %p98, %p99
      %p101 = scmp.ne.s32.totalorder %s90, %s91
      %p102 = scmp.eq.s32.totalorder %s14, 0
      %p103 = por %p101, %p102
      %p104 = scmp.ne.s32.totalorder %s90, %s91
      %p105 = scmp.eq.s32.totalorder %s15, 2
      %p106 = por %p104, %p105
      %p108 = scmp.ne.s32.totalorder %s91, %s107
      %p109 = scmp.eq.s32.totalorder %s15, 0
      %p110 = por %p108, %p109
      %p111 = scmp.le.s32.totalorder 1, %s9
      %p112 = scmp.lt.s32.totalorder %s9, 4
      %p113 = pnand %p111, %p112
      %p114 = pneg %p113
      // Predicated region
      $region9: #{dqn_forward.4} parent=5 // pred_check
        _
      $region10: #{dqn_forward.4} parent=5 // pred_check_branch
        %116 = sbr.rel (%p113) target = $region12
      $region11: #{dqn_forward.4} parent=5 // pred_region
        %s117 = ssub.s32 %s9, 1
        // Predicated region
        $region13: #{dqn_forward.4} parent=11 // pred_check
          %p118 = pneg %p56
        $region14: #{dqn_forward.4} parent=11 // pred_check_branch
          %120 = sbr.rel (%p118) target = $region16
        $region15: #{dqn_forward.4} parent=11 // pred_region
          _
        $region16: #{dqn_forward.4} parent=11 // pred_fallthru
          _
        // Predicated region
        $region17: #{dqn_forward.4} parent=11 // pred_check
          %p121 = pneg %p77
        $region18: #{dqn_forward.4} parent=11 // pred_check_branch
          %123 = sbr.rel (%p121) target = $region20
        $region19: #{dqn_forward.4} parent=11 // pred_region
          _
        $region20: #{dqn_forward.4} parent=11 // pred_fallthru
          _
      $region12: #{dqn_forward.4} parent=5 // pred_fallthru
        _
      %p124 = scmp.lt.s32.totalorder %s9, 3
      // Predicated region
      $region21: #{dqn_forward.4} parent=5 // pred_check
        %p125 = pneg %p124
      $region22: #{dqn_forward.4} parent=5 // pred_check_branch
        %127 = sbr.rel (%p125) target = $region24
      $region23: #{dqn_forward.4} parent=5 // pred_region
        // Predicated region
        $region25: #{dqn_forward.4} parent=23 // pred_check
          %p128 = pneg %p29
        $region26: #{dqn_forward.4} parent=23 // pred_check_branch
          %130 = sbr.rel (%p128) target = $region28
        $region27: #{dqn_forward.4} parent=23 // pred_region
          %s131 = smul.u32 32, %s9
          %s132 = ssub.s32 91, %s131
          %p133 = scmp.lt.s32.totalorder %s132, 32
          %s134 = scalar_select %p133, %s132, 32
          %s135 = smul.u32 4, %s134
          %p136 = scmp.lt.s32.totalorder %s131, 90
          %s137 = scalar_select %p136, %s131, 90
          %s138 = smul.addr %s137, 4
          %s139 = scalar_lea.vmem %s0, %s138
          %s140 = smul.u32 32, %s9
          %s141 = ssub.s32 91, %s140
          %p142 = scmp.lt.s32.totalorder %s141, 32
          %s143 = scalar_select %p142, %s141, 32
          %s144 = smul.u32 4, %s143
        $region28: #{dqn_forward.4} parent=23 // pred_fallthru
          _
      $region24: #{dqn_forward.4} parent=5 // pred_fallthru
        _
      %p145 = scmp.le.s32.totalorder 1, %s9
      %p146 = scmp.lt.s32.totalorder %s9, 4
      %p147 = pnand %p145, %p146
      %p148 = pneg %p147
      // Predicated region
      $region29: #{dqn_forward.4} parent=5 // pred_check
        _
      $region30: #{dqn_forward.4} parent=5 // pred_check_branch
        %150 = sbr.rel (%p147) target = $region32
      $region31: #{dqn_forward.4} parent=5 // pred_region
        %s151 = ssub.s32 %s9, 1
        %s152 = smul.u32 32, %s14
        %s153 = ssub.s32 91, %s152
        %p154 = scmp.lt.s32.totalorder %s153, 32
        %s155 = scalar_select %p154, %s153, 32
        %s156 = smul.u32 4, %s155
        %p157 = scmp.lt.s32.totalorder %s152, 90
        %s158 = scalar_select %p157, %s152, 90
        %s159 = smul.addr %s158, 4
        %s160 = scalar_lea.vmem %s0, %s159
        %p161 = pneg %p35
        %p162 = pneg %p32
        %p163 = pneg %p56
        %p164 = pneg %p53
        %p165 = pneg %p77
        %p166 = pneg %p74
        %p167 = pneg %p103
        %p168 = pneg %p100
        %s169 = sand.u32 %s90, 1
        %s170 = sand.u32 %s90, 1
        %s171 = smul.addr %s170, 128
        %s172 = scalar_lea.vmem [#allocation2], %s171
        %s173 = smul.u32 32, %s14
        %s174 = ssub.s32 91, %s173
        %p175 = scmp.lt.s32.totalorder %s174, 32
        %s176 = scalar_select %p175, %s174, 32
        %s177 = smul.u32 4, %s176
        %p178 = scmp.lt.s32.totalorder %s173, 90
        %s179 = scalar_select %p178, %s173, 90
        %s180 = smul.addr %s179, 4
        %s181 = scalar_lea.vmem %s0, %s180
        %s182 = smul.u32 32, %s14
        %s183 = ssub.s32 91, %s182
        %p184 = scmp.lt.s32.totalorder %s183, 32
        %s185 = scalar_select %p184, %s183, 32
        %s186 = smul.u32 4, %s185
        %s187 = smul.u32 32, %s14
        %s188 = ssub.s32 91, %s187
        %p189 = scmp.lt.s32.totalorder %s188, 32
        %s190 = scalar_select %p189, %s188, 32
        %s191 = smul.u32 4, %s190
        %v193 = vld [vmem:[%s181] sm:$0xf]
        %v194 = vld [vmem:[%s181 + $0x4] sm:$0xf]
        %v195 = vld [vmem:[%s181 + $0x8] sm:$0xf]
        %v196 = vld [vmem:[%s181 + $0xc] sm:$0xf]
        %v197 = vld [vmem:[%s181 + $0x10] sm:$0xf]
        %v198 = vld [vmem:[%s181 + $0x14] sm:$0xf]
        %v199 = vld [vmem:[%s181 + $0x18] sm:$0xf]
        %v200 = vld [vmem:[%s181 + $0x1c] sm:$0xf]
        %v201 = vld [vmem:[%s181 + $0x20] sm:$0xf]
        %v202 = vld [vmem:[%s181 + $0x24] sm:$0xf]
        %v203 = vld [vmem:[%s181 + $0x28] sm:$0xf]
        %v204 = vld [vmem:[%s181 + $0x2c] sm:$0xf]
        %v205 = vld [vmem:[%s181 + $0x30] sm:$0xf]
        %v206 = vld [vmem:[%s181 + $0x34] sm:$0xf]
        %v207 = vld [vmem:[%s181 + $0x38] sm:$0xf]
        %v208 = vld [vmem:[%s181 + $0x3c] sm:$0xf]
        %v209 = vld [vmem:[%s181 + $0x40] sm:$0xf]
        %v210 = vld [vmem:[%s181 + $0x44] sm:$0xf]
        %v211 = vld [vmem:[%s181 + $0x48] sm:$0xf]
        %v212 = vld [vmem:[%s181 + $0x4c] sm:$0xf]
        %v213 = vld [vmem:[%s181 + $0x50] sm:$0xf]
        %v214 = vld [vmem:[%s181 + $0x54] sm:$0xf]
        %v215 = vld [vmem:[%s181 + $0x58] sm:$0xf]
        %v216 = vld [vmem:[%s181 + $0x5c] sm:$0xf]
        %v217 = vld [vmem:[%s181 + $0x60] sm:$0xf]
        %v218 = vld [vmem:[%s181 + $0x64] sm:$0xf]
        %v219 = vld [vmem:[%s181 + $0x68] sm:$0xf]
        %v220 = vld [vmem:[%s181 + $0x6c] sm:$0xf]
        %v221 = vld [vmem:[%s181 + $0x70] sm:$0xf]
        %v222 = vld [vmem:[%s181 + $0x74] sm:$0xf]
        %v223 = vld [vmem:[%s181 + $0x78] sm:$0xf]
        %v224 = vld [vmem:[%s181 + $0x7c] sm:$0xf]
        %v225 = vld [vmem:[%s1] sm:$0xf]
        %v226 = vld [vmem:[%s1 + $0x4] sm:$0xf]
        %v227 = vld [vmem:[%s1 + $0x8] sm:$0xf]
        %v228 = vld [vmem:[%s1 + $0xc] sm:$0xf]
        %v229 = vld [vmem:[%s1 + $0x10] sm:$0xf]
        %v230 = vld [vmem:[%s1 + $0x14] sm:$0xf]
        %v231 = vld [vmem:[%s1 + $0x18] sm:$0xf]
        %v232 = vld [vmem:[%s1 + $0x1c] sm:$0xf]
        %v233 = vld [vmem:[%s2] sm:$0x1]
        %v235 = vperm.slane %v233, 0
        %v269 = vunpack.c.l.b16 %v193
        %v270 = vunpack.c.l.b16 %v194
        %v271 = vunpack.c.l.b16 %v195
        %v272 = vunpack.c.l.b16 %v196
        %v273 = vunpack.c.l.b16 %v197
        %v274 = vunpack.c.l.b16 %v198
        %v275 = vunpack.c.l.b16 %v199
        %v276 = vunpack.c.l.b16 %v200
        %v277 = vunpack.c.l.b16 %v201
        %v278 = vunpack.c.l.b16 %v202
        %v279 = vunpack.c.l.b16 %v203
        %v280 = vunpack.c.l.b16 %v204
        %v281 = vunpack.c.l.b16 %v205
        %v282 = vunpack.c.l.b16 %v206
        %v283 = vunpack.c.l.b16 %v207
        %v284 = vunpack.c.l.b16 %v208
        %v285 = vunpack.c.l.b16 %v209
        %v286 = vunpack.c.l.b16 %v210
        %v287 = vunpack.c.l.b16 %v211
        %v288 = vunpack.c.l.b16 %v212
        %v289 = vunpack.c.l.b16 %v213
        %v290 = vunpack.c.l.b16 %v214
        %v291 = vunpack.c.l.b16 %v215
        %v292 = vunpack.c.l.b16 %v216
        %v293 = vunpack.c.l.b16 %v217
        %v294 = vunpack.c.l.b16 %v218
        %v295 = vunpack.c.l.b16 %v219
        %v296 = vunpack.c.l.b16 %v220
        %v297 = vunpack.c.l.b16 %v221
        %v298 = vunpack.c.l.b16 %v222
        %v299 = vunpack.c.l.b16 %v223
        %v300 = vunpack.c.l.b16 %v224
        %v301 = vpack.c.b16 %v270, %v269
        %v302 = vpack.c.b16 %v272, %v271
        %v303 = vpack.c.b16 %v274, %v273
        %v304 = vpack.c.b16 %v276, %v275
        %v305 = vpack.c.b16 %v278, %v277
        %v306 = vpack.c.b16 %v280, %v279
        %v307 = vpack.c.b16 %v282, %v281
        %v308 = vpack.c.b16 %v284, %v283
        %v309 = vpack.c.b16 %v286, %v285
        %v310 = vpack.c.b16 %v288, %v287
        %v311 = vpack.c.b16 %v290, %v289
        %v312 = vpack.c.b16 %v292, %v291
        %v313 = vpack.c.b16 %v294, %v293
        %v314 = vpack.c.b16 %v296, %v295
        %v315 = vpack.c.b16 %v298, %v297
        %v316 = vpack.c.b16 %v300, %v299
        %v325 = vunpack.c.l.b16 %v225
        %v326 = vunpack.c.l.b16 %v226
        %v327 = vunpack.c.l.b16 %v227
        %v328 = vunpack.c.l.b16 %v228
        %v329 = vunpack.c.l.b16 %v229
        %v330 = vunpack.c.l.b16 %v230
        %v331 = vunpack.c.l.b16 %v231
        %v332 = vunpack.c.l.b16 %v232
        %v333 = vpack.c.b16 %v326, %v325
        %v334 = vpack.c.b16 %v328, %v327
        %v335 = vpack.c.b16 %v330, %v329
        %v336 = vpack.c.b16 %v332, %v331
        %vm341 = vcmask 523264
        %v343 = vsel %vm341, %v301, 0
        %v346 = vsel %vm341, %v302, 0
        %v349 = vsel %vm341, %v303, 0
        %v352 = vsel %vm341, %v304, 0
        %v355 = vsel %vm341, %v305, 0
        %v358 = vsel %vm341, %v306, 0
        %v361 = vsel %vm341, %v307, 0
        %v364 = vsel %vm341, %v308, 0
        %v367 = vsel %vm341, %v309, 0
        %v370 = vsel %vm341, %v310, 0
        %v373 = vsel %vm341, %v311, 0
        %v376 = vsel %vm341, %v312, 0
        %v379 = vsel %vm341, %v313, 0
        %v382 = vsel %vm341, %v314, 0
        %v385 = vsel %vm341, %v315, 0
        %v388 = vsel %vm341, %v316, 0
        %390 = vmatpush.bf16.msra.mxu0 0
        %391 = vmatpush.bf16.msra.mxu0 0
        %392 = vmatpush.bf16.msra.mxu0 0
        %393 = vmatpush.bf16.msra.mxu0 0
        %394 = vmatpush.bf16.msra.mxu0 %v336
        %395 = vmatpush.bf16.msra.mxu0 %v335
        %396 = vmatpush.bf16.msra.mxu0 %v334
        %397 = vmatpush.bf16.msra.mxu0 %v333
        %398 = vmatmul.bf16.gmra.mxu0 %v343
        %v399 = vpop.f32.mrf.mxu0
        %v400 = vadd.f32 %v235, %v399
        %v401 = vpop.f32.mrf.mxu0
        %v402 = vadd.f32 %v235, %v401
        %403 = vmatmul.bf16.gmra.mxu0 %v346
        %v404 = vpop.f32.mrf.mxu0
        %v405 = vadd.f32 %v235, %v404
        %v406 = vpop.f32.mrf.mxu0
        %v407 = vadd.f32 %v235, %v406
        %408 = vmatmul.bf16.gmra.mxu0 %v349
        %v409 = vpop.f32.mrf.mxu0
        %v410 = vadd.f32 %v235, %v409
        %v411 = vpop.f32.mrf.mxu0
        %v412 = vadd.f32 %v235, %v411
        %413 = vmatmul.bf16.gmra.mxu0 %v352
        %v414 = vpop.f32.mrf.mxu0
        %v415 = vadd.f32 %v235, %v414
        %v416 = vpop.f32.mrf.mxu0
        %v417 = vadd.f32 %v235, %v416
        %418 = vmatmul.bf16.gmra.mxu0 %v355
        %v419 = vpop.f32.mrf.mxu0
        %v420 = vadd.f32 %v235, %v419
        %v421 = vpop.f32.mrf.mxu0
        %v422 = vadd.f32 %v235, %v421
        %423 = vmatmul.bf16.gmra.mxu0 %v358
        %v424 = vpop.f32.mrf.mxu0
        %v425 = vadd.f32 %v235, %v424
        %v426 = vpop.f32.mrf.mxu0
        %v427 = vadd.f32 %v235, %v426
        %428 = vmatmul.bf16.gmra.mxu0 %v361
        %v429 = vpop.f32.mrf.mxu0
        %v430 = vadd.f32 %v235, %v429
        %v431 = vpop.f32.mrf.mxu0
        %v432 = vadd.f32 %v235, %v431
        %433 = vmatmul.bf16.gmra.mxu0 %v364
        %v434 = vpop.f32.mrf.mxu0
        %v435 = vadd.f32 %v235, %v434
        %v436 = vpop.f32.mrf.mxu0
        %v437 = vadd.f32 %v235, %v436
        %438 = vmatmul.bf16.gmra.mxu0 %v367
        %v439 = vpop.f32.mrf.mxu0
        %v440 = vadd.f32 %v235, %v439
        %v441 = vpop.f32.mrf.mxu0
        %v442 = vadd.f32 %v235, %v441
        %443 = vmatmul.bf16.gmra.mxu0 %v370
        %v444 = vpop.f32.mrf.mxu0
        %v445 = vadd.f32 %v235, %v444
        %v446 = vpop.f32.mrf.mxu0
        %v447 = vadd.f32 %v235, %v446
        %448 = vmatmul.bf16.gmra.mxu0 %v373
        %v449 = vpop.f32.mrf.mxu0
        %v450 = vadd.f32 %v235, %v449
        %v451 = vpop.f32.mrf.mxu0
        %v452 = vadd.f32 %v235, %v451
        %453 = vmatmul.bf16.gmra.mxu0 %v376
        %v454 = vpop.f32.mrf.mxu0
        %v455 = vadd.f32 %v235, %v454
        %v456 = vpop.f32.mrf.mxu0
        %v457 = vadd.f32 %v235, %v456
        %458 = vmatmul.bf16.gmra.mxu0 %v379
        %v459 = vpop.f32.mrf.mxu0
        %v460 = vadd.f32 %v235, %v459
        %v461 = vpop.f32.mrf.mxu0
        %v462 = vadd.f32 %v235, %v461
        %463 = vmatmul.bf16.gmra.mxu0 %v382
        %v464 = vpop.f32.mrf.mxu0
        %v465 = vadd.f32 %v235, %v464
        %v466 = vpop.f32.mrf.mxu0
        %v467 = vadd.f32 %v235, %v466
        %468 = vmatmul.bf16.gmra.mxu0 %v385
        %v469 = vpop.f32.mrf.mxu0
        %v470 = vadd.f32 %v235, %v469
        %v471 = vpop.f32.mrf.mxu0
        %v472 = vadd.f32 %v235, %v471
        %473 = vmatmul.bf16.gmra.mxu0 %v388
        %v474 = vpop.f32.mrf.mxu0
        %v475 = vadd.f32 %v235, %v474
        %v476 = vpop.f32.mrf.mxu0
        %v477 = vadd.f32 %v235, %v476
        %478 = vdwg.mxu0
        %v479 = vmax.f32 %v400, 0.0
        %v480 = vmax.f32 %v402, 0.0
        %v481 = vmax.f32 %v405, 0.0
        %v482 = vmax.f32 %v407, 0.0
        %v483 = vmax.f32 %v410, 0.0
        %v484 = vmax.f32 %v412, 0.0
        %v485 = vmax.f32 %v415, 0.0
        %v486 = vmax.f32 %v417, 0.0
        %v487 = vmax.f32 %v420, 0.0
        %v488 = vmax.f32 %v422, 0.0
        %v489 = vmax.f32 %v425, 0.0
        %v490 = vmax.f32 %v427, 0.0
        %v491 = vmax.f32 %v430, 0.0
        %v492 = vmax.f32 %v432, 0.0
        %v493 = vmax.f32 %v435, 0.0
        %v494 = vmax.f32 %v437, 0.0
        %v495 = vmax.f32 %v440, 0.0
        %v496 = vmax.f32 %v442, 0.0
        %v497 = vmax.f32 %v445, 0.0
        %v498 = vmax.f32 %v447, 0.0
        %v499 = vmax.f32 %v450, 0.0
        %v500 = vmax.f32 %v452, 0.0
        %v501 = vmax.f32 %v455, 0.0
        %v502 = vmax.f32 %v457, 0.0
        %v503 = vmax.f32 %v460, 0.0
        %v504 = vmax.f32 %v462, 0.0
        %v505 = vmax.f32 %v465, 0.0
        %v506 = vmax.f32 %v467, 0.0
        %v507 = vmax.f32 %v470, 0.0
        %v508 = vmax.f32 %v472, 0.0
        %v509 = vmax.f32 %v475, 0.0
        %v510 = vmax.f32 %v477, 0.0
        %v511 = vpack.c.bf16 %v479, %v479
        %v512 = vpack.c.bf16 %v480, %v480
        %v513 = vpack.c.bf16 %v481, %v481
        %v514 = vpack.c.bf16 %v482, %v482
        %v515 = vpack.c.bf16 %v483, %v483
        %v516 = vpack.c.bf16 %v484, %v484
        %v517 = vpack.c.bf16 %v485, %v485
        %v518 = vpack.c.bf16 %v486, %v486
        %v519 = vpack.c.bf16 %v487, %v487
        %v520 = vpack.c.bf16 %v488, %v488
        %v521 = vpack.c.bf16 %v489, %v489
        %v522 = vpack.c.bf16 %v490, %v490
        %v523 = vpack.c.bf16 %v491, %v491
        %v524 = vpack.c.bf16 %v492, %v492
        %v525 = vpack.c.bf16 %v493, %v493
        %v526 = vpack.c.bf16 %v494, %v494
        %v527 = vpack.c.bf16 %v495, %v495
        %v528 = vpack.c.bf16 %v496, %v496
        %v529 = vpack.c.bf16 %v497, %v497
        %v530 = vpack.c.bf16 %v498, %v498
        %v531 = vpack.c.bf16 %v499, %v499
        %v532 = vpack.c.bf16 %v500, %v500
        %v533 = vpack.c.bf16 %v501, %v501
        %v534 = vpack.c.bf16 %v502, %v502
        %v535 = vpack.c.bf16 %v503, %v503
        %v536 = vpack.c.bf16 %v504, %v504
        %v537 = vpack.c.bf16 %v505, %v505
        %v538 = vpack.c.bf16 %v506, %v506
        %v539 = vpack.c.bf16 %v507, %v507
        %v540 = vpack.c.bf16 %v508, %v508
        %v541 = vpack.c.bf16 %v509, %v509
        %v542 = vpack.c.bf16 %v510, %v510
        %vm543 = vcmask 257024
        %544 = vst.msk [vmem:[%s172] sm:$0xf] %vm543, %v511
        %545 = vst.msk [vmem:[%s172 + $0x4] sm:$0xf] %vm543, %v512
        %546 = vst.msk [vmem:[%s172 + $0x8] sm:$0xf] %vm543, %v513
        %547 = vst.msk [vmem:[%s172 + $0xc] sm:$0xf] %vm543, %v514
        %548 = vst.msk [vmem:[%s172 + $0x10] sm:$0xf] %vm543, %v515
        %549 = vst.msk [vmem:[%s172 + $0x14] sm:$0xf] %vm543, %v516
        %550 = vst.msk [vmem:[%s172 + $0x18] sm:$0xf] %vm543, %v517
        %551 = vst.msk [vmem:[%s172 + $0x1c] sm:$0xf] %vm543, %v518
        %552 = vst.msk [vmem:[%s172 + $0x20] sm:$0xf] %vm543, %v519
        %553 = vst.msk [vmem:[%s172 + $0x24] sm:$0xf] %vm543, %v520
        %554 = vst.msk [vmem:[%s172 + $0x28] sm:$0xf] %vm543, %v521
        %555 = vst.msk [vmem:[%s172 + $0x2c] sm:$0xf] %vm543, %v522
        %556 = vst.msk [vmem:[%s172 + $0x30] sm:$0xf] %vm543, %v523
        %557 = vst.msk [vmem:[%s172 + $0x34] sm:$0xf] %vm543, %v524
        %558 = vst.msk [vmem:[%s172 + $0x38] sm:$0xf] %vm543, %v525
        %559 = vst.msk [vmem:[%s172 + $0x3c] sm:$0xf] %vm543, %v526
        %560 = vst.msk [vmem:[%s172 + $0x40] sm:$0xf] %vm543, %v527
        %561 = vst.msk [vmem:[%s172 + $0x44] sm:$0xf] %vm543, %v528
        %562 = vst.msk [vmem:[%s172 + $0x48] sm:$0xf] %vm543, %v529
        %563 = vst.msk [vmem:[%s172 + $0x4c] sm:$0xf] %vm543, %v530
        %564 = vst.msk [vmem:[%s172 + $0x50] sm:$0xf] %vm543, %v531
        %565 = vst.msk [vmem:[%s172 + $0x54] sm:$0xf] %vm543, %v532
        %566 = vst.msk [vmem:[%s172 + $0x58] sm:$0xf] %vm543, %v533
        %567 = vst.msk [vmem:[%s172 + $0x5c] sm:$0xf] %vm543, %v534
        %568 = vst.msk [vmem:[%s172 + $0x60] sm:$0xf] %vm543, %v535
        %569 = vst.msk [vmem:[%s172 + $0x64] sm:$0xf] %vm543, %v536
        %570 = vst.msk [vmem:[%s172 + $0x68] sm:$0xf] %vm543, %v537
        %571 = vst.msk [vmem:[%s172 + $0x6c] sm:$0xf] %vm543, %v538
        %572 = vst.msk [vmem:[%s172 + $0x70] sm:$0xf] %vm543, %v539
        %573 = vst.msk [vmem:[%s172 + $0x74] sm:$0xf] %vm543, %v540
        %574 = vst.msk [vmem:[%s172 + $0x78] sm:$0xf] %vm543, %v541
        %575 = vst.msk [vmem:[%s172 + $0x7c] sm:$0xf] %vm543, %v542
        %s576 = sand.u32 %s90, 1
        %s577 = sand.u32 %s90, 1
        %s578 = smul.addr %s577, 128
        %s579 = scalar_lea.vmem [#allocation2], %s578
        // Predicated region
        $region33: #{dqn_forward.4} parent=31 // pred_check
          %p580 = pneg %p100
        $region34: #{dqn_forward.4} parent=31 // pred_check_branch
          %582 = sbr.rel (%p580) target = $region36
        $region35: #{dqn_forward.4} parent=31 // pred_region
          %s583 = smul.u32 32, %s14
          %s584 = ssub.s32 91, %s583
          %p585 = scmp.lt.s32.totalorder %s584, 32
          %s586 = scalar_select %p585, %s584, 32
          %s587 = smul.u32 4, %s586
          %p588 = scmp.ne.s32.totalorder 0, %s587
          %s589 = smul.addr %s583, 4
          %s590 = scalar_lea.vmem %s3, %s589
          // Predicated region
          $region37: #{dqn_forward.4} parent=35 // pred_check
            %p591 = pneg %p588
          $region38: #{dqn_forward.4} parent=35 // pred_check_branch
            %593 = sbr.rel (%p591) target = $region40
          $region39: #{dqn_forward.4} parent=35 // pred_region
            // Predicated region
            $region41: #{dqn_forward.4} parent=39 // pred_check
              _
            $region42: #{dqn_forward.4} parent=39 // pred_check_branch
              %595 = sbr.rel target = $region44
            $region43: #{dqn_forward.4} parent=39 // pred_region
              // Predicated region
              $region63: #{dqn_forward.4} parent=43 // pred_check
                _
              $region64: #{dqn_forward.4} parent=43 // pred_check_branch
                %707 = sbr.rel (0) target = $region66
              $region65: #{dqn_forward.4} parent=43 // pred_region
                %s709 = ssub.s32 16, 1
                %s710 = sshrl.u32 %s586, 5
                // While loop
                $region67: #{dqn_forward.4} parent=65 // loop_pre_header
                  _
                $region68: #{dqn_forward.4} parent=65 // loop_header
                  %s712 = sphi 0, %s714
                  %p713 = scmp.ge.s32.totalorder %s712, %s710
                  %s717 = sphi 0, %s786
                  %s718 = sphi %s579, %s789
                  %s719 = sphi %s590, %s790
                $region69: #{dqn_forward.4} parent=65 // loop_header_branch
                  %716 = sbr.rel (%p713) target = $region73
                $region70: #{dqn_forward.4} parent=65 // loop_body
                  %v720 = vld [vmem:[%s718] sm:%s709]
                  %721 = vst [vmem:[%s719] sm:%s709] %v720
                  %v722 = vld [vmem:[%s718 + $0x4] sm:%s709]
                  %723 = vst [vmem:[%s719 + $0x4] sm:%s709] %v722
                  %v724 = vld [vmem:[%s718 + $0x8] sm:%s709]
                  %725 = vst [vmem:[%s719 + $0x8] sm:%s709] %v724
                  %v726 = vld [vmem:[%s718 + $0xc] sm:%s709]
                  %727 = vst [vmem:[%s719 + $0xc] sm:%s709] %v726
                  %v728 = vld [vmem:[%s718 + $0x10] sm:%s709]
                  %729 = vst [vmem:[%s719 + $0x10] sm:%s709] %v728
                  %v730 = vld [vmem:[%s718 + $0x14] sm:%s709]
                  %731 = vst [vmem:[%s719 + $0x14] sm:%s709] %v730
                  %v732 = vld [vmem:[%s718 + $0x18] sm:%s709]
                  %733 = vst [vmem:[%s719 + $0x18] sm:%s709] %v732
                  %v734 = vld [vmem:[%s718 + $0x1c] sm:%s709]
                  %735 = vst [vmem:[%s719 + $0x1c] sm:%s709] %v734
                  %v736 = vld [vmem:[%s718 + $0x20] sm:%s709]
                  %737 = vst [vmem:[%s719 + $0x20] sm:%s709] %v736
                  %v738 = vld [vmem:[%s718 + $0x24] sm:%s709]
                  %739 = vst [vmem:[%s719 + $0x24] sm:%s709] %v738
                  %v740 = vld [vmem:[%s718 + $0x28] sm:%s709]
                  %741 = vst [vmem:[%s719 + $0x28] sm:%s709] %v740
                  %v742 = vld [vmem:[%s718 + $0x2c] sm:%s709]
                  %743 = vst [vmem:[%s719 + $0x2c] sm:%s709] %v742
                  %v744 = vld [vmem:[%s718 + $0x30] sm:%s709]
                  %745 = vst [vmem:[%s719 + $0x30] sm:%s709] %v744
                  %v746 = vld [vmem:[%s718 + $0x34] sm:%s709]
                  %747 = vst [vmem:[%s719 + $0x34] sm:%s709] %v746
                  %v748 = vld [vmem:[%s718 + $0x38] sm:%s709]
                  %749 = vst [vmem:[%s719 + $0x38] sm:%s709] %v748
                  %v750 = vld [vmem:[%s718 + $0x3c] sm:%s709]
                  %751 = vst [vmem:[%s719 + $0x3c] sm:%s709] %v750
                  %v752 = vld [vmem:[%s718 + $0x40] sm:%s709]
                  %753 = vst [vmem:[%s719 + $0x40] sm:%s709] %v752
                  %v754 = vld [vmem:[%s718 + $0x44] sm:%s709]
                  %755 = vst [vmem:[%s719 + $0x44] sm:%s709] %v754
                  %v756 = vld [vmem:[%s718 + $0x48] sm:%s709]
                  %757 = vst [vmem:[%s719 + $0x48] sm:%s709] %v756
                  %v758 = vld [vmem:[%s718 + $0x4c] sm:%s709]
                  %759 = vst [vmem:[%s719 + $0x4c] sm:%s709] %v758
                  %v760 = vld [vmem:[%s718 + $0x50] sm:%s709]
                  %761 = vst [vmem:[%s719 + $0x50] sm:%s709] %v760
                  %v762 = vld [vmem:[%s718 + $0x54] sm:%s709]
                  %763 = vst [vmem:[%s719 + $0x54] sm:%s709] %v762
                  %v764 = vld [vmem:[%s718 + $0x58] sm:%s709]
                  %765 = vst [vmem:[%s719 + $0x58] sm:%s709] %v764
                  %v766 = vld [vmem:[%s718 + $0x5c] sm:%s709]
                  %767 = vst [vmem:[%s719 + $0x5c] sm:%s709] %v766
                  %v768 = vld [vmem:[%s718 + $0x60] sm:%s709]
                  %769 = vst [vmem:[%s719 + $0x60] sm:%s709] %v768
                  %v770 = vld [vmem:[%s718 + $0x64] sm:%s709]
                  %771 = vst [vmem:[%s719 + $0x64] sm:%s709] %v770
                  %v772 = vld [vmem:[%s718 + $0x68] sm:%s709]
                  %773 = vst [vmem:[%s719 + $0x68] sm:%s709] %v772
                  %v774 = vld [vmem:[%s718 + $0x6c] sm:%s709]
                  %775 = vst [vmem:[%s719 + $0x6c] sm:%s709] %v774
                  %v776 = vld [vmem:[%s718 + $0x70] sm:%s709]
                  %777 = vst [vmem:[%s719 + $0x70] sm:%s709] %v776
                  %v778 = vld [vmem:[%s718 + $0x74] sm:%s709]
                  %779 = vst [vmem:[%s719 + $0x74] sm:%s709] %v778
                  %v780 = vld [vmem:[%s718 + $0x78] sm:%s709]
                  %781 = vst [vmem:[%s719 + $0x78] sm:%s709] %v780
                  %v782 = vld [vmem:[%s718 + $0x7c] sm:%s709]
                  %783 = vst [vmem:[%s719 + $0x7c] sm:%s709] %v782
                  %s784 = sadd.s32 1, %s717
                  %p785 = scmp.ge.s32.totalorder %s784, %s710
                  %s786 = scalar_select %p785, 0, %s784
                  %s787 = smul.u32 %s786, 128
                  %s788 = smul.u32 %s786, 128
                  %s789 = scalar_lea.vmem %s579, %s787 [#allocation2]
                  %s790 = scalar_lea.vmem %s590, %s788
                $region71: #{dqn_forward.4} parent=65 // loop_footer
                  %s714 = sadd.s32 %s712, 1
                $region72: #{dqn_forward.4} parent=65 // loop_footer_branch
                  %711 = sbr.rel target = $region68
                $region73: #{dqn_forward.4} parent=65 // loop_exit
                  _
                %s791 = sshrl.u32 %s586, 5
                %s792 = sand.u32 %s586, 31
                %s793 = smul.u32 %s791, 32
                %s794 = smul.u32 4, %s793
                %s795 = scalar_lea.vmem %s579, %s794 [#allocation2]
                %s796 = smul.u32 4, %s793
                %s797 = scalar_lea.vmem %s590, %s796
                // While loop
                $region74: #{dqn_forward.4} parent=65 // loop_pre_header
                  _
                $region75: #{dqn_forward.4} parent=65 // loop_header
                  %s799 = sphi 0, %s801
                  %p800 = scmp.ge.s32.totalorder %s799, %s792
                  %s804 = sphi 0, %s811
                  %s805 = sphi %s795, %s814
                  %s806 = sphi %s797, %s815
                $region76: #{dqn_forward.4} parent=65 // loop_header_branch
                  %803 = sbr.rel (%p800) target = $region80
                $region77: #{dqn_forward.4} parent=65 // loop_body
                  %v807 = vld [vmem:[%s805] sm:%s709]
                  %808 = vst [vmem:[%s806] sm:%s709] %v807
                  %s809 = sadd.s32 1, %s804
                  %p810 = scmp.ge.s32.totalorder %s809, %s792
                  %s811 = scalar_select %p810, 0, %s809
                  %s812 = smul.u32 %s811, 4
                  %s813 = smul.u32 %s811, 4
                  %s814 = scalar_lea.vmem %s795, %s812 [#allocation2]
                  %s815 = scalar_lea.vmem %s797, %s813
                $region78: #{dqn_forward.4} parent=65 // loop_footer
                  %s801 = sadd.s32 %s799, 1
                $region79: #{dqn_forward.4} parent=65 // loop_footer_branch
                  %798 = sbr.rel target = $region75
                $region80: #{dqn_forward.4} parent=65 // loop_exit
                  _
              $region66: #{dqn_forward.4} parent=43 // pred_fallthru
                _
            $region44: #{dqn_forward.4} parent=39 // pred_fallthru
              _
            // Predicated region
            $region45: #{dqn_forward.4} parent=39 // pred_check
              _
            $region46: #{dqn_forward.4} parent=39 // pred_check_branch
              %597 = sbr.rel (0) target = $region48
            $region47: #{dqn_forward.4} parent=39 // pred_region
              %s599 = ssub.s32 16, 1
              %s600 = sshrl.u32 %s586, 5
              // While loop
              $region49: #{dqn_forward.4} parent=47 // loop_pre_header
                _
              $region50: #{dqn_forward.4} parent=47 // loop_header
                %s602 = sphi 0, %s604
                %p603 = scmp.ge.s32.totalorder %s602, %s600
                %s607 = sphi 0, %s676
                %s608 = sphi %s579, %s679
                %s609 = sphi %s590, %s680
              $region51: #{dqn_forward.4} parent=47 // loop_header_branch
                %606 = sbr.rel (%p603) target = $region55
              $region52: #{dqn_forward.4} parent=47 // loop_body
                %v610 = vld [vmem:[%s608] sm:%s599]
                %611 = vst [vmem:[%s609] sm:%s599] %v610
                %v612 = vld [vmem:[%s608 + $0x4] sm:%s599]
                %613 = vst [vmem:[%s609 + $0x4] sm:%s599] %v612
                %v614 = vld [vmem:[%s608 + $0x8] sm:%s599]
                %615 = vst [vmem:[%s609 + $0x8] sm:%s599] %v614
                %v616 = vld [vmem:[%s608 + $0xc] sm:%s599]
                %617 = vst [vmem:[%s609 + $0xc] sm:%s599] %v616
                %v618 = vld [vmem:[%s608 + $0x10] sm:%s599]
                %619 = vst [vmem:[%s609 + $0x10] sm:%s599] %v618
                %v620 = vld [vmem:[%s608 + $0x14] sm:%s599]
                %621 = vst [vmem:[%s609 + $0x14] sm:%s599] %v620
                %v622 = vld [vmem:[%s608 + $0x18] sm:%s599]
                %623 = vst [vmem:[%s609 + $0x18] sm:%s599] %v622
                %v624 = vld [vmem:[%s608 + $0x1c] sm:%s599]
                %625 = vst [vmem:[%s609 + $0x1c] sm:%s599] %v624
                %v626 = vld [vmem:[%s608 + $0x20] sm:%s599]
                %627 = vst [vmem:[%s609 + $0x20] sm:%s599] %v626
                %v628 = vld [vmem:[%s608 + $0x24] sm:%s599]
                %629 = vst [vmem:[%s609 + $0x24] sm:%s599] %v628
                %v630 = vld [vmem:[%s608 + $0x28] sm:%s599]
                %631 = vst [vmem:[%s609 + $0x28] sm:%s599] %v630
                %v632 = vld [vmem:[%s608 + $0x2c] sm:%s599]
                %633 = vst [vmem:[%s609 + $0x2c] sm:%s599] %v632
                %v634 = vld [vmem:[%s608 + $0x30] sm:%s599]
                %635 = vst [vmem:[%s609 + $0x30] sm:%s599] %v634
                %v636 = vld [vmem:[%s608 + $0x34] sm:%s599]
                %637 = vst [vmem:[%s609 + $0x34] sm:%s599] %v636
                %v638 = vld [vmem:[%s608 + $0x38] sm:%s599]
                %639 = vst [vmem:[%s609 + $0x38] sm:%s599] %v638
                %v640 = vld [vmem:[%s608 + $0x3c] sm:%s599]
                %641 = vst [vmem:[%s609 + $0x3c] sm:%s599] %v640
                %v642 = vld [vmem:[%s608 + $0x40] sm:%s599]
                %643 = vst [vmem:[%s609 + $0x40] sm:%s599] %v642
                %v644 = vld [vmem:[%s608 + $0x44] sm:%s599]
                %645 = vst [vmem:[%s609 + $0x44] sm:%s599] %v644
                %v646 = vld [vmem:[%s608 + $0x48] sm:%s599]
                %647 = vst [vmem:[%s609 + $0x48] sm:%s599] %v646
                %v648 = vld [vmem:[%s608 + $0x4c] sm:%s599]
                %649 = vst [vmem:[%s609 + $0x4c] sm:%s599] %v648
                %v650 = vld [vmem:[%s608 + $0x50] sm:%s599]
                %651 = vst [vmem:[%s609 + $0x50] sm:%s599] %v650
                %v652 = vld [vmem:[%s608 + $0x54] sm:%s599]
                %653 = vst [vmem:[%s609 + $0x54] sm:%s599] %v652
                %v654 = vld [vmem:[%s608 + $0x58] sm:%s599]
                %655 = vst [vmem:[%s609 + $0x58] sm:%s599] %v654
                %v656 = vld [vmem:[%s608 + $0x5c] sm:%s599]
                %657 = vst [vmem:[%s609 + $0x5c] sm:%s599] %v656
                %v658 = vld [vmem:[%s608 + $0x60] sm:%s599]
                %659 = vst [vmem:[%s609 + $0x60] sm:%s599] %v658
                %v660 = vld [vmem:[%s608 + $0x64] sm:%s599]
                %661 = vst [vmem:[%s609 + $0x64] sm:%s599] %v660
                %v662 = vld [vmem:[%s608 + $0x68] sm:%s599]
                %663 = vst [vmem:[%s609 + $0x68] sm:%s599] %v662
                %v664 = vld [vmem:[%s608 + $0x6c] sm:%s599]
                %665 = vst [vmem:[%s609 + $0x6c] sm:%s599] %v664
                %v666 = vld [vmem:[%s608 + $0x70] sm:%s599]
                %667 = vst [vmem:[%s609 + $0x70] sm:%s599] %v666
                %v668 = vld [vmem:[%s608 + $0x74] sm:%s599]
                %669 = vst [vmem:[%s609 + $0x74] sm:%s599] %v668
                %v670 = vld [vmem:[%s608 + $0x78] sm:%s599]
                %671 = vst [vmem:[%s609 + $0x78] sm:%s599] %v670
                %v672 = vld [vmem:[%s608 + $0x7c] sm:%s599]
                %673 = vst [vmem:[%s609 + $0x7c] sm:%s599] %v672
                %s674 = sadd.s32 1, %s607
                %p675 = scmp.ge.s32.totalorder %s674, %s600
                %s676 = scalar_select %p675, 0, %s674
                %s677 = smul.u32 %s676, 128
                %s678 = smul.u32 %s676, 128
                %s679 = scalar_lea.vmem %s579, %s677 [#allocation2]
                %s680 = scalar_lea.vmem %s590, %s678
              $region53: #{dqn_forward.4} parent=47 // loop_footer
                %s604 = sadd.s32 %s602, 1
              $region54: #{dqn_forward.4} parent=47 // loop_footer_branch
                %601 = sbr.rel target = $region50
              $region55: #{dqn_forward.4} parent=47 // loop_exit
                _
              %s681 = sshrl.u32 %s586, 5
              %s682 = sand.u32 %s586, 31
              %s683 = smul.u32 %s681, 32
              %s684 = smul.u32 4, %s683
              %s685 = scalar_lea.vmem %s579, %s684 [#allocation2]
              %s686 = smul.u32 4, %s683
              %s687 = scalar_lea.vmem %s590, %s686
              // While loop
              $region56: #{dqn_forward.4} parent=47 // loop_pre_header
                _
              $region57: #{dqn_forward.4} parent=47 // loop_header
                %s689 = sphi 0, %s691
                %p690 = scmp.ge.s32.totalorder %s689, %s682
                %s694 = sphi 0, %s701
                %s695 = sphi %s685, %s704
                %s696 = sphi %s687, %s705
              $region58: #{dqn_forward.4} parent=47 // loop_header_branch
                %693 = sbr.rel (%p690) target = $region62
              $region59: #{dqn_forward.4} parent=47 // loop_body
                %v697 = vld [vmem:[%s695] sm:%s599]
                %698 = vst [vmem:[%s696] sm:%s599] %v697
                %s699 = sadd.s32 1, %s694
                %p700 = scmp.ge.s32.totalorder %s699, %s682
                %s701 = scalar_select %p700, 0, %s699
                %s702 = smul.u32 %s701, 4
                %s703 = smul.u32 %s701, 4
                %s704 = scalar_lea.vmem %s685, %s702 [#allocation2]
                %s705 = scalar_lea.vmem %s687, %s703
              $region60: #{dqn_forward.4} parent=47 // loop_footer
                %s691 = sadd.s32 %s689, 1
              $region61: #{dqn_forward.4} parent=47 // loop_footer_branch
                %688 = sbr.rel target = $region57
              $region62: #{dqn_forward.4} parent=47 // loop_exit
                _
            $region48: #{dqn_forward.4} parent=39 // pred_fallthru
              _
          $region40: #{dqn_forward.4} parent=35 // pred_fallthru
            _
          %816 = vnop
        $region36: #{dqn_forward.4} parent=31 // pred_fallthru
          _
      $region32: #{dqn_forward.4} parent=5 // pred_fallthru
        _
      %p817 = scmp.le.s32.totalorder 2, %s9
      // Predicated region
      $region81: #{dqn_forward.4} parent=5 // pred_check
        %p818 = pneg %p817
      $region82: #{dqn_forward.4} parent=5 // pred_check_branch
        %820 = sbr.rel (%p818) target = $region84
      $region83: #{dqn_forward.4} parent=5 // pred_region
        %s821 = ssub.s32 %s9, 2
        // Predicated region
        $region85: #{dqn_forward.4} parent=83 // pred_check
          %p822 = pneg %p106
        $region86: #{dqn_forward.4} parent=83 // pred_check_branch
          %824 = sbr.rel (%p822) target = $region88
        $region87: #{dqn_forward.4} parent=83 // pred_region
          %s825 = sand.u32 %s91, 1
          %s826 = sand.u32 %s91, 1
          %s827 = smul.addr %s826, 128
          %s828 = scalar_lea.vmem [#allocation2], %s827
        $region88: #{dqn_forward.4} parent=83 // pred_fallthru
          _
      $region84: #{dqn_forward.4} parent=5 // pred_fallthru
        _
    $region6: #{dqn_forward.4} parent=1 // loop_footer
      %s13 = sadd.s32 1, %s9
    $region7: #{dqn_forward.4} parent=1 // loop_footer_branch
      %8 = sbr.rel target = $region3
    $region8: #{dqn_forward.4} parent=1 // loop_exit
      _

// kernel: dqn_forward.5
$region0: #{dqn_forward.5}
  #allocation0 [shape = 'u32[]', space=smem, size = 0x4, offset = 0x4, fixed_abs, tag = 'smem constant byte address 0x4 - core index']
  #allocation1 [shape = 'u32[72,128]{1,0:T(1,128)}', space=vmem, size = 0x9000, scoped, tag = 'internal scratch']
  %s0 = inlined_call_operand.vmem [shape: bf16[128,512], index: 0, kind: input, shape index: {}]
  %s1 = inlined_call_operand.vmem [shape: bf16[512,64], index: 1, kind: input, shape index: {}]
  %s2 = inlined_call_operand.vmem [shape: f32[1,64], index: 2, kind: input, shape index: {}]
  %s3 = inlined_call_operand.vmem [shape: bf16[128,64], index: 3, kind: output, shape index: {}]
  %s4 = sld [smem:[#allocation0]]
  $region22: #{dqn_forward.5} parent=0
    _
  %s6 = ssub.s32 1, %s4
  %s7 = scalar_select 0, %s6, %s4
  // Predicated region
  $region2: #{dqn_forward.5} parent=0 // pred_check
    _
  $region3: #{dqn_forward.5} parent=0 // pred_check_branch
    %9 = sbr.rel (0) target = $region5
  $region4: #{dqn_forward.5} parent=0 // pred_region
    _
  $region5: #{dqn_forward.5} parent=0 // pred_fallthru
    _
  // Predicated region
  $region6: #{dqn_forward.5} parent=0 // pred_check
    _
  $region7: #{dqn_forward.5} parent=0 // pred_check_branch
    %11 = sbr.rel (0) target = $region9
  $region8: #{dqn_forward.5} parent=0 // pred_region
    _
  $region9: #{dqn_forward.5} parent=0 // pred_fallthru
    _
  // Predicated region
  $region10: #{dqn_forward.5} parent=0 // pred_check
    _
  $region11: #{dqn_forward.5} parent=0 // pred_check_branch
    %13 = sbr.rel (0) target = $region13
  $region12: #{dqn_forward.5} parent=0 // pred_region
    _
  $region13: #{dqn_forward.5} parent=0 // pred_fallthru
    _
  %v14 = vld [vmem:[%s0] sm:$0xff]
  %v15 = vld [vmem:[%s0 + $0x8] sm:$0xff]
  %v16 = vld [vmem:[%s0 + $0x10] sm:$0xff]
  %v17 = vld [vmem:[%s0 + $0x18] sm:$0xff]
  %v18 = vld [vmem:[%s0 + $0x20] sm:$0xff]
  %v19 = vld [vmem:[%s0 + $0x28] sm:$0xff]
  %v20 = vld [vmem:[%s0 + $0x30] sm:$0xff]
  %v21 = vld [vmem:[%s0 + $0x38] sm:$0xff]
  %v22 = vld [vmem:[%s0 + $0x40] sm:$0xff]
  %v23 = vld [vmem:[%s0 + $0x48] sm:$0xff]
  %v24 = vld [vmem:[%s0 + $0x50] sm:$0xff]
  %v25 = vld [vmem:[%s0 + $0x58] sm:$0xff]
  %v26 = vld [vmem:[%s0 + $0x60] sm:$0xff]
  %v27 = vld [vmem:[%s0 + $0x68] sm:$0xff]
  %v28 = vld [vmem:[%s0 + $0x70] sm:$0xff]
  %v29 = vld [vmem:[%s0 + $0x78] sm:$0xff]
  %v30 = vld [vmem:[%s0 + $0x80] sm:$0xff]
  %v31 = vld [vmem:[%s0 + $0x88] sm:$0xff]
  %v32 = vld [vmem:[%s0 + $0x90] sm:$0xff]
  %v33 = vld [vmem:[%s0 + $0x98] sm:$0xff]
  %v34 = vld [vmem:[%s0 + $0xa0] sm:$0xff]
  %v35 = vld [vmem:[%s0 + $0xa8] sm:$0xff]
  %v36 = vld [vmem:[%s0 + $0xb0] sm:$0xff]
  %v37 = vld [vmem:[%s0 + $0xb8] sm:$0xff]
  %v38 = vld [vmem:[%s0 + $0xc0] sm:$0xff]
  %v39 = vld [vmem:[%s0 + $0xc8] sm:$0xff]
  %v40 = vld [vmem:[%s0 + $0xd0] sm:$0xff]
  %v41 = vld [vmem:[%s0 + $0xd8] sm:$0xff]
  %v42 = vld [vmem:[%s0 + $0xe0] sm:$0xff]
  %v43 = vld [vmem:[%s0 + $0xe8] sm:$0xff]
  %v44 = vld [vmem:[%s0 + $0xf0] sm:$0xff]
  %v45 = vld [vmem:[%s0 + $0xf8] sm:$0xff]
  %v46 = vld [vmem:[%s1] sm:$0xf]
  %v47 = vld [vmem:[%s1 + $0x4] sm:$0xf]
  %v48 = vld [vmem:[%s1 + $0x8] sm:$0xf]
  %v49 = vld [vmem:[%s1 + $0xc] sm:$0xf]
  %v50 = vld [vmem:[%s1 + $0x10] sm:$0xf]
  %v51 = vld [vmem:[%s1 + $0x14] sm:$0xf]
  %v52 = vld [vmem:[%s1 + $0x18] sm:$0xf]
  %v53 = vld [vmem:[%s1 + $0x1c] sm:$0xf]
  %v54 = vld [vmem:[%s1 + $0x20] sm:$0xf]
  %v55 = vld [vmem:[%s1 + $0x24] sm:$0xf]
  %v56 = vld [vmem:[%s1 + $0x28] sm:$0xf]
  %v57 = vld [vmem:[%s1 + $0x2c] sm:$0xf]
  %v58 = vld [vmem:[%s1 + $0x30] sm:$0xf]
  %v59 = vld [vmem:[%s1 + $0x34] sm:$0xf]
  %v60 = vld [vmem:[%s1 + $0x38] sm:$0xf]
  %v61 = vld [vmem:[%s1 + $0x3c] sm:$0xf]
  %v62 = vld [vmem:[%s1 + $0x40] sm:$0xf]
  %v63 = vld [vmem:[%s1 + $0x44] sm:$0xf]
  %v64 = vld [vmem:[%s1 + $0x48] sm:$0xf]
  %v65 = vld [vmem:[%s1 + $0x4c] sm:$0xf]
  %v66 = vld [vmem:[%s1 + $0x50] sm:$0xf]
  %v67 = vld [vmem:[%s1 + $0x54] sm:$0xf]
  %v68 = vld [vmem:[%s1 + $0x58] sm:$0xf]
  %v69 = vld [vmem:[%s1 + $0x5c] sm:$0xf]
  %v70 = vld [vmem:[%s1 + $0x60] sm:$0xf]
  %v71 = vld [vmem:[%s1 + $0x64] sm:$0xf]
  %v72 = vld [vmem:[%s1 + $0x68] sm:$0xf]
  %v73 = vld [vmem:[%s1 + $0x6c] sm:$0xf]
  %v74 = vld [vmem:[%s1 + $0x70] sm:$0xf]
  %v75 = vld [vmem:[%s1 + $0x74] sm:$0xf]
  %v76 = vld [vmem:[%s1 + $0x78] sm:$0xf]
  %v77 = vld [vmem:[%s1 + $0x7c] sm:$0xf]
  %v78 = vld [vmem:[%s1 + $0x80] sm:$0xf]
  %v79 = vld [vmem:[%s1 + $0x84] sm:$0xf]
  %v80 = vld [vmem:[%s1 + $0x88] sm:$0xf]
  %v81 = vld [vmem:[%s1 + $0x8c] sm:$0xf]
  %v82 = vld [vmem:[%s1 + $0x90] sm:$0xf]
  %v83 = vld [vmem:[%s1 + $0x94] sm:$0xf]
  %v84 = vld [vmem:[%s1 + $0x98] sm:$0xf]
  %v85 = vld [vmem:[%s1 + $0x9c] sm:$0xf]
  %v86 = vld [vmem:[%s1 + $0xa0] sm:$0xf]
  %v87 = vld [vmem:[%s1 + $0xa4] sm:$0xf]
  %v88 = vld [vmem:[%s1 + $0xa8] sm:$0xf]
  %v89 = vld [vmem:[%s1 + $0xac] sm:$0xf]
  %v90 = vld [vmem:[%s1 + $0xb0] sm:$0xf]
  %v91 = vld [vmem:[%s1 + $0xb4] sm:$0xf]
  %v92 = vld [vmem:[%s1 + $0xb8] sm:$0xf]
  %v93 = vld [vmem:[%s1 + $0xbc] sm:$0xf]
  %v94 = vld [vmem:[%s1 + $0xc0] sm:$0xf]
  %v95 = vld [vmem:[%s1 + $0xc4] sm:$0xf]
  %v96 = vld [vmem:[%s1 + $0xc8] sm:$0xf]
  %v97 = vld [vmem:[%s1 + $0xcc] sm:$0xf]
  %v98 = vld [vmem:[%s1 + $0xd0] sm:$0xf]
  %v99 = vld [vmem:[%s1 + $0xd4] sm:$0xf]
  %v100 = vld [vmem:[%s1 + $0xd8] sm:$0xf]
  %v101 = vld [vmem:[%s1 + $0xdc] sm:$0xf]
  %v102 = vld [vmem:[%s1 + $0xe0] sm:$0xf]
  %v103 = vld [vmem:[%s1 + $0xe4] sm:$0xf]
  %v104 = vld [vmem:[%s1 + $0xe8] sm:$0xf]
  %v105 = vld [vmem:[%s1 + $0xec] sm:$0xf]
  %v106 = vld [vmem:[%s1 + $0xf0] sm:$0xf]
  %v107 = vld [vmem:[%s1 + $0xf4] sm:$0xf]
  %v108 = vld [vmem:[%s1 + $0xf8] sm:$0xf]
  %v109 = vld [vmem:[%s1 + $0xfc] sm:$0xf]
  %v110 = vld [vmem:[%s2] sm:$0x1]
  %v112 = vperm.slane %v110, 0
  %v146 = vunpack.c.l.b16 %v14
  %v147 = vunpack.c.h.b16 %v14
  %v148 = vunpack.c.l.b16 %v15
  %v149 = vunpack.c.h.b16 %v15
  %v150 = vunpack.c.l.b16 %v16
  %v151 = vunpack.c.h.b16 %v16
  %v152 = vunpack.c.l.b16 %v17
  %v153 = vunpack.c.h.b16 %v17
  %v154 = vunpack.c.l.b16 %v18
  %v155 = vunpack.c.h.b16 %v18
  %v156 = vunpack.c.l.b16 %v19
  %v157 = vunpack.c.h.b16 %v19
  %v158 = vunpack.c.l.b16 %v20
  %v159 = vunpack.c.h.b16 %v20
  %v160 = vunpack.c.l.b16 %v21
  %v161 = vunpack.c.h.b16 %v21
  %v162 = vunpack.c.l.b16 %v22
  %v163 = vunpack.c.h.b16 %v22
  %v164 = vunpack.c.l.b16 %v23
  %v165 = vunpack.c.h.b16 %v23
  %v166 = vunpack.c.l.b16 %v24
  %v167 = vunpack.c.h.b16 %v24
  %v168 = vunpack.c.l.b16 %v25
  %v169 = vunpack.c.h.b16 %v25
  %v170 = vunpack.c.l.b16 %v26
  %v171 = vunpack.c.h.b16 %v26
  %v172 = vunpack.c.l.b16 %v27
  %v173 = vunpack.c.h.b16 %v27
  %v174 = vunpack.c.l.b16 %v28
  %v175 = vunpack.c.h.b16 %v28
  %v176 = vunpack.c.l.b16 %v29
  %v177 = vunpack.c.h.b16 %v29
  %v178 = vunpack.c.l.b16 %v30
  %v179 = vunpack.c.h.b16 %v30
  %v180 = vunpack.c.l.b16 %v31
  %v181 = vunpack.c.h.b16 %v31
  %v182 = vunpack.c.l.b16 %v32
  %v183 = vunpack.c.h.b16 %v32
  %v184 = vunpack.c.l.b16 %v33
  %v185 = vunpack.c.h.b16 %v33
  %v186 = vunpack.c.l.b16 %v34
  %v187 = vunpack.c.h.b16 %v34
  %v188 = vunpack.c.l.b16 %v35
  %v189 = vunpack.c.h.b16 %v35
  %v190 = vunpack.c.l.b16 %v36
  %v191 = vunpack.c.h.b16 %v36
  %v192 = vunpack.c.l.b16 %v37
  %v193 = vunpack.c.h.b16 %v37
  %v194 = vunpack.c.l.b16 %v38
  %v195 = vunpack.c.h.b16 %v38
  %v196 = vunpack.c.l.b16 %v39
  %v197 = vunpack.c.h.b16 %v39
  %v198 = vunpack.c.l.b16 %v40
  %v199 = vunpack.c.h.b16 %v40
  %v200 = vunpack.c.l.b16 %v41
  %v201 = vunpack.c.h.b16 %v41
  %v202 = vunpack.c.l.b16 %v42
  %v203 = vunpack.c.h.b16 %v42
  %v204 = vunpack.c.l.b16 %v43
  %v205 = vunpack.c.h.b16 %v43
  %v206 = vunpack.c.l.b16 %v44
  %v207 = vunpack.c.h.b16 %v44
  %v208 = vunpack.c.l.b16 %v45
  %v209 = vunpack.c.h.b16 %v45
  %v210 = vpack.c.b16 %v150, %v146
  %v211 = vpack.c.b16 %v151, %v147
  %v212 = vpack.c.b16 %v152, %v148
  %v213 = vpack.c.b16 %v153, %v149
  %v214 = vpack.c.b16 %v158, %v154
  %v215 = vpack.c.b16 %v159, %v155
  %v216 = vpack.c.b16 %v160, %v156
  %v217 = vpack.c.b16 %v161, %v157
  %v218 = vpack.c.b16 %v166, %v162
  %v219 = vpack.c.b16 %v167, %v163
  %v220 = vpack.c.b16 %v168, %v164
  %v221 = vpack.c.b16 %v169, %v165
  %v222 = vpack.c.b16 %v174, %v170
  %v223 = vpack.c.b16 %v175, %v171
  %v224 = vpack.c.b16 %v176, %v172
  %v225 = vpack.c.b16 %v177, %v173
  %v226 = vpack.c.b16 %v182, %v178
  %v227 = vpack.c.b16 %v183, %v179
  %v228 = vpack.c.b16 %v184, %v180
  %v229 = vpack.c.b16 %v185, %v181
  %v230 = vpack.c.b16 %v190, %v186
  %v231 = vpack.c.b16 %v191, %v187
  %v232 = vpack.c.b16 %v192, %v188
  %v233 = vpack.c.b16 %v193, %v189
  %v234 = vpack.c.b16 %v198, %v194
  %v235 = vpack.c.b16 %v199, %v195
  %v236 = vpack.c.b16 %v200, %v196
  %v237 = vpack.c.b16 %v201, %v197
  %v238 = vpack.c.b16 %v206, %v202
  %v239 = vpack.c.b16 %v207, %v203
  %v240 = vpack.c.b16 %v208, %v204
  %v241 = vpack.c.b16 %v209, %v205
  %v338 = vunpack.c.l.b16 %v46
  %v339 = vunpack.c.l.b16 %v47
  %v340 = vunpack.c.l.b16 %v48
  %v341 = vunpack.c.l.b16 %v49
  %v342 = vunpack.c.l.b16 %v50
  %v343 = vunpack.c.l.b16 %v51
  %v344 = vunpack.c.l.b16 %v52
  %v345 = vunpack.c.l.b16 %v53
  %v346 = vunpack.c.l.b16 %v54
  %v347 = vunpack.c.l.b16 %v55
  %v348 = vunpack.c.l.b16 %v56
  %v349 = vunpack.c.l.b16 %v57
  %v350 = vunpack.c.l.b16 %v58
  %v351 = vunpack.c.l.b16 %v59
  %v352 = vunpack.c.l.b16 %v60
  %v353 = vunpack.c.l.b16 %v61
  %v354 = vunpack.c.l.b16 %v62
  %v355 = vunpack.c.l.b16 %v63
  %v356 = vunpack.c.l.b16 %v64
  %v357 = vunpack.c.l.b16 %v65
  %v358 = vunpack.c.l.b16 %v66
  %v359 = vunpack.c.l.b16 %v67
  %v360 = vunpack.c.l.b16 %v68
  %v361 = vunpack.c.l.b16 %v69
  %v362 = vunpack.c.l.b16 %v70
  %v363 = vunpack.c.l.b16 %v71
  %v364 = vunpack.c.l.b16 %v72
  %v365 = vunpack.c.l.b16 %v73
  %v366 = vunpack.c.l.b16 %v74
  %v367 = vunpack.c.l.b16 %v75
  %v368 = vunpack.c.l.b16 %v76
  %v369 = vunpack.c.l.b16 %v77
  %v370 = vunpack.c.l.b16 %v78
  %v371 = vunpack.c.l.b16 %v79
  %v372 = vunpack.c.l.b16 %v80
  %v373 = vunpack.c.l.b16 %v81
  %v374 = vunpack.c.l.b16 %v82
  %v375 = vunpack.c.l.b16 %v83
  %v376 = vunpack.c.l.b16 %v84
  %v377 = vunpack.c.l.b16 %v85
  %v378 = vunpack.c.l.b16 %v86
  %v379 = vunpack.c.l.b16 %v87
  %v380 = vunpack.c.l.b16 %v88
  %v381 = vunpack.c.l.b16 %v89
  %v382 = vunpack.c.l.b16 %v90
  %v383 = vunpack.c.l.b16 %v91
  %v384 = vunpack.c.l.b16 %v92
  %v385 = vunpack.c.l.b16 %v93
  %v386 = vunpack.c.l.b16 %v94
  %v387 = vunpack.c.l.b16 %v95
  %v388 = vunpack.c.l.b16 %v96
  %v389 = vunpack.c.l.b16 %v97
  %v390 = vunpack.c.l.b16 %v98
  %v391 = vunpack.c.l.b16 %v99
  %v392 = vunpack.c.l.b16 %v100
  %v393 = vunpack.c.l.b16 %v101
  %v394 = vunpack.c.l.b16 %v102
  %v395 = vunpack.c.l.b16 %v103
  %v396 = vunpack.c.l.b16 %v104
  %v397 = vunpack.c.l.b16 %v105
  %v398 = vunpack.c.l.b16 %v106
  %v399 = vunpack.c.l.b16 %v107
  %v400 = vunpack.c.l.b16 %v108
  %v401 = vunpack.c.l.b16 %v109
  %v402 = vpack.c.b16 %v339, %v338
  %v403 = vpack.c.b16 %v341, %v340
  %v404 = vpack.c.b16 %v343, %v342
  %v405 = vpack.c.b16 %v345, %v344
  %v406 = vpack.c.b16 %v347, %v346
  %v407 = vpack.c.b16 %v349, %v348
  %v408 = vpack.c.b16 %v351, %v350
  %v409 = vpack.c.b16 %v353, %v352
  %v410 = vpack.c.b16 %v355, %v354
  %v411 = vpack.c.b16 %v357, %v356
  %v412 = vpack.c.b16 %v359, %v358
  %v413 = vpack.c.b16 %v361, %v360
  %v414 = vpack.c.b16 %v363, %v362
  %v415 = vpack.c.b16 %v365, %v364
  %v416 = vpack.c.b16 %v367, %v366
  %v417 = vpack.c.b16 %v369, %v368
  %v418 = vpack.c.b16 %v371, %v370
  %v419 = vpack.c.b16 %v373, %v372
  %v420 = vpack.c.b16 %v375, %v374
  %v421 = vpack.c.b16 %v377, %v376
  %v422 = vpack.c.b16 %v379, %v378
  %v423 = vpack.c.b16 %v381, %v380
  %v424 = vpack.c.b16 %v383, %v382
  %v425 = vpack.c.b16 %v385, %v384
  %v426 = vpack.c.b16 %v387, %v386
  %v427 = vpack.c.b16 %v389, %v388
  %v428 = vpack.c.b16 %v391, %v390
  %v429 = vpack.c.b16 %v393, %v392
  %v430 = vpack.c.b16 %v395, %v394
  %v431 = vpack.c.b16 %v397, %v396
  %v432 = vpack.c.b16 %v399, %v398
  %v433 = vpack.c.b16 %v401, %v400
  %466 = vmatpush.bf16.msra.mxu0 %v409
  %467 = vmatpush.bf16.msra.mxu0 %v408
  %468 = vmatpush.bf16.msra.mxu0 %v407
  %469 = vmatpush.bf16.msra.mxu0 %v406
  %470 = vmatpush.bf16.msra.mxu0 %v405
  %471 = vmatpush.bf16.msra.mxu0 %v404
  %472 = vmatpush.bf16.msra.mxu0 %v403
  %473 = vmatpush.bf16.msra.mxu0 %v402
  %474 = vmatmul.bf16.gmra.mxu0 %v210
  %v475 = vpop.f32.mrf.mxu0
  %v476 = vadd.f32 %v112, %v475
  %v477 = vpop.f32.mrf.mxu0
  %v478 = vadd.f32 %v112, %v477
  %479 = vmatmul.bf16.gmra.mxu0 %v214
  %v480 = vpop.f32.mrf.mxu0
  %v481 = vadd.f32 %v112, %v480
  %v482 = vpop.f32.mrf.mxu0
  %v483 = vadd.f32 %v112, %v482
  %484 = vmatmul.bf16.gmra.mxu0 %v218
  %v485 = vpop.f32.mrf.mxu0
  %v486 = vadd.f32 %v112, %v485
  %v487 = vpop.f32.mrf.mxu0
  %v488 = vadd.f32 %v112, %v487
  %489 = vmatmul.bf16.gmra.mxu0 %v222
  %v490 = vpop.f32.mrf.mxu0
  %v491 = vadd.f32 %v112, %v490
  %v492 = vpop.f32.mrf.mxu0
  %v493 = vadd.f32 %v112, %v492
  %494 = vmatmul.bf16.gmra.mxu0 %v226
  %v495 = vpop.f32.mrf.mxu0
  %v496 = vadd.f32 %v112, %v495
  %v497 = vpop.f32.mrf.mxu0
  %v498 = vadd.f32 %v112, %v497
  %499 = vmatmul.bf16.gmra.mxu0 %v230
  %v500 = vpop.f32.mrf.mxu0
  %v501 = vadd.f32 %v112, %v500
  %v502 = vpop.f32.mrf.mxu0
  %v503 = vadd.f32 %v112, %v502
  %504 = vmatmul.bf16.gmra.mxu0 %v234
  %v505 = vpop.f32.mrf.mxu0
  %v506 = vadd.f32 %v112, %v505
  %v507 = vpop.f32.mrf.mxu0
  %v508 = vadd.f32 %v112, %v507
  %509 = vmatmul.bf16.gmra.mxu0 %v238
  %v510 = vpop.f32.mrf.mxu0
  %v511 = vadd.f32 %v112, %v510
  %v512 = vpop.f32.mrf.mxu0
  %v513 = vadd.f32 %v112, %v512
  %514 = vdwg.mxu0
  %515 = vmatpush.bf16.msra.mxu0 %v417
  %516 = vmatpush.bf16.msra.mxu0 %v416
  %517 = vmatpush.bf16.msra.mxu0 %v415
  %518 = vmatpush.bf16.msra.mxu0 %v414
  %519 = vmatpush.bf16.msra.mxu0 %v413
  %520 = vmatpush.bf16.msra.mxu0 %v412
  %521 = vmatpush.bf16.msra.mxu0 %v411
  %522 = vmatpush.bf16.msra.mxu0 %v410
  %523 = vmatmul.bf16.gmra.mxu0 %v211
  %v524 = vpop.f32.mrf.mxu0
  %v525 = vadd.f32 %v476, %v524
  %v526 = vpop.f32.mrf.mxu0
  %v527 = vadd.f32 %v478, %v526
  %528 = vmatmul.bf16.gmra.mxu0 %v215
  %v529 = vpop.f32.mrf.mxu0
  %v530 = vadd.f32 %v481, %v529
  %v531 = vpop.f32.mrf.mxu0
  %v532 = vadd.f32 %v483, %v531
  %533 = vmatmul.bf16.gmra.mxu0 %v219
  %v534 = vpop.f32.mrf.mxu0
  %v535 = vadd.f32 %v486, %v534
  %v536 = vpop.f32.mrf.mxu0
  %v537 = vadd.f32 %v488, %v536
  %538 = vmatmul.bf16.gmra.mxu0 %v223
  %v539 = vpop.f32.mrf.mxu0
  %v540 = vadd.f32 %v491, %v539
  %v541 = vpop.f32.mrf.mxu0
  %v542 = vadd.f32 %v493, %v541
  %543 = vmatmul.bf16.gmra.mxu0 %v227
  %v544 = vpop.f32.mrf.mxu0
  %v545 = vadd.f32 %v496, %v544
  %v546 = vpop.f32.mrf.mxu0
  %v547 = vadd.f32 %v498, %v546
  %548 = vmatmul.bf16.gmra.mxu0 %v231
  %v549 = vpop.f32.mrf.mxu0
  %v550 = vadd.f32 %v501, %v549
  %v551 = vpop.f32.mrf.mxu0
  %v552 = vadd.f32 %v503, %v551
  %553 = vmatmul.bf16.gmra.mxu0 %v235
  %v554 = vpop.f32.mrf.mxu0
  %v555 = vadd.f32 %v506, %v554
  %v556 = vpop.f32.mrf.mxu0
  %v557 = vadd.f32 %v508, %v556
  %558 = vmatmul.bf16.gmra.mxu0 %v239
  %v559 = vpop.f32.mrf.mxu0
  %v560 = vadd.f32 %v511, %v559
  %v561 = vpop.f32.mrf.mxu0
  %v562 = vadd.f32 %v513, %v561
  %563 = vdwg.mxu0
  %564 = vmatpush.bf16.msra.mxu0 %v425
  %565 = vmatpush.bf16.msra.mxu0 %v424
  %566 = vmatpush.bf16.msra.mxu0 %v423
  %567 = vmatpush.bf16.msra.mxu0 %v422
  %568 = vmatpush.bf16.msra.mxu0 %v421
  %569 = vmatpush.bf16.msra.mxu0 %v420
  %570 = vmatpush.bf16.msra.mxu0 %v419
  %571 = vmatpush.bf16.msra.mxu0 %v418
  %572 = vmatmul.bf16.gmra.mxu0 %v212
  %v573 = vpop.f32.mrf.mxu0
  %v574 = vadd.f32 %v525, %v573
  %v575 = vpop.f32.mrf.mxu0
  %v576 = vadd.f32 %v527, %v575
  %577 = vmatmul.bf16.gmra.mxu0 %v216
  %v578 = vpop.f32.mrf.mxu0
  %v579 = vadd.f32 %v530, %v578
  %v580 = vpop.f32.mrf.mxu0
  %v581 = vadd.f32 %v532, %v580
  %582 = vmatmul.bf16.gmra.mxu0 %v220
  %v583 = vpop.f32.mrf.mxu0
  %v584 = vadd.f32 %v535, %v583
  %v585 = vpop.f32.mrf.mxu0
  %v586 = vadd.f32 %v537, %v585
  %587 = vmatmul.bf16.gmra.mxu0 %v224
  %v588 = vpop.f32.mrf.mxu0
  %v589 = vadd.f32 %v540, %v588
  %v590 = vpop.f32.mrf.mxu0
  %v591 = vadd.f32 %v542, %v590
  %592 = vmatmul.bf16.gmra.mxu0 %v228
  %v593 = vpop.f32.mrf.mxu0
  %v594 = vadd.f32 %v545, %v593
  %v595 = vpop.f32.mrf.mxu0
  %v596 = vadd.f32 %v547, %v595
  %597 = vmatmul.bf16.gmra.mxu0 %v232
  %v598 = vpop.f32.mrf.mxu0
  %v599 = vadd.f32 %v550, %v598
  %v600 = vpop.f32.mrf.mxu0
  %v601 = vadd.f32 %v552, %v600
  %602 = vmatmul.bf16.gmra.mxu0 %v236
  %v603 = vpop.f32.mrf.mxu0
  %v604 = vadd.f32 %v555, %v603
  %v605 = vpop.f32.mrf.mxu0
  %v606 = vadd.f32 %v557, %v605
  %607 = vmatmul.bf16.gmra.mxu0 %v240
  %v608 = vpop.f32.mrf.mxu0
  %v609 = vadd.f32 %v560, %v608
  %v610 = vpop.f32.mrf.mxu0
  %v611 = vadd.f32 %v562, %v610
  %612 = vdwg.mxu0
  %613 = vmatpush.bf16.msra.mxu0 %v433
  %614 = vmatpush.bf16.msra.mxu0 %v432
  %615 = vmatpush.bf16.msra.mxu0 %v431
  %616 = vmatpush.bf16.msra.mxu0 %v430
  %617 = vmatpush.bf16.msra.mxu0 %v429
  %618 = vmatpush.bf16.msra.mxu0 %v428
  %619 = vmatpush.bf16.msra.mxu0 %v427
  %620 = vmatpush.bf16.msra.mxu0 %v426
  %621 = vmatmul.bf16.gmra.mxu0 %v213
  %v622 = vpop.f32.mrf.mxu0
  %v623 = vadd.f32 %v574, %v622
  %v624 = vpop.f32.mrf.mxu0
  %v625 = vadd.f32 %v576, %v624
  %626 = vmatmul.bf16.gmra.mxu0 %v217
  %v627 = vpop.f32.mrf.mxu0
  %v628 = vadd.f32 %v579, %v627
  %v629 = vpop.f32.mrf.mxu0
  %v630 = vadd.f32 %v581, %v629
  %631 = vmatmul.bf16.gmra.mxu0 %v221
  %v632 = vpop.f32.mrf.mxu0
  %v633 = vadd.f32 %v584, %v632
  %v634 = vpop.f32.mrf.mxu0
  %v635 = vadd.f32 %v586, %v634
  %636 = vmatmul.bf16.gmra.mxu0 %v225
  %v637 = vpop.f32.mrf.mxu0
  %v638 = vadd.f32 %v589, %v637
  %v639 = vpop.f32.mrf.mxu0
  %v640 = vadd.f32 %v591, %v639
  %641 = vmatmul.bf16.gmra.mxu0 %v229
  %v642 = vpop.f32.mrf.mxu0
  %v643 = vadd.f32 %v594, %v642
  %v644 = vpop.f32.mrf.mxu0
  %v645 = vadd.f32 %v596, %v644
  %646 = vmatmul.bf16.gmra.mxu0 %v233
  %v647 = vpop.f32.mrf.mxu0
  %v648 = vadd.f32 %v599, %v647
  %v649 = vpop.f32.mrf.mxu0
  %v650 = vadd.f32 %v601, %v649
  %651 = vmatmul.bf16.gmra.mxu0 %v237
  %v652 = vpop.f32.mrf.mxu0
  %v653 = vadd.f32 %v604, %v652
  %v654 = vpop.f32.mrf.mxu0
  %v655 = vadd.f32 %v606, %v654
  %656 = vmatmul.bf16.gmra.mxu0 %v241
  %v657 = vpop.f32.mrf.mxu0
  %v658 = vadd.f32 %v609, %v657
  %v659 = vpop.f32.mrf.mxu0
  %v660 = vadd.f32 %v611, %v659
  %661 = vdwg.mxu0
  %v662 = vmax.f32 %v623, 0.0
  %v663 = vmax.f32 %v625, 0.0
  %v664 = vmax.f32 %v628, 0.0
  %v665 = vmax.f32 %v630, 0.0
  %v666 = vmax.f32 %v633, 0.0
  %v667 = vmax.f32 %v635, 0.0
  %v668 = vmax.f32 %v638, 0.0
  %v669 = vmax.f32 %v640, 0.0
  %v670 = vmax.f32 %v643, 0.0
  %v671 = vmax.f32 %v645, 0.0
  %v672 = vmax.f32 %v648, 0.0
  %v673 = vmax.f32 %v650, 0.0
  %v674 = vmax.f32 %v653, 0.0
  %v675 = vmax.f32 %v655, 0.0
  %v676 = vmax.f32 %v658, 0.0
  %v677 = vmax.f32 %v660, 0.0
  %v678 = vpack.c.bf16 %v662, %v662
  %v679 = vpack.c.bf16 %v663, %v663
  %v680 = vpack.c.bf16 %v664, %v664
  %v681 = vpack.c.bf16 %v665, %v665
  %v682 = vpack.c.bf16 %v666, %v666
  %v683 = vpack.c.bf16 %v667, %v667
  %v684 = vpack.c.bf16 %v668, %v668
  %v685 = vpack.c.bf16 %v669, %v669
  %v686 = vpack.c.bf16 %v670, %v670
  %v687 = vpack.c.bf16 %v671, %v671
  %v688 = vpack.c.bf16 %v672, %v672
  %v689 = vpack.c.bf16 %v673, %v673
  %v690 = vpack.c.bf16 %v674, %v674
  %v691 = vpack.c.bf16 %v675, %v675
  %v692 = vpack.c.bf16 %v676, %v676
  %v693 = vpack.c.bf16 %v677, %v677
  %vm694 = vcmask 519168
  %695 = vst.msk [vmem:[%s3] sm:$0xf] %vm694, %v678
  %696 = vst.msk [vmem:[%s3 + $0x4] sm:$0xf] %vm694, %v679
  %697 = vst.msk [vmem:[%s3 + $0x8] sm:$0xf] %vm694, %v680
  %698 = vst.msk [vmem:[%s3 + $0xc] sm:$0xf] %vm694, %v681
  %699 = vst.msk [vmem:[%s3 + $0x10] sm:$0xf] %vm694, %v682
  %700 = vst.msk [vmem:[%s3 + $0x14] sm:$0xf] %vm694, %v683
  %701 = vst.msk [vmem:[%s3 + $0x18] sm:$0xf] %vm694, %v684
  %702 = vst.msk [vmem:[%s3 + $0x1c] sm:$0xf] %vm694, %v685
  %703 = vst.msk [vmem:[%s3 + $0x20] sm:$0xf] %vm694, %v686
  %704 = vst.msk [vmem:[%s3 + $0x24] sm:$0xf] %vm694, %v687
  %705 = vst.msk [vmem:[%s3 + $0x28] sm:$0xf] %vm694, %v688
  %706 = vst.msk [vmem:[%s3 + $0x2c] sm:$0xf] %vm694, %v689
  %707 = vst.msk [vmem:[%s3 + $0x30] sm:$0xf] %vm694, %v690
  %708 = vst.msk [vmem:[%s3 + $0x34] sm:$0xf] %vm694, %v691
  %709 = vst.msk [vmem:[%s3 + $0x38] sm:$0xf] %vm694, %v692
  %710 = vst.msk [vmem:[%s3 + $0x3c] sm:$0xf] %vm694, %v693
  // Predicated region
  $region14: #{dqn_forward.5} parent=0 // pred_check
    _
  $region15: #{dqn_forward.5} parent=0 // pred_check_branch
    %712 = sbr.rel (0) target = $region17
  $region16: #{dqn_forward.5} parent=0 // pred_region
    _
  $region17: #{dqn_forward.5} parent=0 // pred_fallthru
    _
  // Predicated region
  $region18: #{dqn_forward.5} parent=0 // pred_check
    _
  $region19: #{dqn_forward.5} parent=0 // pred_check_branch
    %714 = sbr.rel (0) target = $region21
  $region20: #{dqn_forward.5} parent=0 // pred_region
    _
  $region21: #{dqn_forward.5} parent=0 // pred_fallthru
    _

// kernel: dqn_forward.6
$region0: #{dqn_forward.6}
  #allocation0 [shape = 'u32[]', space=smem, size = 0x4, offset = 0x4, fixed_abs, tag = 'smem constant byte address 0x4 - core index']
  #allocation1 [shape = 'u32[72,128]{1,0:T(1,128)}', space=vmem, size = 0x9000, scoped, tag = 'internal scratch']
  %s0 = inlined_call_operand.vmem [shape: bf16[72,576], index: 0, kind: input, shape index: {}]
  %s1 = inlined_call_operand.vmem [shape: bf16[576,64], index: 1, kind: input, shape index: {}]
  %s2 = inlined_call_operand.vmem [shape: f32[1,64], index: 2, kind: input, shape index: {}]
  %s3 = inlined_call_operand.vmem [shape: bf16[72,64], index: 3, kind: output, shape index: {}]
  %s4 = sld [smem:[#allocation0]]
  $region22: #{dqn_forward.6} parent=0
    _
  %s6 = ssub.s32 1, %s4
  %s7 = scalar_select 0, %s6, %s4
  // Predicated region
  $region2: #{dqn_forward.6} parent=0 // pred_check
    _
  $region3: #{dqn_forward.6} parent=0 // pred_check_branch
    %9 = sbr.rel (0) target = $region5
  $region4: #{dqn_forward.6} parent=0 // pred_region
    _
  $region5: #{dqn_forward.6} parent=0 // pred_fallthru
    _
  // Predicated region
  $region6: #{dqn_forward.6} parent=0 // pred_check
    _
  $region7: #{dqn_forward.6} parent=0 // pred_check_branch
    %11 = sbr.rel (0) target = $region9
  $region8: #{dqn_forward.6} parent=0 // pred_region
    _
  $region9: #{dqn_forward.6} parent=0 // pred_fallthru
    _
  // Predicated region
  $region10: #{dqn_forward.6} parent=0 // pred_check
    _
  $region11: #{dqn_forward.6} parent=0 // pred_check_branch
    %13 = sbr.rel (0) target = $region13
  $region12: #{dqn_forward.6} parent=0 // pred_region
    _
  $region13: #{dqn_forward.6} parent=0 // pred_fallthru
    _
  %v15 = vld [vmem:[%s0] sm:$0xff]
  %v16 = vld [vmem:[%s0 + $0x8] sm:$0xff]
  %v17 = vld [vmem:[%s0 + $0x10] sm:$0xf]
  %v18 = vld [vmem:[%s0 + $0x14] sm:$0xff]
  %v19 = vld [vmem:[%s0 + $0x1c] sm:$0xff]
  %v20 = vld [vmem:[%s0 + $0x24] sm:$0xf]
  %v21 = vld [vmem:[%s0 + $0x28] sm:$0xff]
  %v22 = vld [vmem:[%s0 + $0x30] sm:$0xff]
  %v23 = vld [vmem:[%s0 + $0x38] sm:$0xf]
  %v24 = vld [vmem:[%s0 + $0x3c] sm:$0xff]
  %v25 = vld [vmem:[%s0 + $0x44] sm:$0xff]
  %v26 = vld [vmem:[%s0 + $0x4c] sm:$0xf]
  %v27 = vld [vmem:[%s0 + $0x50] sm:$0xff]
  %v28 = vld [vmem:[%s0 + $0x58] sm:$0xff]
  %v29 = vld [vmem:[%s0 + $0x60] sm:$0xf]
  %v30 = vld [vmem:[%s0 + $0x64] sm:$0xff]
  %v31 = vld [vmem:[%s0 + $0x6c] sm:$0xff]
  %v32 = vld [vmem:[%s0 + $0x74] sm:$0xf]
  %v33 = vld [vmem:[%s0 + $0x78] sm:$0xff]
  %v34 = vld [vmem:[%s0 + $0x80] sm:$0xff]
  %v35 = vld [vmem:[%s0 + $0x88] sm:$0xf]
  %v36 = vld [vmem:[%s0 + $0x8c] sm:$0xff]
  %v37 = vld [vmem:[%s0 + $0x94] sm:$0xff]
  %v38 = vld [vmem:[%s0 + $0x9c] sm:$0xf]
  %v39 = vld [vmem:[%s0 + $0xa0] sm:$0xff]
  %v40 = vld [vmem:[%s0 + $0xa8] sm:$0xff]
  %v41 = vld [vmem:[%s0 + $0xb0] sm:$0xf]
  %v42 = vld [vmem:[%s1] sm:$0xf]
  %v43 = vld [vmem:[%s1 + $0x4] sm:$0xf]
  %v44 = vld [vmem:[%s1 + $0x8] sm:$0xf]
  %v45 = vld [vmem:[%s1 + $0xc] sm:$0xf]
  %v46 = vld [vmem:[%s1 + $0x10] sm:$0xf]
  %v47 = vld [vmem:[%s1 + $0x14] sm:$0xf]
  %v48 = vld [vmem:[%s1 + $0x18] sm:$0xf]
  %v49 = vld [vmem:[%s1 + $0x1c] sm:$0xf]
  %v50 = vld [vmem:[%s1 + $0x20] sm:$0xf]
  %v51 = vld [vmem:[%s1 + $0x24] sm:$0xf]
  %v52 = vld [vmem:[%s1 + $0x28] sm:$0xf]
  %v53 = vld [vmem:[%s1 + $0x2c] sm:$0xf]
  %v54 = vld [vmem:[%s1 + $0x30] sm:$0xf]
  %v55 = vld [vmem:[%s1 + $0x34] sm:$0xf]
  %v56 = vld [vmem:[%s1 + $0x38] sm:$0xf]
  %v57 = vld [vmem:[%s1 + $0x3c] sm:$0xf]
  %v58 = vld [vmem:[%s1 + $0x40] sm:$0xf]
  %v59 = vld [vmem:[%s1 + $0x44] sm:$0xf]
  %v60 = vld [vmem:[%s1 + $0x48] sm:$0xf]
  %v61 = vld [vmem:[%s1 + $0x4c] sm:$0xf]
  %v62 = vld [vmem:[%s1 + $0x50] sm:$0xf]
  %v63 = vld [vmem:[%s1 + $0x54] sm:$0xf]
  %v64 = vld [vmem:[%s1 + $0x58] sm:$0xf]
  %v65 = vld [vmem:[%s1 + $0x5c] sm:$0xf]
  %v66 = vld [vmem:[%s1 + $0x60] sm:$0xf]
  %v67 = vld [vmem:[%s1 + $0x64] sm:$0xf]
  %v68 = vld [vmem:[%s1 + $0x68] sm:$0xf]
  %v69 = vld [vmem:[%s1 + $0x6c] sm:$0xf]
  %v70 = vld [vmem:[%s1 + $0x70] sm:$0xf]
  %v71 = vld [vmem:[%s1 + $0x74] sm:$0xf]
  %v72 = vld [vmem:[%s1 + $0x78] sm:$0xf]
  %v73 = vld [vmem:[%s1 + $0x7c] sm:$0xf]
  %v74 = vld [vmem:[%s1 + $0x80] sm:$0xf]
  %v75 = vld [vmem:[%s1 + $0x84] sm:$0xf]
  %v76 = vld [vmem:[%s1 + $0x88] sm:$0xf]
  %v77 = vld [vmem:[%s1 + $0x8c] sm:$0xf]
  %v78 = vld [vmem:[%s1 + $0x90] sm:$0xf]
  %v79 = vld [vmem:[%s1 + $0x94] sm:$0xf]
  %v80 = vld [vmem:[%s1 + $0x98] sm:$0xf]
  %v81 = vld [vmem:[%s1 + $0x9c] sm:$0xf]
  %v82 = vld [vmem:[%s1 + $0xa0] sm:$0xf]
  %v83 = vld [vmem:[%s1 + $0xa4] sm:$0xf]
  %v84 = vld [vmem:[%s1 + $0xa8] sm:$0xf]
  %v85 = vld [vmem:[%s1 + $0xac] sm:$0xf]
  %v86 = vld [vmem:[%s1 + $0xb0] sm:$0xf]
  %v87 = vld [vmem:[%s1 + $0xb4] sm:$0xf]
  %v88 = vld [vmem:[%s1 + $0xb8] sm:$0xf]
  %v89 = vld [vmem:[%s1 + $0xbc] sm:$0xf]
  %v90 = vld [vmem:[%s1 + $0xc0] sm:$0xf]
  %v91 = vld [vmem:[%s1 + $0xc4] sm:$0xf]
  %v92 = vld [vmem:[%s1 + $0xc8] sm:$0xf]
  %v93 = vld [vmem:[%s1 + $0xcc] sm:$0xf]
  %v94 = vld [vmem:[%s1 + $0xd0] sm:$0xf]
  %v95 = vld [vmem:[%s1 + $0xd4] sm:$0xf]
  %v96 = vld [vmem:[%s1 + $0xd8] sm:$0xf]
  %v97 = vld [vmem:[%s1 + $0xdc] sm:$0xf]
  %v98 = vld [vmem:[%s1 + $0xe0] sm:$0xf]
  %v99 = vld [vmem:[%s1 + $0xe4] sm:$0xf]
  %v100 = vld [vmem:[%s1 + $0xe8] sm:$0xf]
  %v101 = vld [vmem:[%s1 + $0xec] sm:$0xf]
  %v102 = vld [vmem:[%s1 + $0xf0] sm:$0xf]
  %v103 = vld [vmem:[%s1 + $0xf4] sm:$0xf]
  %v104 = vld [vmem:[%s1 + $0xf8] sm:$0xf]
  %v105 = vld [vmem:[%s1 + $0xfc] sm:$0xf]
  %v106 = vld [vmem:[%s1 + $0x100] sm:$0xf]
  %v107 = vld [vmem:[%s1 + $0x104] sm:$0xf]
  %v108 = vld [vmem:[%s1 + $0x108] sm:$0xf]
  %v109 = vld [vmem:[%s1 + $0x10c] sm:$0xf]
  %v110 = vld [vmem:[%s1 + $0x110] sm:$0xf]
  %v111 = vld [vmem:[%s1 + $0x114] sm:$0xf]
  %v112 = vld [vmem:[%s1 + $0x118] sm:$0xf]
  %v113 = vld [vmem:[%s1 + $0x11c] sm:$0xf]
  %v114 = vld [vmem:[%s2] sm:$0x1]
  %v116 = vperm.slane %v114, 0
  %v145 = vunpack.c.l.b16 %v15
  %v146 = vunpack.c.h.b16 %v15
  %v147 = vunpack.c.l.b16 %v16
  %v148 = vunpack.c.h.b16 %v16
  %v149 = vunpack.c.l.b16 %v17
  %v150 = vunpack.c.l.b16 %v18
  %v151 = vunpack.c.h.b16 %v18
  %v152 = vunpack.c.l.b16 %v19
  %v153 = vunpack.c.h.b16 %v19
  %v154 = vunpack.c.l.b16 %v20
  %v155 = vunpack.c.l.b16 %v21
  %v156 = vunpack.c.h.b16 %v21
  %v157 = vunpack.c.l.b16 %v22
  %v158 = vunpack.c.h.b16 %v22
  %v159 = vunpack.c.l.b16 %v23
  %v160 = vunpack.c.l.b16 %v24
  %v161 = vunpack.c.h.b16 %v24
  %v162 = vunpack.c.l.b16 %v25
  %v163 = vunpack.c.h.b16 %v25
  %v164 = vunpack.c.l.b16 %v26
  %v165 = vunpack.c.l.b16 %v27
  %v166 = vunpack.c.h.b16 %v27
  %v167 = vunpack.c.l.b16 %v28
  %v168 = vunpack.c.h.b16 %v28
  %v169 = vunpack.c.l.b16 %v29
  %v170 = vunpack.c.l.b16 %v30
  %v171 = vunpack.c.h.b16 %v30
  %v172 = vunpack.c.l.b16 %v31
  %v173 = vunpack.c.h.b16 %v31
  %v174 = vunpack.c.l.b16 %v32
  %v175 = vunpack.c.l.b16 %v33
  %v176 = vunpack.c.h.b16 %v33
  %v177 = vunpack.c.l.b16 %v34
  %v178 = vunpack.c.h.b16 %v34
  %v179 = vunpack.c.l.b16 %v35
  %v180 = vunpack.c.l.b16 %v36
  %v181 = vunpack.c.h.b16 %v36
  %v182 = vunpack.c.l.b16 %v37
  %v183 = vunpack.c.h.b16 %v37
  %v184 = vunpack.c.l.b16 %v38
  %v185 = vunpack.c.l.b16 %v39
  %v186 = vunpack.c.h.b16 %v39
  %v187 = vunpack.c.l.b16 %v40
  %v188 = vunpack.c.h.b16 %v40
  %v189 = vunpack.c.l.b16 %v41
  %v190 = vpack.c.b16 %v150, %v145
  %v191 = vpack.c.b16 %v151, %v146
  %v192 = vpack.c.b16 %v152, %v147
  %v193 = vpack.c.b16 %v153, %v148
  %v194 = vpack.c.b16 %v154, %v149
  %v195 = vpack.c.b16 %v160, %v155
  %v196 = vpack.c.b16 %v161, %v156
  %v197 = vpack.c.b16 %v162, %v157
  %v198 = vpack.c.b16 %v163, %v158
  %v199 = vpack.c.b16 %v164, %v159
  %v200 = vpack.c.b16 %v170, %v165
  %v201 = vpack.c.b16 %v171, %v166
  %v202 = vpack.c.b16 %v172, %v167
  %v203 = vpack.c.b16 %v173, %v168
  %v204 = vpack.c.b16 %v174, %v169
  %v205 = vpack.c.b16 %v180, %v175
  %v206 = vpack.c.b16 %v181, %v176
  %v207 = vpack.c.b16 %v182, %v177
  %v208 = vpack.c.b16 %v183, %v178
  %v209 = vpack.c.b16 %v184, %v179
  %v210 = vpack.c.b16 %v185, %v185
  %v211 = vpack.c.b16 %v186, %v186
  %v212 = vpack.c.b16 %v187, %v187
  %v213 = vpack.c.b16 %v188, %v188
  %v214 = vpack.c.b16 %v189, %v189
  %v307 = vunpack.c.l.b16 %v42
  %v308 = vunpack.c.l.b16 %v43
  %v309 = vunpack.c.l.b16 %v44
  %v310 = vunpack.c.l.b16 %v45
  %v311 = vunpack.c.l.b16 %v46
  %v312 = vunpack.c.l.b16 %v47
  %v313 = vunpack.c.l.b16 %v48
  %v314 = vunpack.c.l.b16 %v49
  %v315 = vunpack.c.l.b16 %v50
  %v316 = vunpack.c.l.b16 %v51
  %v317 = vunpack.c.l.b16 %v52
  %v318 = vunpack.c.l.b16 %v53
  %v319 = vunpack.c.l.b16 %v54
  %v320 = vunpack.c.l.b16 %v55
  %v321 = vunpack.c.l.b16 %v56
  %v322 = vunpack.c.l.b16 %v57
  %v323 = vunpack.c.l.b16 %v58
  %v324 = vunpack.c.l.b16 %v59
  %v325 = vunpack.c.l.b16 %v60
  %v326 = vunpack.c.l.b16 %v61
  %v327 = vunpack.c.l.b16 %v62
  %v328 = vunpack.c.l.b16 %v63
  %v329 = vunpack.c.l.b16 %v64
  %v330 = vunpack.c.l.b16 %v65
  %v331 = vunpack.c.l.b16 %v66
  %v332 = vunpack.c.l.b16 %v67
  %v333 = vunpack.c.l.b16 %v68
  %v334 = vunpack.c.l.b16 %v69
  %v335 = vunpack.c.l.b16 %v70
  %v336 = vunpack.c.l.b16 %v71
  %v337 = vunpack.c.l.b16 %v72
  %v338 = vunpack.c.l.b16 %v73
  %v339 = vunpack.c.l.b16 %v74
  %v340 = vunpack.c.l.b16 %v75
  %v341 = vunpack.c.l.b16 %v76
  %v342 = vunpack.c.l.b16 %v77
  %v343 = vunpack.c.l.b16 %v78
  %v344 = vunpack.c.l.b16 %v79
  %v345 = vunpack.c.l.b16 %v80
  %v346 = vunpack.c.l.b16 %v81
  %v347 = vunpack.c.l.b16 %v82
  %v348 = vunpack.c.l.b16 %v83
  %v349 = vunpack.c.l.b16 %v84
  %v350 = vunpack.c.l.b16 %v85
  %v351 = vunpack.c.l.b16 %v86
  %v352 = vunpack.c.l.b16 %v87
  %v353 = vunpack.c.l.b16 %v88
  %v354 = vunpack.c.l.b16 %v89
  %v355 = vunpack.c.l.b16 %v90
  %v356 = vunpack.c.l.b16 %v91
  %v357 = vunpack.c.l.b16 %v92
  %v358 = vunpack.c.l.b16 %v93
  %v359 = vunpack.c.l.b16 %v94
  %v360 = vunpack.c.l.b16 %v95
  %v361 = vunpack.c.l.b16 %v96
  %v362 = vunpack.c.l.b16 %v97
  %v363 = vunpack.c.l.b16 %v98
  %v364 = vunpack.c.l.b16 %v99
  %v365 = vunpack.c.l.b16 %v100
  %v366 = vunpack.c.l.b16 %v101
  %v367 = vunpack.c.l.b16 %v102
  %v368 = vunpack.c.l.b16 %v103
  %v369 = vunpack.c.l.b16 %v104
  %v370 = vunpack.c.l.b16 %v105
  %v371 = vunpack.c.l.b16 %v106
  %v372 = vunpack.c.l.b16 %v107
  %v373 = vunpack.c.l.b16 %v108
  %v374 = vunpack.c.l.b16 %v109
  %v375 = vunpack.c.l.b16 %v110
  %v376 = vunpack.c.l.b16 %v111
  %v377 = vunpack.c.l.b16 %v112
  %v378 = vunpack.c.l.b16 %v113
  %v379 = vpack.c.b16 %v308, %v307
  %v380 = vpack.c.b16 %v310, %v309
  %v381 = vpack.c.b16 %v312, %v311
  %v382 = vpack.c.b16 %v314, %v313
  %v383 = vpack.c.b16 %v316, %v315
  %v384 = vpack.c.b16 %v318, %v317
  %v385 = vpack.c.b16 %v320, %v319
  %v386 = vpack.c.b16 %v322, %v321
  %v387 = vpack.c.b16 %v324, %v323
  %v388 = vpack.c.b16 %v326, %v325
  %v389 = vpack.c.b16 %v328, %v327
  %v390 = vpack.c.b16 %v330, %v329
  %v391 = vpack.c.b16 %v332, %v331
  %v392 = vpack.c.b16 %v334, %v333
  %v393 = vpack.c.b16 %v336, %v335
  %v394 = vpack.c.b16 %v338, %v337
  %v395 = vpack.c.b16 %v340, %v339
  %v396 = vpack.c.b16 %v342, %v341
  %v397 = vpack.c.b16 %v344, %v343
  %v398 = vpack.c.b16 %v346, %v345
  %v399 = vpack.c.b16 %v348, %v347
  %v400 = vpack.c.b16 %v350, %v349
  %v401 = vpack.c.b16 %v352, %v351
  %v402 = vpack.c.b16 %v354, %v353
  %v403 = vpack.c.b16 %v356, %v355
  %v404 = vpack.c.b16 %v358, %v357
  %v405 = vpack.c.b16 %v360, %v359
  %v406 = vpack.c.b16 %v362, %v361
  %v407 = vpack.c.b16 %v364, %v363
  %v408 = vpack.c.b16 %v366, %v365
  %v409 = vpack.c.b16 %v368, %v367
  %v410 = vpack.c.b16 %v370, %v369
  %v411 = vpack.c.b16 %v372, %v371
  %v412 = vpack.c.b16 %v374, %v373
  %v413 = vpack.c.b16 %v376, %v375
  %v414 = vpack.c.b16 %v378, %v377
  %vm451 = vcmask 523264
  %v453 = vsel %vm451, %v194, 0
  %v456 = vsel %vm451, %v199, 0
  %v459 = vsel %vm451, %v204, 0
  %v462 = vsel %vm451, %v209, 0
  %v465 = vsel %vm451, %v214, 0
  %467 = vmatpush.bf16.msra.mxu0 %v386
  %468 = vmatpush.bf16.msra.mxu0 %v385
  %469 = vmatpush.bf16.msra.mxu0 %v384
  %470 = vmatpush.bf16.msra.mxu0 %v383
  %471 = vmatpush.bf16.msra.mxu0 %v382
  %472 = vmatpush.bf16.msra.mxu0 %v381
  %473 = vmatpush.bf16.msra.mxu0 %v380
  %474 = vmatpush.bf16.msra.mxu0 %v379
  %475 = vmatmul.bf16.gmra.mxu0 %v190
  %v476 = vpop.f32.mrf.mxu0
  %v477 = vadd.f32 %v116, %v476
  %v478 = vpop.f32.mrf.mxu0
  %v479 = vadd.f32 %v116, %v478
  %480 = vmatmul.bf16.gmra.mxu0 %v195
  %v481 = vpop.f32.mrf.mxu0
  %v482 = vadd.f32 %v116, %v481
  %v483 = vpop.f32.mrf.mxu0
  %v484 = vadd.f32 %v116, %v483
  %485 = vmatmul.bf16.gmra.mxu0 %v200
  %v486 = vpop.f32.mrf.mxu0
  %v487 = vadd.f32 %v116, %v486
  %v488 = vpop.f32.mrf.mxu0
  %v489 = vadd.f32 %v116, %v488
  %490 = vmatmul.bf16.gmra.mxu0 %v205
  %v491 = vpop.f32.mrf.mxu0
  %v492 = vadd.f32 %v116, %v491
  %v493 = vpop.f32.mrf.mxu0
  %v494 = vadd.f32 %v116, %v493
  %495 = vmatmul.bf16.gmra.mxu0 %v210
  %v496 = vpop.f32.mrf.mxu0
  %v497 = vadd.f32 %v116, %v496
  %v498 = vpop.f32.mrf.mxu0
  %499 = vdwg.mxu0
  %500 = vmatpush.bf16.msra.mxu0 %v394
  %501 = vmatpush.bf16.msra.mxu0 %v393
  %502 = vmatpush.bf16.msra.mxu0 %v392
  %503 = vmatpush.bf16.msra.mxu0 %v391
  %504 = vmatpush.bf16.msra.mxu0 %v390
  %505 = vmatpush.bf16.msra.mxu0 %v389
  %506 = vmatpush.bf16.msra.mxu0 %v388
  %507 = vmatpush.bf16.msra.mxu0 %v387
  %508 = vmatmul.bf16.gmra.mxu0 %v191
  %v509 = vpop.f32.mrf.mxu0
  %v510 = vadd.f32 %v477, %v509
  %v511 = vpop.f32.mrf.mxu0
  %v512 = vadd.f32 %v479, %v511
  %513 = vmatmul.bf16.gmra.mxu0 %v196
  %v514 = vpop.f32.mrf.mxu0
  %v515 = vadd.f32 %v482, %v514
  %v516 = vpop.f32.mrf.mxu0
  %v517 = vadd.f32 %v484, %v516
  %518 = vmatmul.bf16.gmra.mxu0 %v201
  %v519 = vpop.f32.mrf.mxu0
  %v520 = vadd.f32 %v487, %v519
  %v521 = vpop.f32.mrf.mxu0
  %v522 = vadd.f32 %v489, %v521
  %523 = vmatmul.bf16.gmra.mxu0 %v206
  %v524 = vpop.f32.mrf.mxu0
  %v525 = vadd.f32 %v492, %v524
  %v526 = vpop.f32.mrf.mxu0
  %v527 = vadd.f32 %v494, %v526
  %528 = vmatmul.bf16.gmra.mxu0 %v211
  %v529 = vpop.f32.mrf.mxu0
  %v530 = vadd.f32 %v497, %v529
  %v531 = vpop.f32.mrf.mxu0
  %532 = vdwg.mxu0
  %533 = vmatpush.bf16.msra.mxu0 %v402
  %534 = vmatpush.bf16.msra.mxu0 %v401
  %535 = vmatpush.bf16.msra.mxu0 %v400
  %536 = vmatpush.bf16.msra.mxu0 %v399
  %537 = vmatpush.bf16.msra.mxu0 %v398
  %538 = vmatpush.bf16.msra.mxu0 %v397
  %539 = vmatpush.bf16.msra.mxu0 %v396
  %540 = vmatpush.bf16.msra.mxu0 %v395
  %541 = vmatmul.bf16.gmra.mxu0 %v192
  %v542 = vpop.f32.mrf.mxu0
  %v543 = vadd.f32 %v510, %v542
  %v544 = vpop.f32.mrf.mxu0
  %v545 = vadd.f32 %v512, %v544
  %546 = vmatmul.bf16.gmra.mxu0 %v197
  %v547 = vpop.f32.mrf.mxu0
  %v548 = vadd.f32 %v515, %v547
  %v549 = vpop.f32.mrf.mxu0
  %v550 = vadd.f32 %v517, %v549
  %551 = vmatmul.bf16.gmra.mxu0 %v202
  %v552 = vpop.f32.mrf.mxu0
  %v553 = vadd.f32 %v520, %v552
  %v554 = vpop.f32.mrf.mxu0
  %v555 = vadd.f32 %v522, %v554
  %556 = vmatmul.bf16.gmra.mxu0 %v207
  %v557 = vpop.f32.mrf.mxu0
  %v558 = vadd.f32 %v525, %v557
  %v559 = vpop.f32.mrf.mxu0
  %v560 = vadd.f32 %v527, %v559
  %561 = vmatmul.bf16.gmra.mxu0 %v212
  %v562 = vpop.f32.mrf.mxu0
  %v563 = vadd.f32 %v530, %v562
  %v564 = vpop.f32.mrf.mxu0
  %565 = vdwg.mxu0
  %566 = vmatpush.bf16.msra.mxu0 %v410
  %567 = vmatpush.bf16.msra.mxu0 %v409
  %568 = vmatpush.bf16.msra.mxu0 %v408
  %569 = vmatpush.bf16.msra.mxu0 %v407
  %570 = vmatpush.bf16.msra.mxu0 %v406
  %571 = vmatpush.bf16.msra.mxu0 %v405
  %572 = vmatpush.bf16.msra.mxu0 %v404
  %573 = vmatpush.bf16.msra.mxu0 %v403
  %574 = vmatmul.bf16.gmra.mxu0 %v193
  %v575 = vpop.f32.mrf.mxu0
  %v576 = vadd.f32 %v543, %v575
  %v577 = vpop.f32.mrf.mxu0
  %v578 = vadd.f32 %v545, %v577
  %579 = vmatmul.bf16.gmra.mxu0 %v198
  %v580 = vpop.f32.mrf.mxu0
  %v581 = vadd.f32 %v548, %v580
  %v582 = vpop.f32.mrf.mxu0
  %v583 = vadd.f32 %v550, %v582
  %584 = vmatmul.bf16.gmra.mxu0 %v203
  %v585 = vpop.f32.mrf.mxu0
  %v586 = vadd.f32 %v553, %v585
  %v587 = vpop.f32.mrf.mxu0
  %v588 = vadd.f32 %v555, %v587
  %589 = vmatmul.bf16.gmra.mxu0 %v208
  %v590 = vpop.f32.mrf.mxu0
  %v591 = vadd.f32 %v558, %v590
  %v592 = vpop.f32.mrf.mxu0
  %v593 = vadd.f32 %v560, %v592
  %594 = vmatmul.bf16.gmra.mxu0 %v213
  %v595 = vpop.f32.mrf.mxu0
  %v596 = vadd.f32 %v563, %v595
  %v597 = vpop.f32.mrf.mxu0
  %598 = vdwg.mxu0
  %599 = vmatpush.bf16.msra.mxu0 0
  %600 = vmatpush.bf16.msra.mxu0 0
  %601 = vmatpush.bf16.msra.mxu0 0
  %602 = vmatpush.bf16.msra.mxu0 0
  %603 = vmatpush.bf16.msra.mxu0 %v414
  %604 = vmatpush.bf16.msra.mxu0 %v413
  %605 = vmatpush.bf16.msra.mxu0 %v412
  %606 = vmatpush.bf16.msra.mxu0 %v411
  %607 = vmatmul.bf16.gmra.mxu0 %v453
  %v608 = vpop.f32.mrf.mxu0
  %v609 = vadd.f32 %v576, %v608
  %v610 = vpop.f32.mrf.mxu0
  %v611 = vadd.f32 %v578, %v610
  %612 = vmatmul.bf16.gmra.mxu0 %v456
  %v613 = vpop.f32.mrf.mxu0
  %v614 = vadd.f32 %v581, %v613
  %v615 = vpop.f32.mrf.mxu0
  %v616 = vadd.f32 %v583, %v615
  %617 = vmatmul.bf16.gmra.mxu0 %v459
  %v618 = vpop.f32.mrf.mxu0
  %v619 = vadd.f32 %v586, %v618
  %v620 = vpop.f32.mrf.mxu0
  %v621 = vadd.f32 %v588, %v620
  %622 = vmatmul.bf16.gmra.mxu0 %v462
  %v623 = vpop.f32.mrf.mxu0
  %v624 = vadd.f32 %v591, %v623
  %v625 = vpop.f32.mrf.mxu0
  %v626 = vadd.f32 %v593, %v625
  %627 = vmatmul.bf16.gmra.mxu0 %v465
  %v628 = vpop.f32.mrf.mxu0
  %v629 = vadd.f32 %v596, %v628
  %v630 = vpop.f32.mrf.mxu0
  %631 = vdwg.mxu0
  %v632 = vmax.f32 %v609, 0.0
  %v633 = vmax.f32 %v611, 0.0
  %v634 = vmax.f32 %v614, 0.0
  %v635 = vmax.f32 %v616, 0.0
  %v636 = vmax.f32 %v619, 0.0
  %v637 = vmax.f32 %v621, 0.0
  %v638 = vmax.f32 %v624, 0.0
  %v639 = vmax.f32 %v626, 0.0
  %v640 = vmax.f32 %v629, 0.0
  %v641 = vpack.c.bf16 %v632, %v632
  %v642 = vpack.c.bf16 %v633, %v633
  %v643 = vpack.c.bf16 %v634, %v634
  %v644 = vpack.c.bf16 %v635, %v635
  %v645 = vpack.c.bf16 %v636, %v636
  %v646 = vpack.c.bf16 %v637, %v637
  %v647 = vpack.c.bf16 %v638, %v638
  %v648 = vpack.c.bf16 %v639, %v639
  %v649 = vpack.c.bf16 %v640, %v640
  %vm650 = vcmask 519168
  %651 = vst.msk [vmem:[%s3] sm:$0xf] %vm650, %v641
  %652 = vst.msk [vmem:[%s3 + $0x4] sm:$0xf] %vm650, %v642
  %653 = vst.msk [vmem:[%s3 + $0x8] sm:$0xf] %vm650, %v643
  %654 = vst.msk [vmem:[%s3 + $0xc] sm:$0xf] %vm650, %v644
  %655 = vst.msk [vmem:[%s3 + $0x10] sm:$0xf] %vm650, %v645
  %656 = vst.msk [vmem:[%s3 + $0x14] sm:$0xf] %vm650, %v646
  %657 = vst.msk [vmem:[%s3 + $0x18] sm:$0xf] %vm650, %v647
  %658 = vst.msk [vmem:[%s3 + $0x1c] sm:$0xf] %vm650, %v648
  %659 = vst.msk [vmem:[%s3 + $0x20] sm:$0xf] %vm650, %v649
  // Predicated region
  $region14: #{dqn_forward.6} parent=0 // pred_check
    _
  $region15: #{dqn_forward.6} parent=0 // pred_check_branch
    %661 = sbr.rel (0) target = $region17
  $region16: #{dqn_forward.6} parent=0 // pred_region
    _
  $region17: #{dqn_forward.6} parent=0 // pred_fallthru
    _
  // Predicated region
  $region18: #{dqn_forward.6} parent=0 // pred_check
    _
  $region19: #{dqn_forward.6} parent=0 // pred_check_branch
    %663 = sbr.rel (0) target = $region21
  $region20: #{dqn_forward.6} parent=0 // pred_region
    _
  $region21: #{dqn_forward.6} parent=0 // pred_fallthru
    _

// kernel: dqn_forward.7
$region0: #{dqn_forward.7}
  #allocation0 [shape = 'u32[]', space=smem, size = 0x4, offset = 0x4, fixed_abs, tag = 'smem constant byte address 0x4 - core index']
  #allocation1 [shape = 'u32[72,128]{1,0:T(1,128)}', space=vmem, size = 0x9000, scoped, tag = 'internal scratch']
  %s0 = inlined_call_operand.vmem [shape: bf16[2,2304], index: 0, kind: input, shape index: {}]
  %s1 = inlined_call_operand.vmem [shape: bf16[2304,512], index: 1, kind: input, shape index: {}]
  %s2 = inlined_call_operand.vmem [shape: f32[1,512], index: 2, kind: input, shape index: {}]
  %s3 = inlined_call_operand.vmem [shape: bf16[512,4], index: 3, kind: input, shape index: {}]
  %s4 = inlined_call_operand.vmem [shape: f32[1,4], index: 4, kind: input, shape index: {}]
  %s5 = inlined_call_operand.hbm [shape: f32[2,4], index: 5, kind: output, shape index: {}]
  %s6 = sld [smem:[#allocation0]]
  $region30: #{dqn_forward.7} parent=0
    _
  %s8 = ssub.s32 1, %s6
  %s9 = scalar_select 0, %s8, %s6
  $region1: #{dqn_forward.7} parent=0
    #allocation2 [shape = 'u8[1024]{0}', space=vmem, size = 0x400, scoped, tag = 'output window, operand 0, single buffered']
    #allocation3 [shape = 's32[1]{0}', space=sflag, size = 0x4, scoped, tag = 'scoped memory for dqn_forward.7']
    %10 = vsyncpa [#allocation3], 0
    // Predicated region
    $region2: #{dqn_forward.7} parent=1 // pred_check
      _
    $region3: #{dqn_forward.7} parent=1 // pred_check_branch
      %12 = sbr.rel (0) target = $region5
    $region4: #{dqn_forward.7} parent=1 // pred_region
      _
    $region5: #{dqn_forward.7} parent=1 // pred_fallthru
      _
    // Predicated region
    $region6: #{dqn_forward.7} parent=1 // pred_check
      _
    $region7: #{dqn_forward.7} parent=1 // pred_check_branch
      %14 = sbr.rel (0) target = $region9
    $region8: #{dqn_forward.7} parent=1 // pred_region
      _
    $region9: #{dqn_forward.7} parent=1 // pred_fallthru
      _
    // Predicated region
    $region10: #{dqn_forward.7} parent=1 // pred_check
      _
    $region11: #{dqn_forward.7} parent=1 // pred_check_branch
      %16 = sbr.rel (0) target = $region13
    $region12: #{dqn_forward.7} parent=1 // pred_region
      _
    $region13: #{dqn_forward.7} parent=1 // pred_fallthru
      _
    // Predicated region
    $region14: #{dqn_forward.7} parent=1 // pred_check
      _
    $region15: #{dqn_forward.7} parent=1 // pred_check_branch
      %18 = sbr.rel (0) target = $region17
    $region16: #{dqn_forward.7} parent=1 // pred_region
      _
    $region17: #{dqn_forward.7} parent=1 // pred_fallthru
      _
    // Predicated region
    $region18: #{dqn_forward.7} parent=1 // pred_check
      _
    $region19: #{dqn_forward.7} parent=1 // pred_check_branch
      %20 = sbr.rel (0) target = $region21
    $region20: #{dqn_forward.7} parent=1 // pred_region
      _
    $region21: #{dqn_forward.7} parent=1 // pred_fallthru
      _
    %v21 = vld [vmem:[%s0] sm:$0xff]
    %v22 = vld [vmem:[%s0 + $0x8] sm:$0xff]
    %v23 = vld [vmem:[%s0 + $0x10] sm:$0x3]
    %v24 = vld [vmem:[%s1] sm:$0xff]
    %v25 = vld [vmem:[%s1 + $0x8] sm:$0xff]
    %v26 = vld [vmem:[%s1 + $0x10] sm:$0xff]
    %v27 = vld [vmem:[%s1 + $0x18] sm:$0xff]
    %v28 = vld [vmem:[%s1 + $0x20] sm:$0xff]
    %v29 = vld [vmem:[%s1 + $0x28] sm:$0xff]
    %v30 = vld [vmem:[%s1 + $0x30] sm:$0xff]
    %v31 = vld [vmem:[%s1 + $0x38] sm:$0xff]
    %v32 = vld [vmem:[%s1 + $0x40] sm:$0xff]
    %v33 = vld [vmem:[%s1 + $0x48] sm:$0xff]
    %v34 = vld [vmem:[%s1 + $0x50] sm:$0xff]
    %v35 = vld [vmem:[%s1 + $0x58] sm:$0xff]
    %v36 = vld [vmem:[%s1 + $0x60] sm:$0xff]
    %v37 = vld [vmem:[%s1 + $0x68] sm:$0xff]
    %v38 = vld [vmem:[%s1 + $0x70] sm:$0xff]
    %v39 = vld [vmem:[%s1 + $0x78] sm:$0xff]
    %v40 = vld [vmem:[%s1 + $0x80] sm:$0xff]
    %v41 = vld [vmem:[%s1 + $0x88] sm:$0xff]
    %v42 = vld [vmem:[%s1 + $0x90] sm:$0xff]
    %v43 = vld [vmem:[%s1 + $0x98] sm:$0xff]
    %v44 = vld [vmem:[%s1 + $0xa0] sm:$0xff]
    %v45 = vld [vmem:[%s1 + $0xa8] sm:$0xff]
    %v46 = vld [vmem:[%s1 + $0xb0] sm:$0xff]
    %v47 = vld [vmem:[%s1 + $0xb8] sm:$0xff]
    %v48 = vld [vmem:[%s1 + $0xc0] sm:$0xff]
    %v49 = vld [vmem:[%s1 + $0xc8] sm:$0xff]
    %v50 = vld [vmem:[%s1 + $0xd0] sm:$0xff]
    %v51 = vld [vmem:[%s1 + $0xd8] sm:$0xff]
    %v52 = vld [vmem:[%s1 + $0xe0] sm:$0xff]
    %v53 = vld [vmem:[%s1 + $0xe8] sm:$0xff]
    %v54 = vld [vmem:[%s1 + $0xf0] sm:$0xff]
    %v55 = vld [vmem:[%s1 + $0xf8] sm:$0xff]
    %v56 = vld [vmem:[%s1 + $0x100] sm:$0xff]
    %v57 = vld [vmem:[%s1 + $0x108] sm:$0xff]
    %v58 = vld [vmem:[%s1 + $0x110] sm:$0xff]
    %v59 = vld [vmem:[%s1 + $0x118] sm:$0xff]
    %v60 = vld [vmem:[%s1 + $0x120] sm:$0xff]
    %v61 = vld [vmem:[%s1 + $0x128] sm:$0xff]
    %v62 = vld [vmem:[%s1 + $0x130] sm:$0xff]
    %v63 = vld [vmem:[%s1 + $0x138] sm:$0xff]
    %v64 = vld [vmem:[%s1 + $0x140] sm:$0xff]
    %v65 = vld [vmem:[%s1 + $0x148] sm:$0xff]
    %v66 = vld [vmem:[%s1 + $0x150] sm:$0xff]
    %v67 = vld [vmem:[%s1 + $0x158] sm:$0xff]
    %v68 = vld [vmem:[%s1 + $0x160] sm:$0xff]
    %v69 = vld [vmem:[%s1 + $0x168] sm:$0xff]
    %v70 = vld [vmem:[%s1 + $0x170] sm:$0xff]
    %v71 = vld [vmem:[%s1 + $0x178] sm:$0xff]
    %v72 = vld [vmem:[%s1 + $0x180] sm:$0xff]
    %v73 = vld [vmem:[%s1 + $0x188] sm:$0xff]
    %v74 = vld [vmem:[%s1 + $0x190] sm:$0xff]
    %v75 = vld [vmem:[%s1 + $0x198] sm:$0xff]
    %v76 = vld [vmem:[%s1 + $0x1a0] sm:$0xff]
    %v77 = vld [vmem:[%s1 + $0x1a8] sm:$0xff]
    %v78 = vld [vmem:[%s1 + $0x1b0] sm:$0xff]
    %v79 = vld [vmem:[%s1 + $0x1b8] sm:$0xff]
    %v80 = vld [vmem:[%s1 + $0x1c0] sm:$0xff]
    %v81 = vld [vmem:[%s1 + $0x1c8] sm:$0xff]
    %v82 = vld [vmem:[%s1 + $0x1d0] sm:$0xff]
    %v83 = vld [vmem:[%s1 + $0x1d8] sm:$0xff]
    %v84 = vld [vmem:[%s1 + $0x1e0] sm:$0xff]
    %v85 = vld [vmem:[%s1 + $0x1e8] sm:$0xff]
    %v86 = vld [vmem:[%s1 + $0x1f0] sm:$0xff]
    %v87 = vld [vmem:[%s1 + $0x1f8] sm:$0xff]
    %v88 = vld [vmem:[%s1 + $0x200] sm:$0xff]
    %v89 = vld [vmem:[%s1 + $0x208] sm:$0xff]
    %v90 = vld [vmem:[%s1 + $0x210] sm:$0xff]
    %v91 = vld [vmem:[%s1 + $0x218] sm:$0xff]
    %v92 = vld [vmem:[%s1 + $0x220] sm:$0xff]
    %v93 = vld [vmem:[%s1 + $0x228] sm:$0xff]
    %v94 = vld [vmem:[%s1 + $0x230] sm:$0xff]
    %v95 = vld [vmem:[%s1 + $0x238] sm:$0xff]
    %v96 = vld [vmem:[%s1 + $0x240] sm:$0xff]
    %v97 = vld [vmem:[%s1 + $0x248] sm:$0xff]
    %v98 = vld [vmem:[%s1 + $0x250] sm:$0xff]
    %v99 = vld [vmem:[%s1 + $0x258] sm:$0xff]
    %v100 = vld [vmem:[%s1 + $0x260] sm:$0xff]
    %v101 = vld [vmem:[%s1 + $0x268] sm:$0xff]
    %v102 = vld [vmem:[%s1 + $0x270] sm:$0xff]
    %v103 = vld [vmem:[%s1 + $0x278] sm:$0xff]
    %v104 = vld [vmem:[%s1 + $0x280] sm:$0xff]
    %v105 = vld [vmem:[%s1 + $0x288] sm:$0xff]
    %v106 = vld [vmem:[%s1 + $0x290] sm:$0xff]
    %v107 = vld [vmem:[%s1 + $0x298] sm:$0xff]
    %v108 = vld [vmem:[%s1 + $0x2a0] sm:$0xff]
    %v109 = vld [vmem:[%s1 + $0x2a8] sm:$0xff]
    %v110 = vld [vmem:[%s1 + $0x2b0] sm:$0xff]
    %v111 = vld [vmem:[%s1 + $0x2b8] sm:$0xff]
    %v112 = vld [vmem:[%s1 + $0x2c0] sm:$0xff]
    %v113 = vld [vmem:[%s1 + $0x2c8] sm:$0xff]
    %v114 = vld [vmem:[%s1 + $0x2d0] sm:$0xff]
    %v115 = vld [vmem:[%s1 + $0x2d8] sm:$0xff]
    %v116 = vld [vmem:[%s1 + $0x2e0] sm:$0xff]
    %v117 = vld [vmem:[%s1 + $0x2e8] sm:$0xff]
    %v118 = vld [vmem:[%s1 + $0x2f0] sm:$0xff]
    %v119 = vld [vmem:[%s1 + $0x2f8] sm:$0xff]
    %v120 = vld [vmem:[%s1 + $0x300] sm:$0xff]
    %v121 = vld [vmem:[%s1 + $0x308] sm:$0xff]
    %v122 = vld [vmem:[%s1 + $0x310] sm:$0xff]
    %v123 = vld [vmem:[%s1 + $0x318] sm:$0xff]
    %v124 = vld [vmem:[%s1 + $0x320] sm:$0xff]
    %v125 = vld [vmem:[%s1 + $0x328] sm:$0xff]
    %v126 = vld [vmem:[%s1 + $0x330] sm:$0xff]
    %v127 = vld [vmem:[%s1 + $0x338] sm:$0xff]
    %v128 = vld [vmem:[%s1 + $0x340] sm:$0xff]
    %v129 = vld [vmem:[%s1 + $0x348] sm:$0xff]
    %v130 = vld [vmem:[%s1 + $0x350] sm:$0xff]
    %v131 = vld [vmem:[%s1 + $0x358] sm:$0xff]
    %v132 = vld [vmem:[%s1 + $0x360] sm:$0xff]
    %v133 = vld [vmem:[%s1 + $0x368] sm:$0xff]
    %v134 = vld [vmem:[%s1 + $0x370] sm:$0xff]
    %v135 = vld [vmem:[%s1 + $0x378] sm:$0xff]
    %v136 = vld [vmem:[%s1 + $0x380] sm:$0xff]
    %v137 = vld [vmem:[%s1 + $0x388] sm:$0xff]
    %v138 = vld [vmem:[%s1 + $0x390] sm:$0xff]
    %v139 = vld [vmem:[%s1 + $0x398] sm:$0xff]
    %v140 = vld [vmem:[%s1 + $0x3a0] sm:$0xff]
    %v141 = vld [vmem:[%s1 + $0x3a8] sm:$0xff]
    %v142 = vld [vmem:[%s1 + $0x3b0] sm:$0xff]
    %v143 = vld [vmem:[%s1 + $0x3b8] sm:$0xff]
    %v144 = vld [vmem:[%s1 + $0x3c0] sm:$0xff]
    %v145 = vld [vmem:[%s1 + $0x3c8] sm:$0xff]
    %v146 = vld [vmem:[%s1 + $0x3d0] sm:$0xff]
    %v147 = vld [vmem:[%s1 + $0x3d8] sm:$0xff]
    %v148 = vld [vmem:[%s1 + $0x3e0] sm:$0xff]
    %v149 = vld [vmem:[%s1 + $0x3e8] sm:$0xff]
    %v150 = vld [vmem:[%s1 + $0x3f0] sm:$0xff]
    %v151 = vld [vmem:[%s1 + $0x3f8] sm:$0xff]
    %v152 = vld [vmem:[%s1 + $0x400] sm:$0xff]
    %v153 = vld [vmem:[%s1 + $0x408] sm:$0xff]
    %v154 = vld [vmem:[%s1 + $0x410] sm:$0xff]
    %v155 = vld [vmem:[%s1 + $0x418] sm:$0xff]
    %v156 = vld [vmem:[%s1 + $0x420] sm:$0xff]
    %v157 = vld [vmem:[%s1 + $0x428] sm:$0xff]
    %v158 = vld [vmem:[%s1 + $0x430] sm:$0xff]
    %v159 = vld [vmem:[%s1 + $0x438] sm:$0xff]
    %v160 = vld [vmem:[%s1 + $0x440] sm:$0xff]
    %v161 = vld [vmem:[%s1 + $0x448] sm:$0xff]
    %v162 = vld [vmem:[%s1 + $0x450] sm:$0xff]
    %v163 = vld [vmem:[%s1 + $0x458] sm:$0xff]
    %v164 = vld [vmem:[%s1 + $0x460] sm:$0xff]
    %v165 = vld [vmem:[%s1 + $0x468] sm:$0xff]
    %v166 = vld [vmem:[%s1 + $0x470] sm:$0xff]
    %v167 = vld [vmem:[%s1 + $0x478] sm:$0xff]
    %v168 = vld [vmem:[%s1 + $0x480] sm:$0xff]
    %v169 = vld [vmem:[%s1 + $0x488] sm:$0xff]
    %v170 = vld [vmem:[%s1 + $0x490] sm:$0xff]
    %v171 = vld [vmem:[%s1 + $0x498] sm:$0xff]
    %v172 = vld [vmem:[%s1 + $0x4a0] sm:$0xff]
    %v173 = vld [vmem:[%s1 + $0x4a8] sm:$0xff]
    %v174 = vld [vmem:[%s1 + $0x4b0] sm:$0xff]
    %v175 = vld [vmem:[%s1 + $0x4b8] sm:$0xff]
    %v176 = vld [vmem:[%s1 + $0x4c0] sm:$0xff]
    %v177 = vld [vmem:[%s1 + $0x4c8] sm:$0xff]
    %v178 = vld [vmem:[%s1 + $0x4d0] sm:$0xff]
    %v179 = vld [vmem:[%s1 + $0x4d8] sm:$0xff]
    %v180 = vld [vmem:[%s1 + $0x4e0] sm:$0xff]
    %v181 = vld [vmem:[%s1 + $0x4e8] sm:$0xff]
    %v182 = vld [vmem:[%s1 + $0x4f0] sm:$0xff]
    %v183 = vld [vmem:[%s1 + $0x4f8] sm:$0xff]
    %v184 = vld [vmem:[%s1 + $0x500] sm:$0xff]
    %v185 = vld [vmem:[%s1 + $0x508] sm:$0xff]
    %v186 = vld [vmem:[%s1 + $0x510] sm:$0xff]
    %v187 = vld [vmem:[%s1 + $0x518] sm:$0xff]
    %v188 = vld [vmem:[%s1 + $0x520] sm:$0xff]
    %v189 = vld [vmem:[%s1 + $0x528] sm:$0xff]
    %v190 = vld [vmem:[%s1 + $0x530] sm:$0xff]
    %v191 = vld [vmem:[%s1 + $0x538] sm:$0xff]
    %v192 = vld [vmem:[%s1 + $0x540] sm:$0xff]
    %v193 = vld [vmem:[%s1 + $0x548] sm:$0xff]
    %v194 = vld [vmem:[%s1 + $0x550] sm:$0xff]
    %v195 = vld [vmem:[%s1 + $0x558] sm:$0xff]
    %v196 = vld [vmem:[%s1 + $0x560] sm:$0xff]
    %v197 = vld [vmem:[%s1 + $0x568] sm:$0xff]
    %v198 = vld [vmem:[%s1 + $0x570] sm:$0xff]
    %v199 = vld [vmem:[%s1 + $0x578] sm:$0xff]
    %v200 = vld [vmem:[%s1 + $0x580] sm:$0xff]
    %v201 = vld [vmem:[%s1 + $0x588] sm:$0xff]
    %v202 = vld [vmem:[%s1 + $0x590] sm:$0xff]
    %v203 = vld [vmem:[%s1 + $0x598] sm:$0xff]
    %v204 = vld [vmem:[%s1 + $0x5a0] sm:$0xff]
    %v205 = vld [vmem:[%s1 + $0x5a8] sm:$0xff]
    %v206 = vld [vmem:[%s1 + $0x5b0] sm:$0xff]
    %v207 = vld [vmem:[%s1 + $0x5b8] sm:$0xff]
    %v208 = vld [vmem:[%s1 + $0x5c0] sm:$0xff]
    %v209 = vld [vmem:[%s1 + $0x5c8] sm:$0xff]
    %v210 = vld [vmem:[%s1 + $0x5d0] sm:$0xff]
    %v211 = vld [vmem:[%s1 + $0x5d8] sm:$0xff]
    %v212 = vld [vmem:[%s1 + $0x5e0] sm:$0xff]
    %v213 = vld [vmem:[%s1 + $0x5e8] sm:$0xff]
    %v214 = vld [vmem:[%s1 + $0x5f0] sm:$0xff]
    %v215 = vld [vmem:[%s1 + $0x5f8] sm:$0xff]
    %v216 = vld [vmem:[%s1 + $0x600] sm:$0xff]
    %v217 = vld [vmem:[%s1 + $0x608] sm:$0xff]
    %v218 = vld [vmem:[%s1 + $0x610] sm:$0xff]
    %v219 = vld [vmem:[%s1 + $0x618] sm:$0xff]
    %v220 = vld [vmem:[%s1 + $0x620] sm:$0xff]
    %v221 = vld [vmem:[%s1 + $0x628] sm:$0xff]
    %v222 = vld [vmem:[%s1 + $0x630] sm:$0xff]
    %v223 = vld [vmem:[%s1 + $0x638] sm:$0xff]
    %v224 = vld [vmem:[%s1 + $0x640] sm:$0xff]
    %v225 = vld [vmem:[%s1 + $0x648] sm:$0xff]
    %v226 = vld [vmem:[%s1 + $0x650] sm:$0xff]
    %v227 = vld [vmem:[%s1 + $0x658] sm:$0xff]
    %v228 = vld [vmem:[%s1 + $0x660] sm:$0xff]
    %v229 = vld [vmem:[%s1 + $0x668] sm:$0xff]
    %v230 = vld [vmem:[%s1 + $0x670] sm:$0xff]
    %v231 = vld [vmem:[%s1 + $0x678] sm:$0xff]
    %v232 = vld [vmem:[%s1 + $0x680] sm:$0xff]
    %v233 = vld [vmem:[%s1 + $0x688] sm:$0xff]
    %v234 = vld [vmem:[%s1 + $0x690] sm:$0xff]
    %v235 = vld [vmem:[%s1 + $0x698] sm:$0xff]
    %v236 = vld [vmem:[%s1 + $0x6a0] sm:$0xff]
    %v237 = vld [vmem:[%s1 + $0x6a8] sm:$0xff]
    %v238 = vld [vmem:[%s1 + $0x6b0] sm:$0xff]
    %v239 = vld [vmem:[%s1 + $0x6b8] sm:$0xff]
    %v240 = vld [vmem:[%s1 + $0x6c0] sm:$0xff]
    %v241 = vld [vmem:[%s1 + $0x6c8] sm:$0xff]
    %v242 = vld [vmem:[%s1 + $0x6d0] sm:$0xff]
    %v243 = vld [vmem:[%s1 + $0x6d8] sm:$0xff]
    %v244 = vld [vmem:[%s1 + $0x6e0] sm:$0xff]
    %v245 = vld [vmem:[%s1 + $0x6e8] sm:$0xff]
    %v246 = vld [vmem:[%s1 + $0x6f0] sm:$0xff]
    %v247 = vld [vmem:[%s1 + $0x6f8] sm:$0xff]
    %v248 = vld [vmem:[%s1 + $0x700] sm:$0xff]
    %v249 = vld [vmem:[%s1 + $0x708] sm:$0xff]
    %v250 = vld [vmem:[%s1 + $0x710] sm:$0xff]
    %v251 = vld [vmem:[%s1 + $0x718] sm:$0xff]
    %v252 = vld [vmem:[%s1 + $0x720] sm:$0xff]
    %v253 = vld [vmem:[%s1 + $0x728] sm:$0xff]
    %v254 = vld [vmem:[%s1 + $0x730] sm:$0xff]
    %v255 = vld [vmem:[%s1 + $0x738] sm:$0xff]
    %v256 = vld [vmem:[%s1 + $0x740] sm:$0xff]
    %v257 = vld [vmem:[%s1 + $0x748] sm:$0xff]
    %v258 = vld [vmem:[%s1 + $0x750] sm:$0xff]
    %v259 = vld [vmem:[%s1 + $0x758] sm:$0xff]
    %v260 = vld [vmem:[%s1 + $0x760] sm:$0xff]
    %v261 = vld [vmem:[%s1 + $0x768] sm:$0xff]
    %v262 = vld [vmem:[%s1 + $0x770] sm:$0xff]
    %v263 = vld [vmem:[%s1 + $0x778] sm:$0xff]
    %v264 = vld [vmem:[%s1 + $0x780] sm:$0xff]
    %v265 = vld [vmem:[%s1 + $0x788] sm:$0xff]
    %v266 = vld [vmem:[%s1 + $0x790] sm:$0xff]
    %v267 = vld [vmem:[%s1 + $0x798] sm:$0xff]
    %v268 = vld [vmem:[%s1 + $0x7a0] sm:$0xff]
    %v269 = vld [vmem:[%s1 + $0x7a8] sm:$0xff]
    %v270 = vld [vmem:[%s1 + $0x7b0] sm:$0xff]
    %v271 = vld [vmem:[%s1 + $0x7b8] sm:$0xff]
    %v272 = vld [vmem:[%s1 + $0x7c0] sm:$0xff]
    %v273 = vld [vmem:[%s1 + $0x7c8] sm:$0xff]
    %v274 = vld [vmem:[%s1 + $0x7d0] sm:$0xff]
    %v275 = vld [vmem:[%s1 + $0x7d8] sm:$0xff]
    %v276 = vld [vmem:[%s1 + $0x7e0] sm:$0xff]
    %v277 = vld [vmem:[%s1 + $0x7e8] sm:$0xff]
    %v278 = vld [vmem:[%s1 + $0x7f0] sm:$0xff]
    %v279 = vld [vmem:[%s1 + $0x7f8] sm:$0xff]
    %v280 = vld [vmem:[%s1 + $0x800] sm:$0xff]
    %v281 = vld [vmem:[%s1 + $0x808] sm:$0xff]
    %v282 = vld [vmem:[%s1 + $0x810] sm:$0xff]
    %v283 = vld [vmem:[%s1 + $0x818] sm:$0xff]
    %v284 = vld [vmem:[%s1 + $0x820] sm:$0xff]
    %v285 = vld [vmem:[%s1 + $0x828] sm:$0xff]
    %v286 = vld [vmem:[%s1 + $0x830] sm:$0xff]
    %v287 = vld [vmem:[%s1 + $0x838] sm:$0xff]
    %v288 = vld [vmem:[%s1 + $0x840] sm:$0xff]
    %v289 = vld [vmem:[%s1 + $0x848] sm:$0xff]
    %v290 = vld [vmem:[%s1 + $0x850] sm:$0xff]
    %v291 = vld [vmem:[%s1 + $0x858] sm:$0xff]
    %v292 = vld [vmem:[%s1 + $0x860] sm:$0xff]
    %v293 = vld [vmem:[%s1 + $0x868] sm:$0xff]
    %v294 = vld [vmem:[%s1 + $0x870] sm:$0xff]
    %v295 = vld [vmem:[%s1 + $0x878] sm:$0xff]
    %v296 = vld [vmem:[%s1 + $0x880] sm:$0xff]
    %v297 = vld [vmem:[%s1 + $0x888] sm:$0xff]
    %v298 = vld [vmem:[%s1 + $0x890] sm:$0xff]
    %v299 = vld [vmem:[%s1 + $0x898] sm:$0xff]
    %v300 = vld [vmem:[%s1 + $0x8a0] sm:$0xff]
    %v301 = vld [vmem:[%s1 + $0x8a8] sm:$0xff]
    %v302 = vld [vmem:[%s1 + $0x8b0] sm:$0xff]
    %v303 = vld [vmem:[%s1 + $0x8b8] sm:$0xff]
    %v304 = vld [vmem:[%s1 + $0x8c0] sm:$0xff]
    %v305 = vld [vmem:[%s1 + $0x8c8] sm:$0xff]
    %v306 = vld [vmem:[%s1 + $0x8d0] sm:$0xff]
    %v307 = vld [vmem:[%s1 + $0x8d8] sm:$0xff]
    %v308 = vld [vmem:[%s1 + $0x8e0] sm:$0xff]
    %v309 = vld [vmem:[%s1 + $0x8e8] sm:$0xff]
    %v310 = vld [vmem:[%s1 + $0x8f0] sm:$0xff]
    %v311 = vld [vmem:[%s1 + $0x8f8] sm:$0xff]
    %v312 = vld [vmem:[%s1 + $0x900] sm:$0xff]
    %v313 = vld [vmem:[%s1 + $0x908] sm:$0xff]
    %v314 = vld [vmem:[%s1 + $0x910] sm:$0xff]
    %v315 = vld [vmem:[%s1 + $0x918] sm:$0xff]
    %v316 = vld [vmem:[%s1 + $0x920] sm:$0xff]
    %v317 = vld [vmem:[%s1 + $0x928] sm:$0xff]
    %v318 = vld [vmem:[%s1 + $0x930] sm:$0xff]
    %v319 = vld [vmem:[%s1 + $0x938] sm:$0xff]
    %v320 = vld [vmem:[%s1 + $0x940] sm:$0xff]
    %v321 = vld [vmem:[%s1 + $0x948] sm:$0xff]
    %v322 = vld [vmem:[%s1 + $0x950] sm:$0xff]
    %v323 = vld [vmem:[%s1 + $0x958] sm:$0xff]
    %v324 = vld [vmem:[%s1 + $0x960] sm:$0xff]
    %v325 = vld [vmem:[%s1 + $0x968] sm:$0xff]
    %v326 = vld [vmem:[%s1 + $0x970] sm:$0xff]
    %v327 = vld [vmem:[%s1 + $0x978] sm:$0xff]
    %v328 = vld [vmem:[%s1 + $0x980] sm:$0xff]
    %v329 = vld [vmem:[%s1 + $0x988] sm:$0xff]
    %v330 = vld [vmem:[%s1 + $0x990] sm:$0xff]
    %v331 = vld [vmem:[%s1 + $0x998] sm:$0xff]
    %v332 = vld [vmem:[%s1 + $0x9a0] sm:$0xff]
    %v333 = vld [vmem:[%s1 + $0x9a8] sm:$0xff]
    %v334 = vld [vmem:[%s1 + $0x9b0] sm:$0xff]
    %v335 = vld [vmem:[%s1 + $0x9b8] sm:$0xff]
    %v336 = vld [vmem:[%s1 + $0x9c0] sm:$0xff]
    %v337 = vld [vmem:[%s1 + $0x9c8] sm:$0xff]
    %v338 = vld [vmem:[%s1 + $0x9d0] sm:$0xff]
    %v339 = vld [vmem:[%s1 + $0x9d8] sm:$0xff]
    %v340 = vld [vmem:[%s1 + $0x9e0] sm:$0xff]
    %v341 = vld [vmem:[%s1 + $0x9e8] sm:$0xff]
    %v342 = vld [vmem:[%s1 + $0x9f0] sm:$0xff]
    %v343 = vld [vmem:[%s1 + $0x9f8] sm:$0xff]
    %v344 = vld [vmem:[%s1 + $0xa00] sm:$0xff]
    %v345 = vld [vmem:[%s1 + $0xa08] sm:$0xff]
    %v346 = vld [vmem:[%s1 + $0xa10] sm:$0xff]
    %v347 = vld [vmem:[%s1 + $0xa18] sm:$0xff]
    %v348 = vld [vmem:[%s1 + $0xa20] sm:$0xff]
    %v349 = vld [vmem:[%s1 + $0xa28] sm:$0xff]
    %v350 = vld [vmem:[%s1 + $0xa30] sm:$0xff]
    %v351 = vld [vmem:[%s1 + $0xa38] sm:$0xff]
    %v352 = vld [vmem:[%s1 + $0xa40] sm:$0xff]
    %v353 = vld [vmem:[%s1 + $0xa48] sm:$0xff]
    %v354 = vld [vmem:[%s1 + $0xa50] sm:$0xff]
    %v355 = vld [vmem:[%s1 + $0xa58] sm:$0xff]
    %v356 = vld [vmem:[%s1 + $0xa60] sm:$0xff]
    %v357 = vld [vmem:[%s1 + $0xa68] sm:$0xff]
    %v358 = vld [vmem:[%s1 + $0xa70] sm:$0xff]
    %v359 = vld [vmem:[%s1 + $0xa78] sm:$0xff]
    %v360 = vld [vmem:[%s1 + $0xa80] sm:$0xff]
    %v361 = vld [vmem:[%s1 + $0xa88] sm:$0xff]
    %v362 = vld [vmem:[%s1 + $0xa90] sm:$0xff]
    %v363 = vld [vmem:[%s1 + $0xa98] sm:$0xff]
    %v364 = vld [vmem:[%s1 + $0xaa0] sm:$0xff]
    %v365 = vld [vmem:[%s1 + $0xaa8] sm:$0xff]
    %v366 = vld [vmem:[%s1 + $0xab0] sm:$0xff]
    %v367 = vld [vmem:[%s1 + $0xab8] sm:$0xff]
    %v368 = vld [vmem:[%s1 + $0xac0] sm:$0xff]
    %v369 = vld [vmem:[%s1 + $0xac8] sm:$0xff]
    %v370 = vld [vmem:[%s1 + $0xad0] sm:$0xff]
    %v371 = vld [vmem:[%s1 + $0xad8] sm:$0xff]
    %v372 = vld [vmem:[%s1 + $0xae0] sm:$0xff]
    %v373 = vld [vmem:[%s1 + $0xae8] sm:$0xff]
    %v374 = vld [vmem:[%s1 + $0xaf0] sm:$0xff]
    %v375 = vld [vmem:[%s1 + $0xaf8] sm:$0xff]
    %v376 = vld [vmem:[%s1 + $0xb00] sm:$0xff]
    %v377 = vld [vmem:[%s1 + $0xb08] sm:$0xff]
    %v378 = vld [vmem:[%s1 + $0xb10] sm:$0xff]
    %v379 = vld [vmem:[%s1 + $0xb18] sm:$0xff]
    %v380 = vld [vmem:[%s1 + $0xb20] sm:$0xff]
    %v381 = vld [vmem:[%s1 + $0xb28] sm:$0xff]
    %v382 = vld [vmem:[%s1 + $0xb30] sm:$0xff]
    %v383 = vld [vmem:[%s1 + $0xb38] sm:$0xff]
    %v384 = vld [vmem:[%s1 + $0xb40] sm:$0xff]
    %v385 = vld [vmem:[%s1 + $0xb48] sm:$0xff]
    %v386 = vld [vmem:[%s1 + $0xb50] sm:$0xff]
    %v387 = vld [vmem:[%s1 + $0xb58] sm:$0xff]
    %v388 = vld [vmem:[%s1 + $0xb60] sm:$0xff]
    %v389 = vld [vmem:[%s1 + $0xb68] sm:$0xff]
    %v390 = vld [vmem:[%s1 + $0xb70] sm:$0xff]
    %v391 = vld [vmem:[%s1 + $0xb78] sm:$0xff]
    %v392 = vld [vmem:[%s1 + $0xb80] sm:$0xff]
    %v393 = vld [vmem:[%s1 + $0xb88] sm:$0xff]
    %v394 = vld [vmem:[%s1 + $0xb90] sm:$0xff]
    %v395 = vld [vmem:[%s1 + $0xb98] sm:$0xff]
    %v396 = vld [vmem:[%s1 + $0xba0] sm:$0xff]
    %v397 = vld [vmem:[%s1 + $0xba8] sm:$0xff]
    %v398 = vld [vmem:[%s1 + $0xbb0] sm:$0xff]
    %v399 = vld [vmem:[%s1 + $0xbb8] sm:$0xff]
    %v400 = vld [vmem:[%s1 + $0xbc0] sm:$0xff]
    %v401 = vld [vmem:[%s1 + $0xbc8] sm:$0xff]
    %v402 = vld [vmem:[%s1 + $0xbd0] sm:$0xff]
    %v403 = vld [vmem:[%s1 + $0xbd8] sm:$0xff]
    %v404 = vld [vmem:[%s1 + $0xbe0] sm:$0xff]
    %v405 = vld [vmem:[%s1 + $0xbe8] sm:$0xff]
    %v406 = vld [vmem:[%s1 + $0xbf0] sm:$0xff]
    %v407 = vld [vmem:[%s1 + $0xbf8] sm:$0xff]
    %v408 = vld [vmem:[%s1 + $0xc00] sm:$0xff]
    %v409 = vld [vmem:[%s1 + $0xc08] sm:$0xff]
    %v410 = vld [vmem:[%s1 + $0xc10] sm:$0xff]
    %v411 = vld [vmem:[%s1 + $0xc18] sm:$0xff]
    %v412 = vld [vmem:[%s1 + $0xc20] sm:$0xff]
    %v413 = vld [vmem:[%s1 + $0xc28] sm:$0xff]
    %v414 = vld [vmem:[%s1 + $0xc30] sm:$0xff]
    %v415 = vld [vmem:[%s1 + $0xc38] sm:$0xff]
    %v416 = vld [vmem:[%s1 + $0xc40] sm:$0xff]
    %v417 = vld [vmem:[%s1 + $0xc48] sm:$0xff]
    %v418 = vld [vmem:[%s1 + $0xc50] sm:$0xff]
    %v419 = vld [vmem:[%s1 + $0xc58] sm:$0xff]
    %v420 = vld [vmem:[%s1 + $0xc60] sm:$0xff]
    %v421 = vld [vmem:[%s1 + $0xc68] sm:$0xff]
    %v422 = vld [vmem:[%s1 + $0xc70] sm:$0xff]
    %v423 = vld [vmem:[%s1 + $0xc78] sm:$0xff]
    %v424 = vld [vmem:[%s1 + $0xc80] sm:$0xff]
    %v425 = vld [vmem:[%s1 + $0xc88] sm:$0xff]
    %v426 = vld [vmem:[%s1 + $0xc90] sm:$0xff]
    %v427 = vld [vmem:[%s1 + $0xc98] sm:$0xff]
    %v428 = vld [vmem:[%s1 + $0xca0] sm:$0xff]
    %v429 = vld [vmem:[%s1 + $0xca8] sm:$0xff]
    %v430 = vld [vmem:[%s1 + $0xcb0] sm:$0xff]
    %v431 = vld [vmem:[%s1 + $0xcb8] sm:$0xff]
    %v432 = vld [vmem:[%s1 + $0xcc0] sm:$0xff]
    %v433 = vld [vmem:[%s1 + $0xcc8] sm:$0xff]
    %v434 = vld [vmem:[%s1 + $0xcd0] sm:$0xff]
    %v435 = vld [vmem:[%s1 + $0xcd8] sm:$0xff]
    %v436 = vld [vmem:[%s1 + $0xce0] sm:$0xff]
    %v437 = vld [vmem:[%s1 + $0xce8] sm:$0xff]
    %v438 = vld [vmem:[%s1 + $0xcf0] sm:$0xff]
    %v439 = vld [vmem:[%s1 + $0xcf8] sm:$0xff]
    %v440 = vld [vmem:[%s1 + $0xd00] sm:$0xff]
    %v441 = vld [vmem:[%s1 + $0xd08] sm:$0xff]
    %v442 = vld [vmem:[%s1 + $0xd10] sm:$0xff]
    %v443 = vld [vmem:[%s1 + $0xd18] sm:$0xff]
    %v444 = vld [vmem:[%s1 + $0xd20] sm:$0xff]
    %v445 = vld [vmem:[%s1 + $0xd28] sm:$0xff]
    %v446 = vld [vmem:[%s1 + $0xd30] sm:$0xff]
    %v447 = vld [vmem:[%s1 + $0xd38] sm:$0xff]
    %v448 = vld [vmem:[%s1 + $0xd40] sm:$0xff]
    %v449 = vld [vmem:[%s1 + $0xd48] sm:$0xff]
    %v450 = vld [vmem:[%s1 + $0xd50] sm:$0xff]
    %v451 = vld [vmem:[%s1 + $0xd58] sm:$0xff]
    %v452 = vld [vmem:[%s1 + $0xd60] sm:$0xff]
    %v453 = vld [vmem:[%s1 + $0xd68] sm:$0xff]
    %v454 = vld [vmem:[%s1 + $0xd70] sm:$0xff]
    %v455 = vld [vmem:[%s1 + $0xd78] sm:$0xff]
    %v456 = vld [vmem:[%s1 + $0xd80] sm:$0xff]
    %v457 = vld [vmem:[%s1 + $0xd88] sm:$0xff]
    %v458 = vld [vmem:[%s1 + $0xd90] sm:$0xff]
    %v459 = vld [vmem:[%s1 + $0xd98] sm:$0xff]
    %v460 = vld [vmem:[%s1 + $0xda0] sm:$0xff]
    %v461 = vld [vmem:[%s1 + $0xda8] sm:$0xff]
    %v462 = vld [vmem:[%s1 + $0xdb0] sm:$0xff]
    %v463 = vld [vmem:[%s1 + $0xdb8] sm:$0xff]
    %v464 = vld [vmem:[%s1 + $0xdc0] sm:$0xff]
    %v465 = vld [vmem:[%s1 + $0xdc8] sm:$0xff]
    %v466 = vld [vmem:[%s1 + $0xdd0] sm:$0xff]
    %v467 = vld [vmem:[%s1 + $0xdd8] sm:$0xff]
    %v468 = vld [vmem:[%s1 + $0xde0] sm:$0xff]
    %v469 = vld [vmem:[%s1 + $0xde8] sm:$0xff]
    %v470 = vld [vmem:[%s1 + $0xdf0] sm:$0xff]
    %v471 = vld [vmem:[%s1 + $0xdf8] sm:$0xff]
    %v472 = vld [vmem:[%s1 + $0xe00] sm:$0xff]
    %v473 = vld [vmem:[%s1 + $0xe08] sm:$0xff]
    %v474 = vld [vmem:[%s1 + $0xe10] sm:$0xff]
    %v475 = vld [vmem:[%s1 + $0xe18] sm:$0xff]
    %v476 = vld [vmem:[%s1 + $0xe20] sm:$0xff]
    %v477 = vld [vmem:[%s1 + $0xe28] sm:$0xff]
    %v478 = vld [vmem:[%s1 + $0xe30] sm:$0xff]
    %v479 = vld [vmem:[%s1 + $0xe38] sm:$0xff]
    %v480 = vld [vmem:[%s1 + $0xe40] sm:$0xff]
    %v481 = vld [vmem:[%s1 + $0xe48] sm:$0xff]
    %v482 = vld [vmem:[%s1 + $0xe50] sm:$0xff]
    %v483 = vld [vmem:[%s1 + $0xe58] sm:$0xff]
    %v484 = vld [vmem:[%s1 + $0xe60] sm:$0xff]
    %v485 = vld [vmem:[%s1 + $0xe68] sm:$0xff]
    %v486 = vld [vmem:[%s1 + $0xe70] sm:$0xff]
    %v487 = vld [vmem:[%s1 + $0xe78] sm:$0xff]
    %v488 = vld [vmem:[%s1 + $0xe80] sm:$0xff]
    %v489 = vld [vmem:[%s1 + $0xe88] sm:$0xff]
    %v490 = vld [vmem:[%s1 + $0xe90] sm:$0xff]
    %v491 = vld [vmem:[%s1 + $0xe98] sm:$0xff]
    %v492 = vld [vmem:[%s1 + $0xea0] sm:$0xff]
    %v493 = vld [vmem:[%s1 + $0xea8] sm:$0xff]
    %v494 = vld [vmem:[%s1 + $0xeb0] sm:$0xff]
    %v495 = vld [vmem:[%s1 + $0xeb8] sm:$0xff]
    %v496 = vld [vmem:[%s1 + $0xec0] sm:$0xff]
    %v497 = vld [vmem:[%s1 + $0xec8] sm:$0xff]
    %v498 = vld [vmem:[%s1 + $0xed0] sm:$0xff]
    %v499 = vld [vmem:[%s1 + $0xed8] sm:$0xff]
    %v500 = vld [vmem:[%s1 + $0xee0] sm:$0xff]
    %v501 = vld [vmem:[%s1 + $0xee8] sm:$0xff]
    %v502 = vld [vmem:[%s1 + $0xef0] sm:$0xff]
    %v503 = vld [vmem:[%s1 + $0xef8] sm:$0xff]
    %v504 = vld [vmem:[%s1 + $0xf00] sm:$0xff]
    %v505 = vld [vmem:[%s1 + $0xf08] sm:$0xff]
    %v506 = vld [vmem:[%s1 + $0xf10] sm:$0xff]
    %v507 = vld [vmem:[%s1 + $0xf18] sm:$0xff]
    %v508 = vld [vmem:[%s1 + $0xf20] sm:$0xff]
    %v509 = vld [vmem:[%s1 + $0xf28] sm:$0xff]
    %v510 = vld [vmem:[%s1 + $0xf30] sm:$0xff]
    %v511 = vld [vmem:[%s1 + $0xf38] sm:$0xff]
    %v512 = vld [vmem:[%s1 + $0xf40] sm:$0xff]
    %v513 = vld [vmem:[%s1 + $0xf48] sm:$0xff]
    %v514 = vld [vmem:[%s1 + $0xf50] sm:$0xff]
    %v515 = vld [vmem:[%s1 + $0xf58] sm:$0xff]
    %v516 = vld [vmem:[%s1 + $0xf60] sm:$0xff]
    %v517 = vld [vmem:[%s1 + $0xf68] sm:$0xff]
    %v518 = vld [vmem:[%s1 + $0xf70] sm:$0xff]
    %v519 = vld [vmem:[%s1 + $0xf78] sm:$0xff]
    %v520 = vld [vmem:[%s1 + $0xf80] sm:$0xff]
    %v521 = vld [vmem:[%s1 + $0xf88] sm:$0xff]
    %v522 = vld [vmem:[%s1 + $0xf90] sm:$0xff]
    %v523 = vld [vmem:[%s1 + $0xf98] sm:$0xff]
    %v524 = vld [vmem:[%s1 + $0xfa0] sm:$0xff]
    %v525 = vld [vmem:[%s1 + $0xfa8] sm:$0xff]
    %v526 = vld [vmem:[%s1 + $0xfb0] sm:$0xff]
    %v527 = vld [vmem:[%s1 + $0xfb8] sm:$0xff]
    %v528 = vld [vmem:[%s1 + $0xfc0] sm:$0xff]
    %v529 = vld [vmem:[%s1 + $0xfc8] sm:$0xff]
    %v530 = vld [vmem:[%s1 + $0xfd0] sm:$0xff]
    %v531 = vld [vmem:[%s1 + $0xfd8] sm:$0xff]
    %v532 = vld [vmem:[%s1 + $0xfe0] sm:$0xff]
    %v533 = vld [vmem:[%s1 + $0xfe8] sm:$0xff]
    %v534 = vld [vmem:[%s1 + $0xff0] sm:$0xff]
    %v535 = vld [vmem:[%s1 + $0xff8] sm:$0xff]
    %v536 = vld [vmem:[%s1 + $0x1000] sm:$0xff]
    %v537 = vld [vmem:[%s1 + $0x1008] sm:$0xff]
    %v538 = vld [vmem:[%s1 + $0x1010] sm:$0xff]
    %v539 = vld [vmem:[%s1 + $0x1018] sm:$0xff]
    %v540 = vld [vmem:[%s1 + $0x1020] sm:$0xff]
    %v541 = vld [vmem:[%s1 + $0x1028] sm:$0xff]
    %v542 = vld [vmem:[%s1 + $0x1030] sm:$0xff]
    %v543 = vld [vmem:[%s1 + $0x1038] sm:$0xff]
    %v544 = vld [vmem:[%s1 + $0x1040] sm:$0xff]
    %v545 = vld [vmem:[%s1 + $0x1048] sm:$0xff]
    %v546 = vld [vmem:[%s1 + $0x1050] sm:$0xff]
    %v547 = vld [vmem:[%s1 + $0x1058] sm:$0xff]
    %v548 = vld [vmem:[%s1 + $0x1060] sm:$0xff]
    %v549 = vld [vmem:[%s1 + $0x1068] sm:$0xff]
    %v550 = vld [vmem:[%s1 + $0x1070] sm:$0xff]
    %v551 = vld [vmem:[%s1 + $0x1078] sm:$0xff]
    %v552 = vld [vmem:[%s1 + $0x1080] sm:$0xff]
    %v553 = vld [vmem:[%s1 + $0x1088] sm:$0xff]
    %v554 = vld [vmem:[%s1 + $0x1090] sm:$0xff]
    %v555 = vld [vmem:[%s1 + $0x1098] sm:$0xff]
    %v556 = vld [vmem:[%s1 + $0x10a0] sm:$0xff]
    %v557 = vld [vmem:[%s1 + $0x10a8] sm:$0xff]
    %v558 = vld [vmem:[%s1 + $0x10b0] sm:$0xff]
    %v559 = vld [vmem:[%s1 + $0x10b8] sm:$0xff]
    %v560 = vld [vmem:[%s1 + $0x10c0] sm:$0xff]
    %v561 = vld [vmem:[%s1 + $0x10c8] sm:$0xff]
    %v562 = vld [vmem:[%s1 + $0x10d0] sm:$0xff]
    %v563 = vld [vmem:[%s1 + $0x10d8] sm:$0xff]
    %v564 = vld [vmem:[%s1 + $0x10e0] sm:$0xff]
    %v565 = vld [vmem:[%s1 + $0x10e8] sm:$0xff]
    %v566 = vld [vmem:[%s1 + $0x10f0] sm:$0xff]
    %v567 = vld [vmem:[%s1 + $0x10f8] sm:$0xff]
    %v568 = vld [vmem:[%s1 + $0x1100] sm:$0xff]
    %v569 = vld [vmem:[%s1 + $0x1108] sm:$0xff]
    %v570 = vld [vmem:[%s1 + $0x1110] sm:$0xff]
    %v571 = vld [vmem:[%s1 + $0x1118] sm:$0xff]
    %v572 = vld [vmem:[%s1 + $0x1120] sm:$0xff]
    %v573 = vld [vmem:[%s1 + $0x1128] sm:$0xff]
    %v574 = vld [vmem:[%s1 + $0x1130] sm:$0xff]
    %v575 = vld [vmem:[%s1 + $0x1138] sm:$0xff]
    %v576 = vld [vmem:[%s1 + $0x1140] sm:$0xff]
    %v577 = vld [vmem:[%s1 + $0x1148] sm:$0xff]
    %v578 = vld [vmem:[%s1 + $0x1150] sm:$0xff]
    %v579 = vld [vmem:[%s1 + $0x1158] sm:$0xff]
    %v580 = vld [vmem:[%s1 + $0x1160] sm:$0xff]
    %v581 = vld [vmem:[%s1 + $0x1168] sm:$0xff]
    %v582 = vld [vmem:[%s1 + $0x1170] sm:$0xff]
    %v583 = vld [vmem:[%s1 + $0x1178] sm:$0xff]
    %v584 = vld [vmem:[%s1 + $0x1180] sm:$0xff]
    %v585 = vld [vmem:[%s1 + $0x1188] sm:$0xff]
    %v586 = vld [vmem:[%s1 + $0x1190] sm:$0xff]
    %v587 = vld [vmem:[%s1 + $0x1198] sm:$0xff]
    %v588 = vld [vmem:[%s1 + $0x11a0] sm:$0xff]
    %v589 = vld [vmem:[%s1 + $0x11a8] sm:$0xff]
    %v590 = vld [vmem:[%s1 + $0x11b0] sm:$0xff]
    %v591 = vld [vmem:[%s1 + $0x11b8] sm:$0xff]
    %v592 = vld [vmem:[%s1 + $0x11c0] sm:$0xff]
    %v593 = vld [vmem:[%s1 + $0x11c8] sm:$0xff]
    %v594 = vld [vmem:[%s1 + $0x11d0] sm:$0xff]
    %v595 = vld [vmem:[%s1 + $0x11d8] sm:$0xff]
    %v596 = vld [vmem:[%s1 + $0x11e0] sm:$0xff]
    %v597 = vld [vmem:[%s1 + $0x11e8] sm:$0xff]
    %v598 = vld [vmem:[%s1 + $0x11f0] sm:$0xff]
    %v599 = vld [vmem:[%s1 + $0x11f8] sm:$0xff]
    %v600 = vld [vmem:[%s2] sm:$0xf]
    %v602 = vperm.slane %v600, 0
    %v603 = vperm.slane %v600, 1
    %v604 = vperm.slane %v600, 2
    %v605 = vperm.slane %v600, 3
    %611 = vst [vmem:[#allocation1] ss:$9 sm:$0xff] %v21
    %v612 = vld [vmem:[#allocation1] sm:$0xff]
    %v613 = vld [vmem:[#allocation1 + $0x9] sm:$0xff]
    %v614 = vld [vmem:[#allocation1 + $0x12] sm:$0xff]
    %v615 = vld [vmem:[#allocation1 + $0x1b] sm:$0xff]
    %v616 = vld [vmem:[#allocation1 + $0x24] sm:$0xff]
    %v617 = vld [vmem:[#allocation1 + $0x2d] sm:$0xff]
    %v618 = vld [vmem:[#allocation1 + $0x36] sm:$0xff]
    %v619 = vld [vmem:[#allocation1 + $0x3f] sm:$0xff]
    %621 = vst [vmem:[#allocation1] ss:$9 sm:$0xff] %v22
    %v622 = vld [vmem:[#allocation1] sm:$0xff]
    %v623 = vld [vmem:[#allocation1 + $0x9] sm:$0xff]
    %v624 = vld [vmem:[#allocation1 + $0x12] sm:$0xff]
    %v625 = vld [vmem:[#allocation1 + $0x1b] sm:$0xff]
    %v626 = vld [vmem:[#allocation1 + $0x24] sm:$0xff]
    %v627 = vld [vmem:[#allocation1 + $0x2d] sm:$0xff]
    %v628 = vld [vmem:[#allocation1 + $0x36] sm:$0xff]
    %v629 = vld [vmem:[#allocation1 + $0x3f] sm:$0xff]
    %631 = vst [vmem:[#allocation1] ss:$9 sm:$0xff] %v23
    %v632 = vld [vmem:[#allocation1] sm:$0xff]
    %v633 = vld [vmem:[#allocation1 + $0x9] sm:$0xff]
    %v1228 = vunpack.c.l.b16 %v24
    %v1229 = vunpack.c.h.b16 %v24
    %v1230 = vunpack.c.l.b16 %v25
    %v1231 = vunpack.c.h.b16 %v25
    %v1232 = vunpack.c.l.b16 %v26
    %v1233 = vunpack.c.h.b16 %v26
    %v1234 = vunpack.c.l.b16 %v27
    %v1235 = vunpack.c.h.b16 %v27
    %v1236 = vunpack.c.l.b16 %v28
    %v1237 = vunpack.c.h.b16 %v28
    %v1238 = vunpack.c.l.b16 %v29
    %v1239 = vunpack.c.h.b16 %v29
    %v1240 = vunpack.c.l.b16 %v30
    %v1241 = vunpack.c.h.b16 %v30
    %v1242 = vunpack.c.l.b16 %v31
    %v1243 = vunpack.c.h.b16 %v31
    %v1244 = vunpack.c.l.b16 %v32
    %v1245 = vunpack.c.h.b16 %v32
    %v1246 = vunpack.c.l.b16 %v33
    %v1247 = vunpack.c.h.b16 %v33
    %v1248 = vunpack.c.l.b16 %v34
    %v1249 = vunpack.c.h.b16 %v34
    %v1250 = vunpack.c.l.b16 %v35
    %v1251 = vunpack.c.h.b16 %v35
    %v1252 = vunpack.c.l.b16 %v36
    %v1253 = vunpack.c.h.b16 %v36
    %v1254 = vunpack.c.l.b16 %v37
    %v1255 = vunpack.c.h.b16 %v37
    %v1256 = vunpack.c.l.b16 %v38
    %v1257 = vunpack.c.h.b16 %v38
    %v1258 = vunpack.c.l.b16 %v39
    %v1259 = vunpack.c.h.b16 %v39
    %v1260 = vunpack.c.l.b16 %v40
    %v1261 = vunpack.c.h.b16 %v40
    %v1262 = vunpack.c.l.b16 %v41
    %v1263 = vunpack.c.h.b16 %v41
    %v1264 = vunpack.c.l.b16 %v42
    %v1265 = vunpack.c.h.b16 %v42
    %v1266 = vunpack.c.l.b16 %v43
    %v1267 = vunpack.c.h.b16 %v43
    %v1268 = vunpack.c.l.b16 %v44
    %v1269 = vunpack.c.h.b16 %v44
    %v1270 = vunpack.c.l.b16 %v45
    %v1271 = vunpack.c.h.b16 %v45
    %v1272 = vunpack.c.l.b16 %v46
    %v1273 = vunpack.c.h.b16 %v46
    %v1274 = vunpack.c.l.b16 %v47
    %v1275 = vunpack.c.h.b16 %v47
    %v1276 = vunpack.c.l.b16 %v48
    %v1277 = vunpack.c.h.b16 %v48
    %v1278 = vunpack.c.l.b16 %v49
    %v1279 = vunpack.c.h.b16 %v49
    %v1280 = vunpack.c.l.b16 %v50
    %v1281 = vunpack.c.h.b16 %v50
    %v1282 = vunpack.c.l.b16 %v51
    %v1283 = vunpack.c.h.b16 %v51
    %v1284 = vunpack.c.l.b16 %v52
    %v1285 = vunpack.c.h.b16 %v52
    %v1286 = vunpack.c.l.b16 %v53
    %v1287 = vunpack.c.h.b16 %v53
    %v1288 = vunpack.c.l.b16 %v54
    %v1289 = vunpack.c.h.b16 %v54
    %v1290 = vunpack.c.l.b16 %v55
    %v1291 = vunpack.c.h.b16 %v55
    %v1292 = vunpack.c.l.b16 %v56
    %v1293 = vunpack.c.h.b16 %v56
    %v1294 = vunpack.c.l.b16 %v57
    %v1295 = vunpack.c.h.b16 %v57
    %v1296 = vunpack.c.l.b16 %v58
    %v1297 = vunpack.c.h.b16 %v58
    %v1298 = vunpack.c.l.b16 %v59
    %v1299 = vunpack.c.h.b16 %v59
    %v1300 = vunpack.c.l.b16 %v60
    %v1301 = vunpack.c.h.b16 %v60
    %v1302 = vunpack.c.l.b16 %v61
    %v1303 = vunpack.c.h.b16 %v61
    %v1304 = vunpack.c.l.b16 %v62
    %v1305 = vunpack.c.h.b16 %v62
    %v1306 = vunpack.c.l.b16 %v63
    %v1307 = vunpack.c.h.b16 %v63
    %v1308 = vunpack.c.l.b16 %v64
    %v1309 = vunpack.c.h.b16 %v64
    %v1310 = vunpack.c.l.b16 %v65
    %v1311 = vunpack.c.h.b16 %v65
    %v1312 = vunpack.c.l.b16 %v66
    %v1313 = vunpack.c.h.b16 %v66
    %v1314 = vunpack.c.l.b16 %v67
    %v1315 = vunpack.c.h.b16 %v67
    %v1316 = vunpack.c.l.b16 %v68
    %v1317 = vunpack.c.h.b16 %v68
    %v1318 = vunpack.c.l.b16 %v69
    %v1319 = vunpack.c.h.b16 %v69
    %v1320 = vunpack.c.l.b16 %v70
    %v1321 = vunpack.c.h.b16 %v70
    %v1322 = vunpack.c.l.b16 %v71
    %v1323 = vunpack.c.h.b16 %v71
    %v1324 = vunpack.c.l.b16 %v72
    %v1325 = vunpack.c.h.b16 %v72
    %v1326 = vunpack.c.l.b16 %v73
    %v1327 = vunpack.c.h.b16 %v73
    %v1328 = vunpack.c.l.b16 %v74
    %v1329 = vunpack.c.h.b16 %v74
    %v1330 = vunpack.c.l.b16 %v75
    %v1331 = vunpack.c.h.b16 %v75
    %v1332 = vunpack.c.l.b16 %v76
    %v1333 = vunpack.c.h.b16 %v76
    %v1334 = vunpack.c.l.b16 %v77
    %v1335 = vunpack.c.h.b16 %v77
    %v1336 = vunpack.c.l.b16 %v78
    %v1337 = vunpack.c.h.b16 %v78
    %v1338 = vunpack.c.l.b16 %v79
    %v1339 = vunpack.c.h.b16 %v79
    %v1340 = vunpack.c.l.b16 %v80
    %v1341 = vunpack.c.h.b16 %v80
    %v1342 = vunpack.c.l.b16 %v81
    %v1343 = vunpack.c.h.b16 %v81
    %v1344 = vunpack.c.l.b16 %v82
    %v1345 = vunpack.c.h.b16 %v82
    %v1346 = vunpack.c.l.b16 %v83
    %v1347 = vunpack.c.h.b16 %v83
    %v1348 = vunpack.c.l.b16 %v84
    %v1349 = vunpack.c.h.b16 %v84
    %v1350 = vunpack.c.l.b16 %v85
    %v1351 = vunpack.c.h.b16 %v85
    %v1352 = vunpack.c.l.b16 %v86
    %v1353 = vunpack.c.h.b16 %v86
    %v1354 = vunpack.c.l.b16 %v87
    %v1355 = vunpack.c.h.b16 %v87
    %v1356 = vunpack.c.l.b16 %v88
    %v1357 = vunpack.c.h.b16 %v88
    %v1358 = vunpack.c.l.b16 %v89
    %v1359 = vunpack.c.h.b16 %v89
    %v1360 = vunpack.c.l.b16 %v90
    %v1361 = vunpack.c.h.b16 %v90
    %v1362 = vunpack.c.l.b16 %v91
    %v1363 = vunpack.c.h.b16 %v91
    %v1364 = vunpack.c.l.b16 %v92
    %v1365 = vunpack.c.h.b16 %v92
    %v1366 = vunpack.c.l.b16 %v93
    %v1367 = vunpack.c.h.b16 %v93
    %v1368 = vunpack.c.l.b16 %v94
    %v1369 = vunpack.c.h.b16 %v94
    %v1370 = vunpack.c.l.b16 %v95
    %v1371 = vunpack.c.h.b16 %v95
    %v1372 = vunpack.c.l.b16 %v96
    %v1373 = vunpack.c.h.b16 %v96
    %v1374 = vunpack.c.l.b16 %v97
    %v1375 = vunpack.c.h.b16 %v97
    %v1376 = vunpack.c.l.b16 %v98
    %v1377 = vunpack.c.h.b16 %v98
    %v1378 = vunpack.c.l.b16 %v99
    %v1379 = vunpack.c.h.b16 %v99
    %v1380 = vunpack.c.l.b16 %v100
    %v1381 = vunpack.c.h.b16 %v100
    %v1382 = vunpack.c.l.b16 %v101
    %v1383 = vunpack.c.h.b16 %v101
    %v1384 = vunpack.c.l.b16 %v102
    %v1385 = vunpack.c.h.b16 %v102
    %v1386 = vunpack.c.l.b16 %v103
    %v1387 = vunpack.c.h.b16 %v103
    %v1388 = vunpack.c.l.b16 %v104
    %v1389 = vunpack.c.h.b16 %v104
    %v1390 = vunpack.c.l.b16 %v105
    %v1391 = vunpack.c.h.b16 %v105
    %v1392 = vunpack.c.l.b16 %v106
    %v1393 = vunpack.c.h.b16 %v106
    %v1394 = vunpack.c.l.b16 %v107
    %v1395 = vunpack.c.h.b16 %v107
    %v1396 = vunpack.c.l.b16 %v108
    %v1397 = vunpack.c.h.b16 %v108
    %v1398 = vunpack.c.l.b16 %v109
    %v1399 = vunpack.c.h.b16 %v109
    %v1400 = vunpack.c.l.b16 %v110
    %v1401 = vunpack.c.h.b16 %v110
    %v1402 = vunpack.c.l.b16 %v111
    %v1403 = vunpack.c.h.b16 %v111
    %v1404 = vunpack.c.l.b16 %v112
    %v1405 = vunpack.c.h.b16 %v112
    %v1406 = vunpack.c.l.b16 %v113
    %v1407 = vunpack.c.h.b16 %v113
    %v1408 = vunpack.c.l.b16 %v114
    %v1409 = vunpack.c.h.b16 %v114
    %v1410 = vunpack.c.l.b16 %v115
    %v1411 = vunpack.c.h.b16 %v115
    %v1412 = vunpack.c.l.b16 %v116
    %v1413 = vunpack.c.h.b16 %v116
    %v1414 = vunpack.c.l.b16 %v117
    %v1415 = vunpack.c.h.b16 %v117
    %v1416 = vunpack.c.l.b16 %v118
    %v1417 = vunpack.c.h.b16 %v118
    %v1418 = vunpack.c.l.b16 %v119
    %v1419 = vunpack.c.h.b16 %v119
    %v1420 = vunpack.c.l.b16 %v120
    %v1421 = vunpack.c.h.b16 %v120
    %v1422 = vunpack.c.l.b16 %v121
    %v1423 = vunpack.c.h.b16 %v121
    %v1424 = vunpack.c.l.b16 %v122
    %v1425 = vunpack.c.h.b16 %v122
    %v1426 = vunpack.c.l.b16 %v123
    %v1427 = vunpack.c.h.b16 %v123
    %v1428 = vunpack.c.l.b16 %v124
    %v1429 = vunpack.c.h.b16 %v124
    %v1430 = vunpack.c.l.b16 %v125
    %v1431 = vunpack.c.h.b16 %v125
    %v1432 = vunpack.c.l.b16 %v126
    %v1433 = vunpack.c.h.b16 %v126
    %v1434 = vunpack.c.l.b16 %v127
    %v1435 = vunpack.c.h.b16 %v127
    %v1436 = vunpack.c.l.b16 %v128
    %v1437 = vunpack.c.h.b16 %v128
    %v1438 = vunpack.c.l.b16 %v129
    %v1439 = vunpack.c.h.b16 %v129
    %v1440 = vunpack.c.l.b16 %v130
    %v1441 = vunpack.c.h.b16 %v130
    %v1442 = vunpack.c.l.b16 %v131
    %v1443 = vunpack.c.h.b16 %v131
    %v1444 = vunpack.c.l.b16 %v132
    %v1445 = vunpack.c.h.b16 %v132
    %v1446 = vunpack.c.l.b16 %v133
    %v1447 = vunpack.c.h.b16 %v133
    %v1448 = vunpack.c.l.b16 %v134
    %v1449 = vunpack.c.h.b16 %v134
    %v1450 = vunpack.c.l.b16 %v135
    %v1451 = vunpack.c.h.b16 %v135
    %v1452 = vunpack.c.l.b16 %v136
    %v1453 = vunpack.c.h.b16 %v136
    %v1454 = vunpack.c.l.b16 %v137
    %v1455 = vunpack.c.h.b16 %v137
    %v1456 = vunpack.c.l.b16 %v138
    %v1457 = vunpack.c.h.b16 %v138
    %v1458 = vunpack.c.l.b16 %v139
    %v1459 = vunpack.c.h.b16 %v139
    %v1460 = vunpack.c.l.b16 %v140
    %v1461 = vunpack.c.h.b16 %v140
    %v1462 = vunpack.c.l.b16 %v141
    %v1463 = vunpack.c.h.b16 %v141
    %v1464 = vunpack.c.l.b16 %v142
    %v1465 = vunpack.c.h.b16 %v142
    %v1466 = vunpack.c.l.b16 %v143
    %v1467 = vunpack.c.h.b16 %v143
    %v1468 = vunpack.c.l.b16 %v144
    %v1469 = vunpack.c.h.b16 %v144
    %v1470 = vunpack.c.l.b16 %v145
    %v1471 = vunpack.c.h.b16 %v145
    %v1472 = vunpack.c.l.b16 %v146
    %v1473 = vunpack.c.h.b16 %v146
    %v1474 = vunpack.c.l.b16 %v147
    %v1475 = vunpack.c.h.b16 %v147
    %v1476 = vunpack.c.l.b16 %v148
    %v1477 = vunpack.c.h.b16 %v148
    %v1478 = vunpack.c.l.b16 %v149
    %v1479 = vunpack.c.h.b16 %v149
    %v1480 = vunpack.c.l.b16 %v150
    %v1481 = vunpack.c.h.b16 %v150
    %v1482 = vunpack.c.l.b16 %v151
    %v1483 = vunpack.c.h.b16 %v151
    %v1484 = vunpack.c.l.b16 %v152
    %v1485 = vunpack.c.h.b16 %v152
    %v1486 = vunpack.c.l.b16 %v153
    %v1487 = vunpack.c.h.b16 %v153
    %v1488 = vunpack.c.l.b16 %v154
    %v1489 = vunpack.c.h.b16 %v154
    %v1490 = vunpack.c.l.b16 %v155
    %v1491 = vunpack.c.h.b16 %v155
    %v1492 = vunpack.c.l.b16 %v156
    %v1493 = vunpack.c.h.b16 %v156
    %v1494 = vunpack.c.l.b16 %v157
    %v1495 = vunpack.c.h.b16 %v157
    %v1496 = vunpack.c.l.b16 %v158
    %v1497 = vunpack.c.h.b16 %v158
    %v1498 = vunpack.c.l.b16 %v159
    %v1499 = vunpack.c.h.b16 %v159
    %v1500 = vunpack.c.l.b16 %v160
    %v1501 = vunpack.c.h.b16 %v160
    %v1502 = vunpack.c.l.b16 %v161
    %v1503 = vunpack.c.h.b16 %v161
    %v1504 = vunpack.c.l.b16 %v162
    %v1505 = vunpack.c.h.b16 %v162
    %v1506 = vunpack.c.l.b16 %v163
    %v1507 = vunpack.c.h.b16 %v163
    %v1508 = vunpack.c.l.b16 %v164
    %v1509 = vunpack.c.h.b16 %v164
    %v1510 = vunpack.c.l.b16 %v165
    %v1511 = vunpack.c.h.b16 %v165
    %v1512 = vunpack.c.l.b16 %v166
    %v1513 = vunpack.c.h.b16 %v166
    %v1514 = vunpack.c.l.b16 %v167
    %v1515 = vunpack.c.h.b16 %v167
    %v1516 = vunpack.c.l.b16 %v168
    %v1517 = vunpack.c.h.b16 %v168
    %v1518 = vunpack.c.l.b16 %v169
    %v1519 = vunpack.c.h.b16 %v169
    %v1520 = vunpack.c.l.b16 %v170
    %v1521 = vunpack.c.h.b16 %v170
    %v1522 = vunpack.c.l.b16 %v171
    %v1523 = vunpack.c.h.b16 %v171
    %v1524 = vunpack.c.l.b16 %v172
    %v1525 = vunpack.c.h.b16 %v172
    %v1526 = vunpack.c.l.b16 %v173
    %v1527 = vunpack.c.h.b16 %v173
    %v1528 = vunpack.c.l.b16 %v174
    %v1529 = vunpack.c.h.b16 %v174
    %v1530 = vunpack.c.l.b16 %v175
    %v1531 = vunpack.c.h.b16 %v175
    %v1532 = vunpack.c.l.b16 %v176
    %v1533 = vunpack.c.h.b16 %v176
    %v1534 = vunpack.c.l.b16 %v177
    %v1535 = vunpack.c.h.b16 %v177
    %v1536 = vunpack.c.l.b16 %v178
    %v1537 = vunpack.c.h.b16 %v178
    %v1538 = vunpack.c.l.b16 %v179
    %v1539 = vunpack.c.h.b16 %v179
    %v1540 = vunpack.c.l.b16 %v180
    %v1541 = vunpack.c.h.b16 %v180
    %v1542 = vunpack.c.l.b16 %v181
    %v1543 = vunpack.c.h.b16 %v181
    %v1544 = vunpack.c.l.b16 %v182
    %v1545 = vunpack.c.h.b16 %v182
    %v1546 = vunpack.c.l.b16 %v183
    %v1547 = vunpack.c.h.b16 %v183
    %v1548 = vunpack.c.l.b16 %v184
    %v1549 = vunpack.c.h.b16 %v184
    %v1550 = vunpack.c.l.b16 %v185
    %v1551 = vunpack.c.h.b16 %v185
    %v1552 = vunpack.c.l.b16 %v186
    %v1553 = vunpack.c.h.b16 %v186
    %v1554 = vunpack.c.l.b16 %v187
    %v1555 = vunpack.c.h.b16 %v187
    %v1556 = vunpack.c.l.b16 %v188
    %v1557 = vunpack.c.h.b16 %v188
    %v1558 = vunpack.c.l.b16 %v189
    %v1559 = vunpack.c.h.b16 %v189
    %v1560 = vunpack.c.l.b16 %v190
    %v1561 = vunpack.c.h.b16 %v190
    %v1562 = vunpack.c.l.b16 %v191
    %v1563 = vunpack.c.h.b16 %v191
    %v1564 = vunpack.c.l.b16 %v192
    %v1565 = vunpack.c.h.b16 %v192
    %v1566 = vunpack.c.l.b16 %v193
    %v1567 = vunpack.c.h.b16 %v193
    %v1568 = vunpack.c.l.b16 %v194
    %v1569 = vunpack.c.h.b16 %v194
    %v1570 = vunpack.c.l.b16 %v195
    %v1571 = vunpack.c.h.b16 %v195
    %v1572 = vunpack.c.l.b16 %v196
    %v1573 = vunpack.c.h.b16 %v196
    %v1574 = vunpack.c.l.b16 %v197
    %v1575 = vunpack.c.h.b16 %v197
    %v1576 = vunpack.c.l.b16 %v198
    %v1577 = vunpack.c.h.b16 %v198
    %v1578 = vunpack.c.l.b16 %v199
    %v1579 = vunpack.c.h.b16 %v199
    %v1580 = vunpack.c.l.b16 %v200
    %v1581 = vunpack.c.h.b16 %v200
    %v1582 = vunpack.c.l.b16 %v201
    %v1583 = vunpack.c.h.b16 %v201
    %v1584 = vunpack.c.l.b16 %v202
    %v1585 = vunpack.c.h.b16 %v202
    %v1586 = vunpack.c.l.b16 %v203
    %v1587 = vunpack.c.h.b16 %v203
    %v1588 = vunpack.c.l.b16 %v204
    %v1589 = vunpack.c.h.b16 %v204
    %v1590 = vunpack.c.l.b16 %v205
    %v1591 = vunpack.c.h.b16 %v205
    %v1592 = vunpack.c.l.b16 %v206
    %v1593 = vunpack.c.h.b16 %v206
    %v1594 = vunpack.c.l.b16 %v207
    %v1595 = vunpack.c.h.b16 %v207
    %v1596 = vunpack.c.l.b16 %v208
    %v1597 = vunpack.c.h.b16 %v208
    %v1598 = vunpack.c.l.b16 %v209
    %v1599 = vunpack.c.h.b16 %v209
    %v1600 = vunpack.c.l.b16 %v210
    %v1601 = vunpack.c.h.b16 %v210
    %v1602 = vunpack.c.l.b16 %v211
    %v1603 = vunpack.c.h.b16 %v211
    %v1604 = vunpack.c.l.b16 %v212
    %v1605 = vunpack.c.h.b16 %v212
    %v1606 = vunpack.c.l.b16 %v213
    %v1607 = vunpack.c.h.b16 %v213
    %v1608 = vunpack.c.l.b16 %v214
    %v1609 = vunpack.c.h.b16 %v214
    %v1610 = vunpack.c.l.b16 %v215
    %v1611 = vunpack.c.h.b16 %v215
    %v1612 = vunpack.c.l.b16 %v216
    %v1613 = vunpack.c.h.b16 %v216
    %v1614 = vunpack.c.l.b16 %v217
    %v1615 = vunpack.c.h.b16 %v217
    %v1616 = vunpack.c.l.b16 %v218
    %v1617 = vunpack.c.h.b16 %v218
    %v1618 = vunpack.c.l.b16 %v219
    %v1619 = vunpack.c.h.b16 %v219
    %v1620 = vunpack.c.l.b16 %v220
    %v1621 = vunpack.c.h.b16 %v220
    %v1622 = vunpack.c.l.b16 %v221
    %v1623 = vunpack.c.h.b16 %v221
    %v1624 = vunpack.c.l.b16 %v222
    %v1625 = vunpack.c.h.b16 %v222
    %v1626 = vunpack.c.l.b16 %v223
    %v1627 = vunpack.c.h.b16 %v223
    %v1628 = vunpack.c.l.b16 %v224
    %v1629 = vunpack.c.h.b16 %v224
    %v1630 = vunpack.c.l.b16 %v225
    %v1631 = vunpack.c.h.b16 %v225
    %v1632 = vunpack.c.l.b16 %v226
    %v1633 = vunpack.c.h.b16 %v226
    %v1634 = vunpack.c.l.b16 %v227
    %v1635 = vunpack.c.h.b16 %v227
    %v1636 = vunpack.c.l.b16 %v228
    %v1637 = vunpack.c.h.b16 %v228
    %v1638 = vunpack.c.l.b16 %v229
    %v1639 = vunpack.c.h.b16 %v229
    %v1640 = vunpack.c.l.b16 %v230
    %v1641 = vunpack.c.h.b16 %v230
    %v1642 = vunpack.c.l.b16 %v231
    %v1643 = vunpack.c.h.b16 %v231
    %v1644 = vunpack.c.l.b16 %v232
    %v1645 = vunpack.c.h.b16 %v232
    %v1646 = vunpack.c.l.b16 %v233
    %v1647 = vunpack.c.h.b16 %v233
    %v1648 = vunpack.c.l.b16 %v234
    %v1649 = vunpack.c.h.b16 %v234
    %v1650 = vunpack.c.l.b16 %v235
    %v1651 = vunpack.c.h.b16 %v235
    %v1652 = vunpack.c.l.b16 %v236
    %v1653 = vunpack.c.h.b16 %v236
    %v1654 = vunpack.c.l.b16 %v237
    %v1655 = vunpack.c.h.b16 %v237
    %v1656 = vunpack.c.l.b16 %v238
    %v1657 = vunpack.c.h.b16 %v238
    %v1658 = vunpack.c.l.b16 %v239
    %v1659 = vunpack.c.h.b16 %v239
    %v1660 = vunpack.c.l.b16 %v240
    %v1661 = vunpack.c.h.b16 %v240
    %v1662 = vunpack.c.l.b16 %v241
    %v1663 = vunpack.c.h.b16 %v241
    %v1664 = vunpack.c.l.b16 %v242
    %v1665 = vunpack.c.h.b16 %v242
    %v1666 = vunpack.c.l.b16 %v243
    %v1667 = vunpack.c.h.b16 %v243
    %v1668 = vunpack.c.l.b16 %v244
    %v1669 = vunpack.c.h.b16 %v244
    %v1670 = vunpack.c.l.b16 %v245
    %v1671 = vunpack.c.h.b16 %v245
    %v1672 = vunpack.c.l.b16 %v246
    %v1673 = vunpack.c.h.b16 %v246
    %v1674 = vunpack.c.l.b16 %v247
    %v1675 = vunpack.c.h.b16 %v247
    %v1676 = vunpack.c.l.b16 %v248
    %v1677 = vunpack.c.h.b16 %v248
    %v1678 = vunpack.c.l.b16 %v249
    %v1679 = vunpack.c.h.b16 %v249
    %v1680 = vunpack.c.l.b16 %v250
    %v1681 = vunpack.c.h.b16 %v250
    %v1682 = vunpack.c.l.b16 %v251
    %v1683 = vunpack.c.h.b16 %v251
    %v1684 = vunpack.c.l.b16 %v252
    %v1685 = vunpack.c.h.b16 %v252
    %v1686 = vunpack.c.l.b16 %v253
    %v1687 = vunpack.c.h.b16 %v253
    %v1688 = vunpack.c.l.b16 %v254
    %v1689 = vunpack.c.h.b16 %v254
    %v1690 = vunpack.c.l.b16 %v255
    %v1691 = vunpack.c.h.b16 %v255
    %v1692 = vunpack.c.l.b16 %v256
    %v1693 = vunpack.c.h.b16 %v256
    %v1694 = vunpack.c.l.b16 %v257
    %v1695 = vunpack.c.h.b16 %v257
    %v1696 = vunpack.c.l.b16 %v258
    %v1697 = vunpack.c.h.b16 %v258
    %v1698 = vunpack.c.l.b16 %v259
    %v1699 = vunpack.c.h.b16 %v259
    %v1700 = vunpack.c.l.b16 %v260
    %v1701 = vunpack.c.h.b16 %v260
    %v1702 = vunpack.c.l.b16 %v261
    %v1703 = vunpack.c.h.b16 %v261
    %v1704 = vunpack.c.l.b16 %v262
    %v1705 = vunpack.c.h.b16 %v262
    %v1706 = vunpack.c.l.b16 %v263
    %v1707 = vunpack.c.h.b16 %v263
    %v1708 = vunpack.c.l.b16 %v264
    %v1709 = vunpack.c.h.b16 %v264
    %v1710 = vunpack.c.l.b16 %v265
    %v1711 = vunpack.c.h.b16 %v265
    %v1712 = vunpack.c.l.b16 %v266
    %v1713 = vunpack.c.h.b16 %v266
    %v1714 = vunpack.c.l.b16 %v267
    %v1715 = vunpack.c.h.b16 %v267
    %v1716 = vunpack.c.l.b16 %v268
    %v1717 = vunpack.c.h.b16 %v268
    %v1718 = vunpack.c.l.b16 %v269
    %v1719 = vunpack.c.h.b16 %v269
    %v1720 = vunpack.c.l.b16 %v270
    %v1721 = vunpack.c.h.b16 %v270
    %v1722 = vunpack.c.l.b16 %v271
    %v1723 = vunpack.c.h.b16 %v271
    %v1724 = vunpack.c.l.b16 %v272
    %v1725 = vunpack.c.h.b16 %v272
    %v1726 = vunpack.c.l.b16 %v273
    %v1727 = vunpack.c.h.b16 %v273
    %v1728 = vunpack.c.l.b16 %v274
    %v1729 = vunpack.c.h.b16 %v274
    %v1730 = vunpack.c.l.b16 %v275
    %v1731 = vunpack.c.h.b16 %v275
    %v1732 = vunpack.c.l.b16 %v276
    %v1733 = vunpack.c.h.b16 %v276
    %v1734 = vunpack.c.l.b16 %v277
    %v1735 = vunpack.c.h.b16 %v277
    %v1736 = vunpack.c.l.b16 %v278
    %v1737 = vunpack.c.h.b16 %v278
    %v1738 = vunpack.c.l.b16 %v279
    %v1739 = vunpack.c.h.b16 %v279
    %v1740 = vunpack.c.l.b16 %v280
    %v1741 = vunpack.c.h.b16 %v280
    %v1742 = vunpack.c.l.b16 %v281
    %v1743 = vunpack.c.h.b16 %v281
    %v1744 = vunpack.c.l.b16 %v282
    %v1745 = vunpack.c.h.b16 %v282
    %v1746 = vunpack.c.l.b16 %v283
    %v1747 = vunpack.c.h.b16 %v283
    %v1748 = vunpack.c.l.b16 %v284
    %v1749 = vunpack.c.h.b16 %v284
    %v1750 = vunpack.c.l.b16 %v285
    %v1751 = vunpack.c.h.b16 %v285
    %v1752 = vunpack.c.l.b16 %v286
    %v1753 = vunpack.c.h.b16 %v286
    %v1754 = vunpack.c.l.b16 %v287
    %v1755 = vunpack.c.h.b16 %v287
    %v1756 = vunpack.c.l.b16 %v288
    %v1757 = vunpack.c.h.b16 %v288
    %v1758 = vunpack.c.l.b16 %v289
    %v1759 = vunpack.c.h.b16 %v289
    %v1760 = vunpack.c.l.b16 %v290
    %v1761 = vunpack.c.h.b16 %v290
    %v1762 = vunpack.c.l.b16 %v291
    %v1763 = vunpack.c.h.b16 %v291
    %v1764 = vunpack.c.l.b16 %v292
    %v1765 = vunpack.c.h.b16 %v292
    %v1766 = vunpack.c.l.b16 %v293
    %v1767 = vunpack.c.h.b16 %v293
    %v1768 = vunpack.c.l.b16 %v294
    %v1769 = vunpack.c.h.b16 %v294
    %v1770 = vunpack.c.l.b16 %v295
    %v1771 = vunpack.c.h.b16 %v295
    %v1772 = vunpack.c.l.b16 %v296
    %v1773 = vunpack.c.h.b16 %v296
    %v1774 = vunpack.c.l.b16 %v297
    %v1775 = vunpack.c.h.b16 %v297
    %v1776 = vunpack.c.l.b16 %v298
    %v1777 = vunpack.c.h.b16 %v298
    %v1778 = vunpack.c.l.b16 %v299
    %v1779 = vunpack.c.h.b16 %v299
    %v1780 = vunpack.c.l.b16 %v300
    %v1781 = vunpack.c.h.b16 %v300
    %v1782 = vunpack.c.l.b16 %v301
    %v1783 = vunpack.c.h.b16 %v301
    %v1784 = vunpack.c.l.b16 %v302
    %v1785 = vunpack.c.h.b16 %v302
    %v1786 = vunpack.c.l.b16 %v303
    %v1787 = vunpack.c.h.b16 %v303
    %v1788 = vunpack.c.l.b16 %v304
    %v1789 = vunpack.c.h.b16 %v304
    %v1790 = vunpack.c.l.b16 %v305
    %v1791 = vunpack.c.h.b16 %v305
    %v1792 = vunpack.c.l.b16 %v306
    %v1793 = vunpack.c.h.b16 %v306
    %v1794 = vunpack.c.l.b16 %v307
    %v1795 = vunpack.c.h.b16 %v307
    %v1796 = vunpack.c.l.b16 %v308
    %v1797 = vunpack.c.h.b16 %v308
    %v1798 = vunpack.c.l.b16 %v309
    %v1799 = vunpack.c.h.b16 %v309
    %v1800 = vunpack.c.l.b16 %v310
    %v1801 = vunpack.c.h.b16 %v310
    %v1802 = vunpack.c.l.b16 %v311
    %v1803 = vunpack.c.h.b16 %v311
    %v1804 = vunpack.c.l.b16 %v312
    %v1805 = vunpack.c.h.b16 %v312
    %v1806 = vunpack.c.l.b16 %v313
    %v1807 = vunpack.c.h.b16 %v313
    %v1808 = vunpack.c.l.b16 %v314
    %v1809 = vunpack.c.h.b16 %v314
    %v1810 = vunpack.c.l.b16 %v315
    %v1811 = vunpack.c.h.b16 %v315
    %v1812 = vunpack.c.l.b16 %v316
    %v1813 = vunpack.c.h.b16 %v316
    %v1814 = vunpack.c.l.b16 %v317
    %v1815 = vunpack.c.h.b16 %v317
    %v1816 = vunpack.c.l.b16 %v318
    %v1817 = vunpack.c.h.b16 %v318
    %v1818 = vunpack.c.l.b16 %v319
    %v1819 = vunpack.c.h.b16 %v319
    %v1820 = vunpack.c.l.b16 %v320
    %v1821 = vunpack.c.h.b16 %v320
    %v1822 = vunpack.c.l.b16 %v321
    %v1823 = vunpack.c.h.b16 %v321
    %v1824 = vunpack.c.l.b16 %v322
    %v1825 = vunpack.c.h.b16 %v322
    %v1826 = vunpack.c.l.b16 %v323
    %v1827 = vunpack.c.h.b16 %v323
    %v1828 = vunpack.c.l.b16 %v324
    %v1829 = vunpack.c.h.b16 %v324
    %v1830 = vunpack.c.l.b16 %v325
    %v1831 = vunpack.c.h.b16 %v325
    %v1832 = vunpack.c.l.b16 %v326
    %v1833 = vunpack.c.h.b16 %v326
    %v1834 = vunpack.c.l.b16 %v327
    %v1835 = vunpack.c.h.b16 %v327
    %v1836 = vunpack.c.l.b16 %v328
    %v1837 = vunpack.c.h.b16 %v328
    %v1838 = vunpack.c.l.b16 %v329
    %v1839 = vunpack.c.h.b16 %v329
    %v1840 = vunpack.c.l.b16 %v330
    %v1841 = vunpack.c.h.b16 %v330
    %v1842 = vunpack.c.l.b16 %v331
    %v1843 = vunpack.c.h.b16 %v331
    %v1844 = vunpack.c.l.b16 %v332
    %v1845 = vunpack.c.h.b16 %v332
    %v1846 = vunpack.c.l.b16 %v333
    %v1847 = vunpack.c.h.b16 %v333
    %v1848 = vunpack.c.l.b16 %v334
    %v1849 = vunpack.c.h.b16 %v334
    %v1850 = vunpack.c.l.b16 %v335
    %v1851 = vunpack.c.h.b16 %v335
    %v1852 = vunpack.c.l.b16 %v336
    %v1853 = vunpack.c.h.b16 %v336
    %v1854 = vunpack.c.l.b16 %v337
    %v1855 = vunpack.c.h.b16 %v337
    %v1856 = vunpack.c.l.b16 %v338
    %v1857 = vunpack.c.h.b16 %v338
    %v1858 = vunpack.c.l.b16 %v339
    %v1859 = vunpack.c.h.b16 %v339
    %v1860 = vunpack.c.l.b16 %v340
    %v1861 = vunpack.c.h.b16 %v340
    %v1862 = vunpack.c.l.b16 %v341
    %v1863 = vunpack.c.h.b16 %v341
    %v1864 = vunpack.c.l.b16 %v342
    %v1865 = vunpack.c.h.b16 %v342
    %v1866 = vunpack.c.l.b16 %v343
    %v1867 = vunpack.c.h.b16 %v343
    %v1868 = vunpack.c.l.b16 %v344
    %v1869 = vunpack.c.h.b16 %v344
    %v1870 = vunpack.c.l.b16 %v345
    %v1871 = vunpack.c.h.b16 %v345
    %v1872 = vunpack.c.l.b16 %v346
    %v1873 = vunpack.c.h.b16 %v346
    %v1874 = vunpack.c.l.b16 %v347
    %v1875 = vunpack.c.h.b16 %v347
    %v1876 = vunpack.c.l.b16 %v348
    %v1877 = vunpack.c.h.b16 %v348
    %v1878 = vunpack.c.l.b16 %v349
    %v1879 = vunpack.c.h.b16 %v349
    %v1880 = vunpack.c.l.b16 %v350
    %v1881 = vunpack.c.h.b16 %v350
    %v1882 = vunpack.c.l.b16 %v351
    %v1883 = vunpack.c.h.b16 %v351
    %v1884 = vunpack.c.l.b16 %v352
    %v1885 = vunpack.c.h.b16 %v352
    %v1886 = vunpack.c.l.b16 %v353
    %v1887 = vunpack.c.h.b16 %v353
    %v1888 = vunpack.c.l.b16 %v354
    %v1889 = vunpack.c.h.b16 %v354
    %v1890 = vunpack.c.l.b16 %v355
    %v1891 = vunpack.c.h.b16 %v355
    %v1892 = vunpack.c.l.b16 %v356
    %v1893 = vunpack.c.h.b16 %v356
    %v1894 = vunpack.c.l.b16 %v357
    %v1895 = vunpack.c.h.b16 %v357
    %v1896 = vunpack.c.l.b16 %v358
    %v1897 = vunpack.c.h.b16 %v358
    %v1898 = vunpack.c.l.b16 %v359
    %v1899 = vunpack.c.h.b16 %v359
    %v1900 = vunpack.c.l.b16 %v360
    %v1901 = vunpack.c.h.b16 %v360
    %v1902 = vunpack.c.l.b16 %v361
    %v1903 = vunpack.c.h.b16 %v361
    %v1904 = vunpack.c.l.b16 %v362
    %v1905 = vunpack.c.h.b16 %v362
    %v1906 = vunpack.c.l.b16 %v363
    %v1907 = vunpack.c.h.b16 %v363
    %v1908 = vunpack.c.l.b16 %v364
    %v1909 = vunpack.c.h.b16 %v364
    %v1910 = vunpack.c.l.b16 %v365
    %v1911 = vunpack.c.h.b16 %v365
    %v1912 = vunpack.c.l.b16 %v366
    %v1913 = vunpack.c.h.b16 %v366
    %v1914 = vunpack.c.l.b16 %v367
    %v1915 = vunpack.c.h.b16 %v367
    %v1916 = vunpack.c.l.b16 %v368
    %v1917 = vunpack.c.h.b16 %v368
    %v1918 = vunpack.c.l.b16 %v369
    %v1919 = vunpack.c.h.b16 %v369
    %v1920 = vunpack.c.l.b16 %v370
    %v1921 = vunpack.c.h.b16 %v370
    %v1922 = vunpack.c.l.b16 %v371
    %v1923 = vunpack.c.h.b16 %v371
    %v1924 = vunpack.c.l.b16 %v372
    %v1925 = vunpack.c.h.b16 %v372
    %v1926 = vunpack.c.l.b16 %v373
    %v1927 = vunpack.c.h.b16 %v373
    %v1928 = vunpack.c.l.b16 %v374
    %v1929 = vunpack.c.h.b16 %v374
    %v1930 = vunpack.c.l.b16 %v375
    %v1931 = vunpack.c.h.b16 %v375
    %v1932 = vunpack.c.l.b16 %v376
    %v1933 = vunpack.c.h.b16 %v376
    %v1934 = vunpack.c.l.b16 %v377
    %v1935 = vunpack.c.h.b16 %v377
    %v1936 = vunpack.c.l.b16 %v378
    %v1937 = vunpack.c.h.b16 %v378
    %v1938 = vunpack.c.l.b16 %v379
    %v1939 = vunpack.c.h.b16 %v379
    %v1940 = vunpack.c.l.b16 %v380
    %v1941 = vunpack.c.h.b16 %v380
    %v1942 = vunpack.c.l.b16 %v381
    %v1943 = vunpack.c.h.b16 %v381
    %v1944 = vunpack.c.l.b16 %v382
    %v1945 = vunpack.c.h.b16 %v382
    %v1946 = vunpack.c.l.b16 %v383
    %v1947 = vunpack.c.h.b16 %v383
    %v1948 = vunpack.c.l.b16 %v384
    %v1949 = vunpack.c.h.b16 %v384
    %v1950 = vunpack.c.l.b16 %v385
    %v1951 = vunpack.c.h.b16 %v385
    %v1952 = vunpack.c.l.b16 %v386
    %v1953 = vunpack.c.h.b16 %v386
    %v1954 = vunpack.c.l.b16 %v387
    %v1955 = vunpack.c.h.b16 %v387
    %v1956 = vunpack.c.l.b16 %v388
    %v1957 = vunpack.c.h.b16 %v388
    %v1958 = vunpack.c.l.b16 %v389
    %v1959 = vunpack.c.h.b16 %v389
    %v1960 = vunpack.c.l.b16 %v390
    %v1961 = vunpack.c.h.b16 %v390
    %v1962 = vunpack.c.l.b16 %v391
    %v1963 = vunpack.c.h.b16 %v391
    %v1964 = vunpack.c.l.b16 %v392
    %v1965 = vunpack.c.h.b16 %v392
    %v1966 = vunpack.c.l.b16 %v393
    %v1967 = vunpack.c.h.b16 %v393
    %v1968 = vunpack.c.l.b16 %v394
    %v1969 = vunpack.c.h.b16 %v394
    %v1970 = vunpack.c.l.b16 %v395
    %v1971 = vunpack.c.h.b16 %v395
    %v1972 = vunpack.c.l.b16 %v396
    %v1973 = vunpack.c.h.b16 %v396
    %v1974 = vunpack.c.l.b16 %v397
    %v1975 = vunpack.c.h.b16 %v397
    %v1976 = vunpack.c.l.b16 %v398
    %v1977 = vunpack.c.h.b16 %v398
    %v1978 = vunpack.c.l.b16 %v399
    %v1979 = vunpack.c.h.b16 %v399
    %v1980 = vunpack.c.l.b16 %v400
    %v1981 = vunpack.c.h.b16 %v400
    %v1982 = vunpack.c.l.b16 %v401
    %v1983 = vunpack.c.h.b16 %v401
    %v1984 = vunpack.c.l.b16 %v402
    %v1985 = vunpack.c.h.b16 %v402
    %v1986 = vunpack.c.l.b16 %v403
    %v1987 = vunpack.c.h.b16 %v403
    %v1988 = vunpack.c.l.b16 %v404
    %v1989 = vunpack.c.h.b16 %v404
    %v1990 = vunpack.c.l.b16 %v405
    %v1991 = vunpack.c.h.b16 %v405
    %v1992 = vunpack.c.l.b16 %v406
    %v1993 = vunpack.c.h.b16 %v406
    %v1994 = vunpack.c.l.b16 %v407
    %v1995 = vunpack.c.h.b16 %v407
    %v1996 = vunpack.c.l.b16 %v408
    %v1997 = vunpack.c.h.b16 %v408
    %v1998 = vunpack.c.l.b16 %v409
    %v1999 = vunpack.c.h.b16 %v409
    %v2000 = vunpack.c.l.b16 %v410
    %v2001 = vunpack.c.h.b16 %v410
    %v2002 = vunpack.c.l.b16 %v411
    %v2003 = vunpack.c.h.b16 %v411
    %v2004 = vunpack.c.l.b16 %v412
    %v2005 = vunpack.c.h.b16 %v412
    %v2006 = vunpack.c.l.b16 %v413
    %v2007 = vunpack.c.h.b16 %v413
    %v2008 = vunpack.c.l.b16 %v414
    %v2009 = vunpack.c.h.b16 %v414
    %v2010 = vunpack.c.l.b16 %v415
    %v2011 = vunpack.c.h.b16 %v415
    %v2012 = vunpack.c.l.b16 %v416
    %v2013 = vunpack.c.h.b16 %v416
    %v2014 = vunpack.c.l.b16 %v417
    %v2015 = vunpack.c.h.b16 %v417
    %v2016 = vunpack.c.l.b16 %v418
    %v2017 = vunpack.c.h.b16 %v418
    %v2018 = vunpack.c.l.b16 %v419
    %v2019 = vunpack.c.h.b16 %v419
    %v2020 = vunpack.c.l.b16 %v420
    %v2021 = vunpack.c.h.b16 %v420
    %v2022 = vunpack.c.l.b16 %v421
    %v2023 = vunpack.c.h.b16 %v421
    %v2024 = vunpack.c.l.b16 %v422
    %v2025 = vunpack.c.h.b16 %v422
    %v2026 = vunpack.c.l.b16 %v423
    %v2027 = vunpack.c.h.b16 %v423
    %v2028 = vunpack.c.l.b16 %v424
    %v2029 = vunpack.c.h.b16 %v424
    %v2030 = vunpack.c.l.b16 %v425
    %v2031 = vunpack.c.h.b16 %v425
    %v2032 = vunpack.c.l.b16 %v426
    %v2033 = vunpack.c.h.b16 %v426
    %v2034 = vunpack.c.l.b16 %v427
    %v2035 = vunpack.c.h.b16 %v427
    %v2036 = vunpack.c.l.b16 %v428
    %v2037 = vunpack.c.h.b16 %v428
    %v2038 = vunpack.c.l.b16 %v429
    %v2039 = vunpack.c.h.b16 %v429
    %v2040 = vunpack.c.l.b16 %v430
    %v2041 = vunpack.c.h.b16 %v430
    %v2042 = vunpack.c.l.b16 %v431
    %v2043 = vunpack.c.h.b16 %v431
    %v2044 = vunpack.c.l.b16 %v432
    %v2045 = vunpack.c.h.b16 %v432
    %v2046 = vunpack.c.l.b16 %v433
    %v2047 = vunpack.c.h.b16 %v433
    %v2048 = vunpack.c.l.b16 %v434
    %v2049 = vunpack.c.h.b16 %v434
    %v2050 = vunpack.c.l.b16 %v435
    %v2051 = vunpack.c.h.b16 %v435
    %v2052 = vunpack.c.l.b16 %v436
    %v2053 = vunpack.c.h.b16 %v436
    %v2054 = vunpack.c.l.b16 %v437
    %v2055 = vunpack.c.h.b16 %v437
    %v2056 = vunpack.c.l.b16 %v438
    %v2057 = vunpack.c.h.b16 %v438
    %v2058 = vunpack.c.l.b16 %v439
    %v2059 = vunpack.c.h.b16 %v439
    %v2060 = vunpack.c.l.b16 %v440
    %v2061 = vunpack.c.h.b16 %v440
    %v2062 = vunpack.c.l.b16 %v441
    %v2063 = vunpack.c.h.b16 %v441
    %v2064 = vunpack.c.l.b16 %v442
    %v2065 = vunpack.c.h.b16 %v442
    %v2066 = vunpack.c.l.b16 %v443
    %v2067 = vunpack.c.h.b16 %v443
    %v2068 = vunpack.c.l.b16 %v444
    %v2069 = vunpack.c.h.b16 %v444
    %v2070 = vunpack.c.l.b16 %v445
    %v2071 = vunpack.c.h.b16 %v445
    %v2072 = vunpack.c.l.b16 %v446
    %v2073 = vunpack.c.h.b16 %v446
    %v2074 = vunpack.c.l.b16 %v447
    %v2075 = vunpack.c.h.b16 %v447
    %v2076 = vunpack.c.l.b16 %v448
    %v2077 = vunpack.c.h.b16 %v448
    %v2078 = vunpack.c.l.b16 %v449
    %v2079 = vunpack.c.h.b16 %v449
    %v2080 = vunpack.c.l.b16 %v450
    %v2081 = vunpack.c.h.b16 %v450
    %v2082 = vunpack.c.l.b16 %v451
    %v2083 = vunpack.c.h.b16 %v451
    %v2084 = vunpack.c.l.b16 %v452
    %v2085 = vunpack.c.h.b16 %v452
    %v2086 = vunpack.c.l.b16 %v453
    %v2087 = vunpack.c.h.b16 %v453
    %v2088 = vunpack.c.l.b16 %v454
    %v2089 = vunpack.c.h.b16 %v454
    %v2090 = vunpack.c.l.b16 %v455
    %v2091 = vunpack.c.h.b16 %v455
    %v2092 = vunpack.c.l.b16 %v456
    %v2093 = vunpack.c.h.b16 %v456
    %v2094 = vunpack.c.l.b16 %v457
    %v2095 = vunpack.c.h.b16 %v457
    %v2096 = vunpack.c.l.b16 %v458
    %v2097 = vunpack.c.h.b16 %v458
    %v2098 = vunpack.c.l.b16 %v459
    %v2099 = vunpack.c.h.b16 %v459
    %v2100 = vunpack.c.l.b16 %v460
    %v2101 = vunpack.c.h.b16 %v460
    %v2102 = vunpack.c.l.b16 %v461
    %v2103 = vunpack.c.h.b16 %v461
    %v2104 = vunpack.c.l.b16 %v462
    %v2105 = vunpack.c.h.b16 %v462
    %v2106 = vunpack.c.l.b16 %v463
    %v2107 = vunpack.c.h.b16 %v463
    %v2108 = vunpack.c.l.b16 %v464
    %v2109 = vunpack.c.h.b16 %v464
    %v2110 = vunpack.c.l.b16 %v465
    %v2111 = vunpack.c.h.b16 %v465
    %v2112 = vunpack.c.l.b16 %v466
    %v2113 = vunpack.c.h.b16 %v466
    %v2114 = vunpack.c.l.b16 %v467
    %v2115 = vunpack.c.h.b16 %v467
    %v2116 = vunpack.c.l.b16 %v468
    %v2117 = vunpack.c.h.b16 %v468
    %v2118 = vunpack.c.l.b16 %v469
    %v2119 = vunpack.c.h.b16 %v469
    %v2120 = vunpack.c.l.b16 %v470
    %v2121 = vunpack.c.h.b16 %v470
    %v2122 = vunpack.c.l.b16 %v471
    %v2123 = vunpack.c.h.b16 %v471
    %v2124 = vunpack.c.l.b16 %v472
    %v2125 = vunpack.c.h.b16 %v472
    %v2126 = vunpack.c.l.b16 %v473
    %v2127 = vunpack.c.h.b16 %v473
    %v2128 = vunpack.c.l.b16 %v474
    %v2129 = vunpack.c.h.b16 %v474
    %v2130 = vunpack.c.l.b16 %v475
    %v2131 = vunpack.c.h.b16 %v475
    %v2132 = vunpack.c.l.b16 %v476
    %v2133 = vunpack.c.h.b16 %v476
    %v2134 = vunpack.c.l.b16 %v477
    %v2135 = vunpack.c.h.b16 %v477
    %v2136 = vunpack.c.l.b16 %v478
    %v2137 = vunpack.c.h.b16 %v478
    %v2138 = vunpack.c.l.b16 %v479
    %v2139 = vunpack.c.h.b16 %v479
    %v2140 = vunpack.c.l.b16 %v480
    %v2141 = vunpack.c.h.b16 %v480
    %v2142 = vunpack.c.l.b16 %v481
    %v2143 = vunpack.c.h.b16 %v481
    %v2144 = vunpack.c.l.b16 %v482
    %v2145 = vunpack.c.h.b16 %v482
    %v2146 = vunpack.c.l.b16 %v483
    %v2147 = vunpack.c.h.b16 %v483
    %v2148 = vunpack.c.l.b16 %v484
    %v2149 = vunpack.c.h.b16 %v484
    %v2150 = vunpack.c.l.b16 %v485
    %v2151 = vunpack.c.h.b16 %v485
    %v2152 = vunpack.c.l.b16 %v486
    %v2153 = vunpack.c.h.b16 %v486
    %v2154 = vunpack.c.l.b16 %v487
    %v2155 = vunpack.c.h.b16 %v487
    %v2156 = vunpack.c.l.b16 %v488
    %v2157 = vunpack.c.h.b16 %v488
    %v2158 = vunpack.c.l.b16 %v489
    %v2159 = vunpack.c.h.b16 %v489
    %v2160 = vunpack.c.l.b16 %v490
    %v2161 = vunpack.c.h.b16 %v490
    %v2162 = vunpack.c.l.b16 %v491
    %v2163 = vunpack.c.h.b16 %v491
    %v2164 = vunpack.c.l.b16 %v492
    %v2165 = vunpack.c.h.b16 %v492
    %v2166 = vunpack.c.l.b16 %v493
    %v2167 = vunpack.c.h.b16 %v493
    %v2168 = vunpack.c.l.b16 %v494
    %v2169 = vunpack.c.h.b16 %v494
    %v2170 = vunpack.c.l.b16 %v495
    %v2171 = vunpack.c.h.b16 %v495
    %v2172 = vunpack.c.l.b16 %v496
    %v2173 = vunpack.c.h.b16 %v496
    %v2174 = vunpack.c.l.b16 %v497
    %v2175 = vunpack.c.h.b16 %v497
    %v2176 = vunpack.c.l.b16 %v498
    %v2177 = vunpack.c.h.b16 %v498
    %v2178 = vunpack.c.l.b16 %v499
    %v2179 = vunpack.c.h.b16 %v499
    %v2180 = vunpack.c.l.b16 %v500
    %v2181 = vunpack.c.h.b16 %v500
    %v2182 = vunpack.c.l.b16 %v501
    %v2183 = vunpack.c.h.b16 %v501
    %v2184 = vunpack.c.l.b16 %v502
    %v2185 = vunpack.c.h.b16 %v502
    %v2186 = vunpack.c.l.b16 %v503
    %v2187 = vunpack.c.h.b16 %v503
    %v2188 = vunpack.c.l.b16 %v504
    %v2189 = vunpack.c.h.b16 %v504
    %v2190 = vunpack.c.l.b16 %v505
    %v2191 = vunpack.c.h.b16 %v505
    %v2192 = vunpack.c.l.b16 %v506
    %v2193 = vunpack.c.h.b16 %v506
    %v2194 = vunpack.c.l.b16 %v507
    %v2195 = vunpack.c.h.b16 %v507
    %v2196 = vunpack.c.l.b16 %v508
    %v2197 = vunpack.c.h.b16 %v508
    %v2198 = vunpack.c.l.b16 %v509
    %v2199 = vunpack.c.h.b16 %v509
    %v2200 = vunpack.c.l.b16 %v510
    %v2201 = vunpack.c.h.b16 %v510
    %v2202 = vunpack.c.l.b16 %v511
    %v2203 = vunpack.c.h.b16 %v511
    %v2204 = vunpack.c.l.b16 %v512
    %v2205 = vunpack.c.h.b16 %v512
    %v2206 = vunpack.c.l.b16 %v513
    %v2207 = vunpack.c.h.b16 %v513
    %v2208 = vunpack.c.l.b16 %v514
    %v2209 = vunpack.c.h.b16 %v514
    %v2210 = vunpack.c.l.b16 %v515
    %v2211 = vunpack.c.h.b16 %v515
    %v2212 = vunpack.c.l.b16 %v516
    %v2213 = vunpack.c.h.b16 %v516
    %v2214 = vunpack.c.l.b16 %v517
    %v2215 = vunpack.c.h.b16 %v517
    %v2216 = vunpack.c.l.b16 %v518
    %v2217 = vunpack.c.h.b16 %v518
    %v2218 = vunpack.c.l.b16 %v519
    %v2219 = vunpack.c.h.b16 %v519
    %v2220 = vunpack.c.l.b16 %v520
    %v2221 = vunpack.c.h.b16 %v520
    %v2222 = vunpack.c.l.b16 %v521
    %v2223 = vunpack.c.h.b16 %v521
    %v2224 = vunpack.c.l.b16 %v522
    %v2225 = vunpack.c.h.b16 %v522
    %v2226 = vunpack.c.l.b16 %v523
    %v2227 = vunpack.c.h.b16 %v523
    %v2228 = vunpack.c.l.b16 %v524
    %v2229 = vunpack.c.h.b16 %v524
    %v2230 = vunpack.c.l.b16 %v525
    %v2231 = vunpack.c.h.b16 %v525
    %v2232 = vunpack.c.l.b16 %v526
    %v2233 = vunpack.c.h.b16 %v526
    %v2234 = vunpack.c.l.b16 %v527
    %v2235 = vunpack.c.h.b16 %v527
    %v2236 = vunpack.c.l.b16 %v528
    %v2237 = vunpack.c.h.b16 %v528
    %v2238 = vunpack.c.l.b16 %v529
    %v2239 = vunpack.c.h.b16 %v529
    %v2240 = vunpack.c.l.b16 %v530
    %v2241 = vunpack.c.h.b16 %v530
    %v2242 = vunpack.c.l.b16 %v531
    %v2243 = vunpack.c.h.b16 %v531
    %v2244 = vunpack.c.l.b16 %v532
    %v2245 = vunpack.c.h.b16 %v532
    %v2246 = vunpack.c.l.b16 %v533
    %v2247 = vunpack.c.h.b16 %v533
    %v2248 = vunpack.c.l.b16 %v534
    %v2249 = vunpack.c.h.b16 %v534
    %v2250 = vunpack.c.l.b16 %v535
    %v2251 = vunpack.c.h.b16 %v535
    %v2252 = vunpack.c.l.b16 %v536
    %v2253 = vunpack.c.h.b16 %v536
    %v2254 = vunpack.c.l.b16 %v537
    %v2255 = vunpack.c.h.b16 %v537
    %v2256 = vunpack.c.l.b16 %v538
    %v2257 = vunpack.c.h.b16 %v538
    %v2258 = vunpack.c.l.b16 %v539
    %v2259 = vunpack.c.h.b16 %v539
    %v2260 = vunpack.c.l.b16 %v540
    %v2261 = vunpack.c.h.b16 %v540
    %v2262 = vunpack.c.l.b16 %v541
    %v2263 = vunpack.c.h.b16 %v541
    %v2264 = vunpack.c.l.b16 %v542
    %v2265 = vunpack.c.h.b16 %v542
    %v2266 = vunpack.c.l.b16 %v543
    %v2267 = vunpack.c.h.b16 %v543
    %v2268 = vunpack.c.l.b16 %v544
    %v2269 = vunpack.c.h.b16 %v544
    %v2270 = vunpack.c.l.b16 %v545
    %v2271 = vunpack.c.h.b16 %v545
    %v2272 = vunpack.c.l.b16 %v546
    %v2273 = vunpack.c.h.b16 %v546
    %v2274 = vunpack.c.l.b16 %v547
    %v2275 = vunpack.c.h.b16 %v547
    %v2276 = vunpack.c.l.b16 %v548
    %v2277 = vunpack.c.h.b16 %v548
    %v2278 = vunpack.c.l.b16 %v549
    %v2279 = vunpack.c.h.b16 %v549
    %v2280 = vunpack.c.l.b16 %v550
    %v2281 = vunpack.c.h.b16 %v550
    %v2282 = vunpack.c.l.b16 %v551
    %v2283 = vunpack.c.h.b16 %v551
    %v2284 = vunpack.c.l.b16 %v552
    %v2285 = vunpack.c.h.b16 %v552
    %v2286 = vunpack.c.l.b16 %v553
    %v2287 = vunpack.c.h.b16 %v553
    %v2288 = vunpack.c.l.b16 %v554
    %v2289 = vunpack.c.h.b16 %v554
    %v2290 = vunpack.c.l.b16 %v555
    %v2291 = vunpack.c.h.b16 %v555
    %v2292 = vunpack.c.l.b16 %v556
    %v2293 = vunpack.c.h.b16 %v556
    %v2294 = vunpack.c.l.b16 %v557
    %v2295 = vunpack.c.h.b16 %v557
    %v2296 = vunpack.c.l.b16 %v558
    %v2297 = vunpack.c.h.b16 %v558
    %v2298 = vunpack.c.l.b16 %v559
    %v2299 = vunpack.c.h.b16 %v559
    %v2300 = vunpack.c.l.b16 %v560
    %v2301 = vunpack.c.h.b16 %v560
    %v2302 = vunpack.c.l.b16 %v561
    %v2303 = vunpack.c.h.b16 %v561
    %v2304 = vunpack.c.l.b16 %v562
    %v2305 = vunpack.c.h.b16 %v562
    %v2306 = vunpack.c.l.b16 %v563
    %v2307 = vunpack.c.h.b16 %v563
    %v2308 = vunpack.c.l.b16 %v564
    %v2309 = vunpack.c.h.b16 %v564
    %v2310 = vunpack.c.l.b16 %v565
    %v2311 = vunpack.c.h.b16 %v565
    %v2312 = vunpack.c.l.b16 %v566
    %v2313 = vunpack.c.h.b16 %v566
    %v2314 = vunpack.c.l.b16 %v567
    %v2315 = vunpack.c.h.b16 %v567
    %v2316 = vunpack.c.l.b16 %v568
    %v2317 = vunpack.c.h.b16 %v568
    %v2318 = vunpack.c.l.b16 %v569
    %v2319 = vunpack.c.h.b16 %v569
    %v2320 = vunpack.c.l.b16 %v570
    %v2321 = vunpack.c.h.b16 %v570
    %v2322 = vunpack.c.l.b16 %v571
    %v2323 = vunpack.c.h.b16 %v571
    %v2324 = vunpack.c.l.b16 %v572
    %v2325 = vunpack.c.h.b16 %v572
    %v2326 = vunpack.c.l.b16 %v573
    %v2327 = vunpack.c.h.b16 %v573
    %v2328 = vunpack.c.l.b16 %v574
    %v2329 = vunpack.c.h.b16 %v574
    %v2330 = vunpack.c.l.b16 %v575
    %v2331 = vunpack.c.h.b16 %v575
    %v2332 = vunpack.c.l.b16 %v576
    %v2333 = vunpack.c.h.b16 %v576
    %v2334 = vunpack.c.l.b16 %v577
    %v2335 = vunpack.c.h.b16 %v577
    %v2336 = vunpack.c.l.b16 %v578
    %v2337 = vunpack.c.h.b16 %v578
    %v2338 = vunpack.c.l.b16 %v579
    %v2339 = vunpack.c.h.b16 %v579
    %v2340 = vunpack.c.l.b16 %v580
    %v2341 = vunpack.c.h.b16 %v580
    %v2342 = vunpack.c.l.b16 %v581
    %v2343 = vunpack.c.h.b16 %v581
    %v2344 = vunpack.c.l.b16 %v582
    %v2345 = vunpack.c.h.b16 %v582
    %v2346 = vunpack.c.l.b16 %v583
    %v2347 = vunpack.c.h.b16 %v583
    %v2348 = vunpack.c.l.b16 %v584
    %v2349 = vunpack.c.h.b16 %v584
    %v2350 = vunpack.c.l.b16 %v585
    %v2351 = vunpack.c.h.b16 %v585
    %v2352 = vunpack.c.l.b16 %v586
    %v2353 = vunpack.c.h.b16 %v586
    %v2354 = vunpack.c.l.b16 %v587
    %v2355 = vunpack.c.h.b16 %v587
    %v2356 = vunpack.c.l.b16 %v588
    %v2357 = vunpack.c.h.b16 %v588
    %v2358 = vunpack.c.l.b16 %v589
    %v2359 = vunpack.c.h.b16 %v589
    %v2360 = vunpack.c.l.b16 %v590
    %v2361 = vunpack.c.h.b16 %v590
    %v2362 = vunpack.c.l.b16 %v591
    %v2363 = vunpack.c.h.b16 %v591
    %v2364 = vunpack.c.l.b16 %v592
    %v2365 = vunpack.c.h.b16 %v592
    %v2366 = vunpack.c.l.b16 %v593
    %v2367 = vunpack.c.h.b16 %v593
    %v2368 = vunpack.c.l.b16 %v594
    %v2369 = vunpack.c.h.b16 %v594
    %v2370 = vunpack.c.l.b16 %v595
    %v2371 = vunpack.c.h.b16 %v595
    %v2372 = vunpack.c.l.b16 %v596
    %v2373 = vunpack.c.h.b16 %v596
    %v2374 = vunpack.c.l.b16 %v597
    %v2375 = vunpack.c.h.b16 %v597
    %v2376 = vunpack.c.l.b16 %v598
    %v2377 = vunpack.c.h.b16 %v598
    %v2378 = vunpack.c.l.b16 %v599
    %v2379 = vunpack.c.h.b16 %v599
    %v2380 = vpack.c.b16 %v1232, %v1228
    %v2381 = vpack.c.b16 %v1233, %v1229
    %v2382 = vpack.c.b16 %v1234, %v1230
    %v2383 = vpack.c.b16 %v1235, %v1231
    %v2384 = vpack.c.b16 %v1240, %v1236
    %v2385 = vpack.c.b16 %v1241, %v1237
    %v2386 = vpack.c.b16 %v1242, %v1238
    %v2387 = vpack.c.b16 %v1243, %v1239
    %v2388 = vpack.c.b16 %v1248, %v1244
    %v2389 = vpack.c.b16 %v1249, %v1245
    %v2390 = vpack.c.b16 %v1250, %v1246
    %v2391 = vpack.c.b16 %v1251, %v1247
    %v2392 = vpack.c.b16 %v1256, %v1252
    %v2393 = vpack.c.b16 %v1257, %v1253
    %v2394 = vpack.c.b16 %v1258, %v1254
    %v2395 = vpack.c.b16 %v1259, %v1255
    %v2396 = vpack.c.b16 %v1264, %v1260
    %v2397 = vpack.c.b16 %v1265, %v1261
    %v2398 = vpack.c.b16 %v1266, %v1262
    %v2399 = vpack.c.b16 %v1267, %v1263
    %v2400 = vpack.c.b16 %v1272, %v1268
    %v2401 = vpack.c.b16 %v1273, %v1269
    %v2402 = vpack.c.b16 %v1274, %v1270
    %v2403 = vpack.c.b16 %v1275, %v1271
    %v2404 = vpack.c.b16 %v1280, %v1276
    %v2405 = vpack.c.b16 %v1281, %v1277
    %v2406 = vpack.c.b16 %v1282, %v1278
    %v2407 = vpack.c.b16 %v1283, %v1279
    %v2408 = vpack.c.b16 %v1288, %v1284
    %v2409 = vpack.c.b16 %v1289, %v1285
    %v2410 = vpack.c.b16 %v1290, %v1286
    %v2411 = vpack.c.b16 %v1291, %v1287
    %v2412 = vpack.c.b16 %v1296, %v1292
    %v2413 = vpack.c.b16 %v1297, %v1293
    %v2414 = vpack.c.b16 %v1298, %v1294
    %v2415 = vpack.c.b16 %v1299, %v1295
    %v2416 = vpack.c.b16 %v1304, %v1300
    %v2417 = vpack.c.b16 %v1305, %v1301
    %v2418 = vpack.c.b16 %v1306, %v1302
    %v2419 = vpack.c.b16 %v1307, %v1303
    %v2420 = vpack.c.b16 %v1312, %v1308
    %v2421 = vpack.c.b16 %v1313, %v1309
    %v2422 = vpack.c.b16 %v1314, %v1310
    %v2423 = vpack.c.b16 %v1315, %v1311
    %v2424 = vpack.c.b16 %v1320, %v1316
    %v2425 = vpack.c.b16 %v1321, %v1317
    %v2426 = vpack.c.b16 %v1322, %v1318
    %v2427 = vpack.c.b16 %v1323, %v1319
    %v2428 = vpack.c.b16 %v1328, %v1324
    %v2429 = vpack.c.b16 %v1329, %v1325
    %v2430 = vpack.c.b16 %v1330, %v1326
    %v2431 = vpack.c.b16 %v1331, %v1327
    %v2432 = vpack.c.b16 %v1336, %v1332
    %v2433 = vpack.c.b16 %v1337, %v1333
    %v2434 = vpack.c.b16 %v1338, %v1334
    %v2435 = vpack.c.b16 %v1339, %v1335
    %v2436 = vpack.c.b16 %v1344, %v1340
    %v2437 = vpack.c.b16 %v1345, %v1341
    %v2438 = vpack.c.b16 %v1346, %v1342
    %v2439 = vpack.c.b16 %v1347, %v1343
    %v2440 = vpack.c.b16 %v1352, %v1348
    %v2441 = vpack.c.b16 %v1353, %v1349
    %v2442 = vpack.c.b16 %v1354, %v1350
    %v2443 = vpack.c.b16 %v1355, %v1351
    %v2444 = vpack.c.b16 %v1360, %v1356
    %v2445 = vpack.c.b16 %v1361, %v1357
    %v2446 = vpack.c.b16 %v1362, %v1358
    %v2447 = vpack.c.b16 %v1363, %v1359
    %v2448 = vpack.c.b16 %v1368, %v1364
    %v2449 = vpack.c.b16 %v1369, %v1365
    %v2450 = vpack.c.b16 %v1370, %v1366
    %v2451 = vpack.c.b16 %v1371, %v1367
    %v2452 = vpack.c.b16 %v1376, %v1372
    %v2453 = vpack.c.b16 %v1377, %v1373
    %v2454 = vpack.c.b16 %v1378, %v1374
    %v2455 = vpack.c.b16 %v1379, %v1375
    %v2456 = vpack.c.b16 %v1384, %v1380
    %v2457 = vpack.c.b16 %v1385, %v1381
    %v2458 = vpack.c.b16 %v1386, %v1382
    %v2459 = vpack.c.b16 %v1387, %v1383
    %v2460 = vpack.c.b16 %v1392, %v1388
    %v2461 = vpack.c.b16 %v1393, %v1389
    %v2462 = vpack.c.b16 %v1394, %v1390
    %v2463 = vpack.c.b16 %v1395, %v1391
    %v2464 = vpack.c.b16 %v1400, %v1396
    %v2465 = vpack.c.b16 %v1401, %v1397
    %v2466 = vpack.c.b16 %v1402, %v1398
    %v2467 = vpack.c.b16 %v1403, %v1399
    %v2468 = vpack.c.b16 %v1408, %v1404
    %v2469 = vpack.c.b16 %v1409, %v1405
    %v2470 = vpack.c.b16 %v1410, %v1406
    %v2471 = vpack.c.b16 %v1411, %v1407
    %v2472 = vpack.c.b16 %v1416, %v1412
    %v2473 = vpack.c.b16 %v1417, %v1413
    %v2474 = vpack.c.b16 %v1418, %v1414
    %v2475 = vpack.c.b16 %v1419, %v1415
    %v2476 = vpack.c.b16 %v1424, %v1420
    %v2477 = vpack.c.b16 %v1425, %v1421
    %v2478 = vpack.c.b16 %v1426, %v1422
    %v2479 = vpack.c.b16 %v1427, %v1423
    %v2480 = vpack.c.b16 %v1432, %v1428
    %v2481 = vpack.c.b16 %v1433, %v1429
    %v2482 = vpack.c.b16 %v1434, %v1430
    %v2483 = vpack.c.b16 %v1435, %v1431
    %v2484 = vpack.c.b16 %v1440, %v1436
    %v2485 = vpack.c.b16 %v1441, %v1437
    %v2486 = vpack.c.b16 %v1442, %v1438
    %v2487 = vpack.c.b16 %v1443, %v1439
    %v2488 = vpack.c.b16 %v1448, %v1444
    %v2489 = vpack.c.b16 %v1449, %v1445
    %v2490 = vpack.c.b16 %v1450, %v1446
    %v2491 = vpack.c.b16 %v1451, %v1447
    %v2492 = vpack.c.b16 %v1456, %v1452
    %v2493 = vpack.c.b16 %v1457, %v1453
    %v2494 = vpack.c.b16 %v1458, %v1454
    %v2495 = vpack.c.b16 %v1459, %v1455
    %v2496 = vpack.c.b16 %v1464, %v1460
    %v2497 = vpack.c.b16 %v1465, %v1461
    %v2498 = vpack.c.b16 %v1466, %v1462
    %v2499 = vpack.c.b16 %v1467, %v1463
    %v2500 = vpack.c.b16 %v1472, %v1468
    %v2501 = vpack.c.b16 %v1473, %v1469
    %v2502 = vpack.c.b16 %v1474, %v1470
    %v2503 = vpack.c.b16 %v1475, %v1471
    %v2504 = vpack.c.b16 %v1480, %v1476
    %v2505 = vpack.c.b16 %v1481, %v1477
    %v2506 = vpack.c.b16 %v1482, %v1478
    %v2507 = vpack.c.b16 %v1483, %v1479
    %v2508 = vpack.c.b16 %v1488, %v1484
    %v2509 = vpack.c.b16 %v1489, %v1485
    %v2510 = vpack.c.b16 %v1490, %v1486
    %v2511 = vpack.c.b16 %v1491, %v1487
    %v2512 = vpack.c.b16 %v1496, %v1492
    %v2513 = vpack.c.b16 %v1497, %v1493
    %v2514 = vpack.c.b16 %v1498, %v1494
    %v2515 = vpack.c.b16 %v1499, %v1495
    %v2516 = vpack.c.b16 %v1504, %v1500
    %v2517 = vpack.c.b16 %v1505, %v1501
    %v2518 = vpack.c.b16 %v1506, %v1502
    %v2519 = vpack.c.b16 %v1507, %v1503
    %v2520 = vpack.c.b16 %v1512, %v1508
    %v2521 = vpack.c.b16 %v1513, %v1509
    %v2522 = vpack.c.b16 %v1514, %v1510
    %v2523 = vpack.c.b16 %v1515, %v1511
    %v2524 = vpack.c.b16 %v1520, %v1516
    %v2525 = vpack.c.b16 %v1521, %v1517
    %v2526 = vpack.c.b16 %v1522, %v1518
    %v2527 = vpack.c.b16 %v1523, %v1519
    %v2528 = vpack.c.b16 %v1528, %v1524
    %v2529 = vpack.c.b16 %v1529, %v1525
    %v2530 = vpack.c.b16 %v1530, %v1526
    %v2531 = vpack.c.b16 %v1531, %v1527
    %v2532 = vpack.c.b16 %v1536, %v1532
    %v2533 = vpack.c.b16 %v1537, %v1533
    %v2534 = vpack.c.b16 %v1538, %v1534
    %v2535 = vpack.c.b16 %v1539, %v1535
    %v2536 = vpack.c.b16 %v1544, %v1540
    %v2537 = vpack.c.b16 %v1545, %v1541
    %v2538 = vpack.c.b16 %v1546, %v1542
    %v2539 = vpack.c.b16 %v1547, %v1543
    %v2540 = vpack.c.b16 %v1552, %v1548
    %v2541 = vpack.c.b16 %v1553, %v1549
    %v2542 = vpack.c.b16 %v1554, %v1550
    %v2543 = vpack.c.b16 %v1555, %v1551
    %v2544 = vpack.c.b16 %v1560, %v1556
    %v2545 = vpack.c.b16 %v1561, %v1557
    %v2546 = vpack.c.b16 %v1562, %v1558
    %v2547 = vpack.c.b16 %v1563, %v1559
    %v2548 = vpack.c.b16 %v1568, %v1564
    %v2549 = vpack.c.b16 %v1569, %v1565
    %v2550 = vpack.c.b16 %v1570, %v1566
    %v2551 = vpack.c.b16 %v1571, %v1567
    %v2552 = vpack.c.b16 %v1576, %v1572
    %v2553 = vpack.c.b16 %v1577, %v1573
    %v2554 = vpack.c.b16 %v1578, %v1574
    %v2555 = vpack.c.b16 %v1579, %v1575
    %v2556 = vpack.c.b16 %v1584, %v1580
    %v2557 = vpack.c.b16 %v1585, %v1581
    %v2558 = vpack.c.b16 %v1586, %v1582
    %v2559 = vpack.c.b16 %v1587, %v1583
    %v2560 = vpack.c.b16 %v1592, %v1588
    %v2561 = vpack.c.b16 %v1593, %v1589
    %v2562 = vpack.c.b16 %v1594, %v1590
    %v2563 = vpack.c.b16 %v1595, %v1591
    %v2564 = vpack.c.b16 %v1600, %v1596
    %v2565 = vpack.c.b16 %v1601, %v1597
    %v2566 = vpack.c.b16 %v1602, %v1598
    %v2567 = vpack.c.b16 %v1603, %v1599
    %v2568 = vpack.c.b16 %v1608, %v1604
    %v2569 = vpack.c.b16 %v1609, %v1605
    %v2570 = vpack.c.b16 %v1610, %v1606
    %v2571 = vpack.c.b16 %v1611, %v1607
    %v2572 = vpack.c.b16 %v1616, %v1612
    %v2573 = vpack.c.b16 %v1617, %v1613
    %v2574 = vpack.c.b16 %v1618, %v1614
    %v2575 = vpack.c.b16 %v1619, %v1615
    %v2576 = vpack.c.b16 %v1624, %v1620
    %v2577 = vpack.c.b16 %v1625, %v1621
    %v2578 = vpack.c.b16 %v1626, %v1622
    %v2579 = vpack.c.b16 %v1627, %v1623
    %v2580 = vpack.c.b16 %v1632, %v1628
    %v2581 = vpack.c.b16 %v1633, %v1629
    %v2582 = vpack.c.b16 %v1634, %v1630
    %v2583 = vpack.c.b16 %v1635, %v1631
    %v2584 = vpack.c.b16 %v1640, %v1636
    %v2585 = vpack.c.b16 %v1641, %v1637
    %v2586 = vpack.c.b16 %v1642, %v1638
    %v2587 = vpack.c.b16 %v1643, %v1639
    %v2588 = vpack.c.b16 %v1648, %v1644
    %v2589 = vpack.c.b16 %v1649, %v1645
    %v2590 = vpack.c.b16 %v1650, %v1646
    %v2591 = vpack.c.b16 %v1651, %v1647
    %v2592 = vpack.c.b16 %v1656, %v1652
    %v2593 = vpack.c.b16 %v1657, %v1653
    %v2594 = vpack.c.b16 %v1658, %v1654
    %v2595 = vpack.c.b16 %v1659, %v1655
    %v2596 = vpack.c.b16 %v1664, %v1660
    %v2597 = vpack.c.b16 %v1665, %v1661
    %v2598 = vpack.c.b16 %v1666, %v1662
    %v2599 = vpack.c.b16 %v1667, %v1663
    %v2600 = vpack.c.b16 %v1672, %v1668
    %v2601 = vpack.c.b16 %v1673, %v1669
    %v2602 = vpack.c.b16 %v1674, %v1670
    %v2603 = vpack.c.b16 %v1675, %v1671
    %v2604 = vpack.c.b16 %v1680, %v1676
    %v2605 = vpack.c.b16 %v1681, %v1677
    %v2606 = vpack.c.b16 %v1682, %v1678
    %v2607 = vpack.c.b16 %v1683, %v1679
    %v2608 = vpack.c.b16 %v1688, %v1684
    %v2609 = vpack.c.b16 %v1689, %v1685
    %v2610 = vpack.c.b16 %v1690, %v1686
    %v2611 = vpack.c.b16 %v1691, %v1687
    %v2612 = vpack.c.b16 %v1696, %v1692
    %v2613 = vpack.c.b16 %v1697, %v1693
    %v2614 = vpack.c.b16 %v1698, %v1694
    %v2615 = vpack.c.b16 %v1699, %v1695
    %v2616 = vpack.c.b16 %v1704, %v1700
    %v2617 = vpack.c.b16 %v1705, %v1701
    %v2618 = vpack.c.b16 %v1706, %v1702
    %v2619 = vpack.c.b16 %v1707, %v1703
    %v2620 = vpack.c.b16 %v1712, %v1708
    %v2621 = vpack.c.b16 %v1713, %v1709
    %v2622 = vpack.c.b16 %v1714, %v1710
    %v2623 = vpack.c.b16 %v1715, %v1711
    %v2624 = vpack.c.b16 %v1720, %v1716
    %v2625 = vpack.c.b16 %v1721, %v1717
    %v2626 = vpack.c.b16 %v1722, %v1718
    %v2627 = vpack.c.b16 %v1723, %v1719
    %v2628 = vpack.c.b16 %v1728, %v1724
    %v2629 = vpack.c.b16 %v1729, %v1725
    %v2630 = vpack.c.b16 %v1730, %v1726
    %v2631 = vpack.c.b16 %v1731, %v1727
    %v2632 = vpack.c.b16 %v1736, %v1732
    %v2633 = vpack.c.b16 %v1737, %v1733
    %v2634 = vpack.c.b16 %v1738, %v1734
    %v2635 = vpack.c.b16 %v1739, %v1735
    %v2636 = vpack.c.b16 %v1744, %v1740
    %v2637 = vpack.c.b16 %v1745, %v1741
    %v2638 = vpack.c.b16 %v1746, %v1742
    %v2639 = vpack.c.b16 %v1747, %v1743
    %v2640 = vpack.c.b16 %v1752, %v1748
    %v2641 = vpack.c.b16 %v1753, %v1749
    %v2642 = vpack.c.b16 %v1754, %v1750
    %v2643 = vpack.c.b16 %v1755, %v1751
    %v2644 = vpack.c.b16 %v1760, %v1756
    %v2645 = vpack.c.b16 %v1761, %v1757
    %v2646 = vpack.c.b16 %v1762, %v1758
    %v2647 = vpack.c.b16 %v1763, %v1759
    %v2648 = vpack.c.b16 %v1768, %v1764
    %v2649 = vpack.c.b16 %v1769, %v1765
    %v2650 = vpack.c.b16 %v1770, %v1766
    %v2651 = vpack.c.b16 %v1771, %v1767
    %v2652 = vpack.c.b16 %v1776, %v1772
    %v2653 = vpack.c.b16 %v1777, %v1773
    %v2654 = vpack.c.b16 %v1778, %v1774
    %v2655 = vpack.c.b16 %v1779, %v1775
    %v2656 = vpack.c.b16 %v1784, %v1780
    %v2657 = vpack.c.b16 %v1785, %v1781
    %v2658 = vpack.c.b16 %v1786, %v1782
    %v2659 = vpack.c.b16 %v1787, %v1783
    %v2660 = vpack.c.b16 %v1792, %v1788
    %v2661 = vpack.c.b16 %v1793, %v1789
    %v2662 = vpack.c.b16 %v1794, %v1790
    %v2663 = vpack.c.b16 %v1795, %v1791
    %v2664 = vpack.c.b16 %v1800, %v1796
    %v2665 = vpack.c.b16 %v1801, %v1797
    %v2666 = vpack.c.b16 %v1802, %v1798
    %v2667 = vpack.c.b16 %v1803, %v1799
    %v2668 = vpack.c.b16 %v1808, %v1804
    %v2669 = vpack.c.b16 %v1809, %v1805
    %v2670 = vpack.c.b16 %v1810, %v1806
    %v2671 = vpack.c.b16 %v1811, %v1807
    %v2672 = vpack.c.b16 %v1816, %v1812
    %v2673 = vpack.c.b16 %v1817, %v1813
    %v2674 = vpack.c.b16 %v1818, %v1814
    %v2675 = vpack.c.b16 %v1819, %v1815
    %v2676 = vpack.c.b16 %v1824, %v1820
    %v2677 = vpack.c.b16 %v1825, %v1821
    %v2678 = vpack.c.b16 %v1826, %v1822
    %v2679 = vpack.c.b16 %v1827, %v1823
    %v2680 = vpack.c.b16 %v1832, %v1828
    %v2681 = vpack.c.b16 %v1833, %v1829
    %v2682 = vpack.c.b16 %v1834, %v1830
    %v2683 = vpack.c.b16 %v1835, %v1831
    %v2684 = vpack.c.b16 %v1840, %v1836
    %v2685 = vpack.c.b16 %v1841, %v1837
    %v2686 = vpack.c.b16 %v1842, %v1838
    %v2687 = vpack.c.b16 %v1843, %v1839
    %v2688 = vpack.c.b16 %v1848, %v1844
    %v2689 = vpack.c.b16 %v1849, %v1845
    %v2690 = vpack.c.b16 %v1850, %v1846
    %v2691 = vpack.c.b16 %v1851, %v1847
    %v2692 = vpack.c.b16 %v1856, %v1852
    %v2693 = vpack.c.b16 %v1857, %v1853
    %v2694 = vpack.c.b16 %v1858, %v1854
    %v2695 = vpack.c.b16 %v1859, %v1855
    %v2696 = vpack.c.b16 %v1864, %v1860
    %v2697 = vpack.c.b16 %v1865, %v1861
    %v2698 = vpack.c.b16 %v1866, %v1862
    %v2699 = vpack.c.b16 %v1867, %v1863
    %v2700 = vpack.c.b16 %v1872, %v1868
    %v2701 = vpack.c.b16 %v1873, %v1869
    %v2702 = vpack.c.b16 %v1874, %v1870
    %v2703 = vpack.c.b16 %v1875, %v1871
    %v2704 = vpack.c.b16 %v1880, %v1876
    %v2705 = vpack.c.b16 %v1881, %v1877
    %v2706 = vpack.c.b16 %v1882, %v1878
    %v2707 = vpack.c.b16 %v1883, %v1879
    %v2708 = vpack.c.b16 %v1888, %v1884
    %v2709 = vpack.c.b16 %v1889, %v1885
    %v2710 = vpack.c.b16 %v1890, %v1886
    %v2711 = vpack.c.b16 %v1891, %v1887
    %v2712 = vpack.c.b16 %v1896, %v1892
    %v2713 = vpack.c.b16 %v1897, %v1893
    %v2714 = vpack.c.b16 %v1898, %v1894
    %v2715 = vpack.c.b16 %v1899, %v1895
    %v2716 = vpack.c.b16 %v1904, %v1900
    %v2717 = vpack.c.b16 %v1905, %v1901
    %v2718 = vpack.c.b16 %v1906, %v1902
    %v2719 = vpack.c.b16 %v1907, %v1903
    %v2720 = vpack.c.b16 %v1912, %v1908
    %v2721 = vpack.c.b16 %v1913, %v1909
    %v2722 = vpack.c.b16 %v1914, %v1910
    %v2723 = vpack.c.b16 %v1915, %v1911
    %v2724 = vpack.c.b16 %v1920, %v1916
    %v2725 = vpack.c.b16 %v1921, %v1917
    %v2726 = vpack.c.b16 %v1922, %v1918
    %v2727 = vpack.c.b16 %v1923, %v1919
    %v2728 = vpack.c.b16 %v1928, %v1924
    %v2729 = vpack.c.b16 %v1929, %v1925
    %v2730 = vpack.c.b16 %v1930, %v1926
    %v2731 = vpack.c.b16 %v1931, %v1927
    %v2732 = vpack.c.b16 %v1936, %v1932
    %v2733 = vpack.c.b16 %v1937, %v1933
    %v2734 = vpack.c.b16 %v1938, %v1934
    %v2735 = vpack.c.b16 %v1939, %v1935
    %v2736 = vpack.c.b16 %v1944, %v1940
    %v2737 = vpack.c.b16 %v1945, %v1941
    %v2738 = vpack.c.b16 %v1946, %v1942
    %v2739 = vpack.c.b16 %v1947, %v1943
    %v2740 = vpack.c.b16 %v1952, %v1948
    %v2741 = vpack.c.b16 %v1953, %v1949
    %v2742 = vpack.c.b16 %v1954, %v1950
    %v2743 = vpack.c.b16 %v1955, %v1951
    %v2744 = vpack.c.b16 %v1960, %v1956
    %v2745 = vpack.c.b16 %v1961, %v1957
    %v2746 = vpack.c.b16 %v1962, %v1958
    %v2747 = vpack.c.b16 %v1963, %v1959
    %v2748 = vpack.c.b16 %v1968, %v1964
    %v2749 = vpack.c.b16 %v1969, %v1965
    %v2750 = vpack.c.b16 %v1970, %v1966
    %v2751 = vpack.c.b16 %v1971, %v1967
    %v2752 = vpack.c.b16 %v1976, %v1972
    %v2753 = vpack.c.b16 %v1977, %v1973
    %v2754 = vpack.c.b16 %v1978, %v1974
    %v2755 = vpack.c.b16 %v1979, %v1975
    %v2756 = vpack.c.b16 %v1984, %v1980
    %v2757 = vpack.c.b16 %v1985, %v1981
    %v2758 = vpack.c.b16 %v1986, %v1982
    %v2759 = vpack.c.b16 %v1987, %v1983
    %v2760 = vpack.c.b16 %v1992, %v1988
    %v2761 = vpack.c.b16 %v1993, %v1989
    %v2762 = vpack.c.b16 %v1994, %v1990
    %v2763 = vpack.c.b16 %v1995, %v1991
    %v2764 = vpack.c.b16 %v2000, %v1996
    %v2765 = vpack.c.b16 %v2001, %v1997
    %v2766 = vpack.c.b16 %v2002, %v1998
    %v2767 = vpack.c.b16 %v2003, %v1999
    %v2768 = vpack.c.b16 %v2008, %v2004
    %v2769 = vpack.c.b16 %v2009, %v2005
    %v2770 = vpack.c.b16 %v2010, %v2006
    %v2771 = vpack.c.b16 %v2011, %v2007
    %v2772 = vpack.c.b16 %v2016, %v2012
    %v2773 = vpack.c.b16 %v2017, %v2013
    %v2774 = vpack.c.b16 %v2018, %v2014
    %v2775 = vpack.c.b16 %v2019, %v2015
    %v2776 = vpack.c.b16 %v2024, %v2020
    %v2777 = vpack.c.b16 %v2025, %v2021
    %v2778 = vpack.c.b16 %v2026, %v2022
    %v2779 = vpack.c.b16 %v2027, %v2023
    %v2780 = vpack.c.b16 %v2032, %v2028
    %v2781 = vpack.c.b16 %v2033, %v2029
    %v2782 = vpack.c.b16 %v2034, %v2030
    %v2783 = vpack.c.b16 %v2035, %v2031
    %v2784 = vpack.c.b16 %v2040, %v2036
    %v2785 = vpack.c.b16 %v2041, %v2037
    %v2786 = vpack.c.b16 %v2042, %v2038
    %v2787 = vpack.c.b16 %v2043, %v2039
    %v2788 = vpack.c.b16 %v2048, %v2044
    %v2789 = vpack.c.b16 %v2049, %v2045
    %v2790 = vpack.c.b16 %v2050, %v2046
    %v2791 = vpack.c.b16 %v2051, %v2047
    %v2792 = vpack.c.b16 %v2056, %v2052
    %v2793 = vpack.c.b16 %v2057, %v2053
    %v2794 = vpack.c.b16 %v2058, %v2054
    %v2795 = vpack.c.b16 %v2059, %v2055
    %v2796 = vpack.c.b16 %v2064, %v2060
    %v2797 = vpack.c.b16 %v2065, %v2061
    %v2798 = vpack.c.b16 %v2066, %v2062
    %v2799 = vpack.c.b16 %v2067, %v2063
    %v2800 = vpack.c.b16 %v2072, %v2068
    %v2801 = vpack.c.b16 %v2073, %v2069
    %v2802 = vpack.c.b16 %v2074, %v2070
    %v2803 = vpack.c.b16 %v2075, %v2071
    %v2804 = vpack.c.b16 %v2080, %v2076
    %v2805 = vpack.c.b16 %v2081, %v2077
    %v2806 = vpack.c.b16 %v2082, %v2078
    %v2807 = vpack.c.b16 %v2083, %v2079
    %v2808 = vpack.c.b16 %v2088, %v2084
    %v2809 = vpack.c.b16 %v2089, %v2085
    %v2810 = vpack.c.b16 %v2090, %v2086
    %v2811 = vpack.c.b16 %v2091, %v2087
    %v2812 = vpack.c.b16 %v2096, %v2092
    %v2813 = vpack.c.b16 %v2097, %v2093
    %v2814 = vpack.c.b16 %v2098, %v2094
    %v2815 = vpack.c.b16 %v2099, %v2095
    %v2816 = vpack.c.b16 %v2104, %v2100
    %v2817 = vpack.c.b16 %v2105, %v2101
    %v2818 = vpack.c.b16 %v2106, %v2102
    %v2819 = vpack.c.b16 %v2107, %v2103
    %v2820 = vpack.c.b16 %v2112, %v2108
    %v2821 = vpack.c.b16 %v2113, %v2109
    %v2822 = vpack.c.b16 %v2114, %v2110
    %v2823 = vpack.c.b16 %v2115, %v2111
    %v2824 = vpack.c.b16 %v2120, %v2116
    %v2825 = vpack.c.b16 %v2121, %v2117
    %v2826 = vpack.c.b16 %v2122, %v2118
    %v2827 = vpack.c.b16 %v2123, %v2119
    %v2828 = vpack.c.b16 %v2128, %v2124
    %v2829 = vpack.c.b16 %v2129, %v2125
    %v2830 = vpack.c.b16 %v2130, %v2126
    %v2831 = vpack.c.b16 %v2131, %v2127
    %v2832 = vpack.c.b16 %v2136, %v2132
    %v2833 = vpack.c.b16 %v2137, %v2133
    %v2834 = vpack.c.b16 %v2138, %v2134
    %v2835 = vpack.c.b16 %v2139, %v2135
    %v2836 = vpack.c.b16 %v2144, %v2140
    %v2837 = vpack.c.b16 %v2145, %v2141
    %v2838 = vpack.c.b16 %v2146, %v2142
    %v2839 = vpack.c.b16 %v2147, %v2143
    %v2840 = vpack.c.b16 %v2152, %v2148
    %v2841 = vpack.c.b16 %v2153, %v2149
    %v2842 = vpack.c.b16 %v2154, %v2150
    %v2843 = vpack.c.b16 %v2155, %v2151
    %v2844 = vpack.c.b16 %v2160, %v2156
    %v2845 = vpack.c.b16 %v2161, %v2157
    %v2846 = vpack.c.b16 %v2162, %v2158
    %v2847 = vpack.c.b16 %v2163, %v2159
    %v2848 = vpack.c.b16 %v2168, %v2164
    %v2849 = vpack.c.b16 %v2169, %v2165
    %v2850 = vpack.c.b16 %v2170, %v2166
    %v2851 = vpack.c.b16 %v2171, %v2167
    %v2852 = vpack.c.b16 %v2176, %v2172
    %v2853 = vpack.c.b16 %v2177, %v2173
    %v2854 = vpack.c.b16 %v2178, %v2174
    %v2855 = vpack.c.b16 %v2179, %v2175
    %v2856 = vpack.c.b16 %v2184, %v2180
    %v2857 = vpack.c.b16 %v2185, %v2181
    %v2858 = vpack.c.b16 %v2186, %v2182
    %v2859 = vpack.c.b16 %v2187, %v2183
    %v2860 = vpack.c.b16 %v2192, %v2188
    %v2861 = vpack.c.b16 %v2193, %v2189
    %v2862 = vpack.c.b16 %v2194, %v2190
    %v2863 = vpack.c.b16 %v2195, %v2191
    %v2864 = vpack.c.b16 %v2200, %v2196
    %v2865 = vpack.c.b16 %v2201, %v2197
    %v2866 = vpack.c.b16 %v2202, %v2198
    %v2867 = vpack.c.b16 %v2203, %v2199
    %v2868 = vpack.c.b16 %v2208, %v2204
    %v2869 = vpack.c.b16 %v2209, %v2205
    %v2870 = vpack.c.b16 %v2210, %v2206
    %v2871 = vpack.c.b16 %v2211, %v2207
    %v2872 = vpack.c.b16 %v2216, %v2212
    %v2873 = vpack.c.b16 %v2217, %v2213
    %v2874 = vpack.c.b16 %v2218, %v2214
    %v2875 = vpack.c.b16 %v2219, %v2215
    %v2876 = vpack.c.b16 %v2224, %v2220
    %v2877 = vpack.c.b16 %v2225, %v2221
    %v2878 = vpack.c.b16 %v2226, %v2222
    %v2879 = vpack.c.b16 %v2227, %v2223
    %v2880 = vpack.c.b16 %v2232, %v2228
    %v2881 = vpack.c.b16 %v2233, %v2229
    %v2882 = vpack.c.b16 %v2234, %v2230
    %v2883 = vpack.c.b16 %v2235, %v2231
    %v2884 = vpack.c.b16 %v2240, %v2236
    %v2885 = vpack.c.b16 %v2241, %v2237
    %v2886 = vpack.c.b16 %v2242, %v2238
    %v2887 = vpack.c.b16 %v2243, %v2239
    %v2888 = vpack.c.b16 %v2248, %v2244
    %v2889 = vpack.c.b16 %v2249, %v2245
    %v2890 = vpack.c.b16 %v2250, %v2246
    %v2891 = vpack.c.b16 %v2251, %v2247
    %v2892 = vpack.c.b16 %v2256, %v2252
    %v2893 = vpack.c.b16 %v2257, %v2253
    %v2894 = vpack.c.b16 %v2258, %v2254
    %v2895 = vpack.c.b16 %v2259, %v2255
    %v2896 = vpack.c.b16 %v2264, %v2260
    %v2897 = vpack.c.b16 %v2265, %v2261
    %v2898 = vpack.c.b16 %v2266, %v2262
    %v2899 = vpack.c.b16 %v2267, %v2263
    %v2900 = vpack.c.b16 %v2272, %v2268
    %v2901 = vpack.c.b16 %v2273, %v2269
    %v2902 = vpack.c.b16 %v2274, %v2270
    %v2903 = vpack.c.b16 %v2275, %v2271
    %v2904 = vpack.c.b16 %v2280, %v2276
    %v2905 = vpack.c.b16 %v2281, %v2277
    %v2906 = vpack.c.b16 %v2282, %v2278
    %v2907 = vpack.c.b16 %v2283, %v2279
    %v2908 = vpack.c.b16 %v2288, %v2284
    %v2909 = vpack.c.b16 %v2289, %v2285
    %v2910 = vpack.c.b16 %v2290, %v2286
    %v2911 = vpack.c.b16 %v2291, %v2287
    %v2912 = vpack.c.b16 %v2296, %v2292
    %v2913 = vpack.c.b16 %v2297, %v2293
    %v2914 = vpack.c.b16 %v2298, %v2294
    %v2915 = vpack.c.b16 %v2299, %v2295
    %v2916 = vpack.c.b16 %v2304, %v2300
    %v2917 = vpack.c.b16 %v2305, %v2301
    %v2918 = vpack.c.b16 %v2306, %v2302
    %v2919 = vpack.c.b16 %v2307, %v2303
    %v2920 = vpack.c.b16 %v2312, %v2308
    %v2921 = vpack.c.b16 %v2313, %v2309
    %v2922 = vpack.c.b16 %v2314, %v2310
    %v2923 = vpack.c.b16 %v2315, %v2311
    %v2924 = vpack.c.b16 %v2320, %v2316
    %v2925 = vpack.c.b16 %v2321, %v2317
    %v2926 = vpack.c.b16 %v2322, %v2318
    %v2927 = vpack.c.b16 %v2323, %v2319
    %v2928 = vpack.c.b16 %v2328, %v2324
    %v2929 = vpack.c.b16 %v2329, %v2325
    %v2930 = vpack.c.b16 %v2330, %v2326
    %v2931 = vpack.c.b16 %v2331, %v2327
    %v2932 = vpack.c.b16 %v2336, %v2332
    %v2933 = vpack.c.b16 %v2337, %v2333
    %v2934 = vpack.c.b16 %v2338, %v2334
    %v2935 = vpack.c.b16 %v2339, %v2335
    %v2936 = vpack.c.b16 %v2344, %v2340
    %v2937 = vpack.c.b16 %v2345, %v2341
    %v2938 = vpack.c.b16 %v2346, %v2342
    %v2939 = vpack.c.b16 %v2347, %v2343
    %v2940 = vpack.c.b16 %v2352, %v2348
    %v2941 = vpack.c.b16 %v2353, %v2349
    %v2942 = vpack.c.b16 %v2354, %v2350
    %v2943 = vpack.c.b16 %v2355, %v2351
    %v2944 = vpack.c.b16 %v2360, %v2356
    %v2945 = vpack.c.b16 %v2361, %v2357
    %v2946 = vpack.c.b16 %v2362, %v2358
    %v2947 = vpack.c.b16 %v2363, %v2359
    %v2948 = vpack.c.b16 %v2368, %v2364
    %v2949 = vpack.c.b16 %v2369, %v2365
    %v2950 = vpack.c.b16 %v2370, %v2366
    %v2951 = vpack.c.b16 %v2371, %v2367
    %v2952 = vpack.c.b16 %v2376, %v2372
    %v2953 = vpack.c.b16 %v2377, %v2373
    %v2954 = vpack.c.b16 %v2378, %v2374
    %v2955 = vpack.c.b16 %v2379, %v2375
    %3532 = vmatpush.bf16.msra.mxu0 %v2408
    %3533 = vmatpush.bf16.msra.mxu0 %v2404
    %3534 = vmatpush.bf16.msra.mxu0 %v2400
    %3535 = vmatpush.bf16.msra.mxu0 %v2396
    %3536 = vmatpush.bf16.msra.mxu0 %v2392
    %3537 = vmatpush.bf16.msra.mxu0 %v2388
    %3538 = vmatpush.bf16.msra.mxu0 %v2384
    %3539 = vmatpush.bf16.msra.mxu0 %v2380
    %3540 = vmatmul.bf16.gmra.mxu0 %v612
    %v3541 = vpop.f32.mrf.mxu0
    %v3542 = vadd.f32 %v602, %v3541
    %v3543 = vpop.f32.mrf.mxu0
    %3544 = vdwg.mxu0
    %3545 = vmatpush.bf16.msra.mxu0 %v2440
    %3546 = vmatpush.bf16.msra.mxu0 %v2436
    %3547 = vmatpush.bf16.msra.mxu0 %v2432
    %3548 = vmatpush.bf16.msra.mxu0 %v2428
    %3549 = vmatpush.bf16.msra.mxu0 %v2424
    %3550 = vmatpush.bf16.msra.mxu0 %v2420
    %3551 = vmatpush.bf16.msra.mxu0 %v2416
    %3552 = vmatpush.bf16.msra.mxu0 %v2412
    %3553 = vmatmul.bf16.gmra.mxu0 %v613
    %v3554 = vpop.f32.mrf.mxu0
    %v3555 = vadd.f32 %v3542, %v3554
    %v3556 = vpop.f32.mrf.mxu0
    %3557 = vdwg.mxu0
    %3558 = vmatpush.bf16.msra.mxu0 %v2472
    %3559 = vmatpush.bf16.msra.mxu0 %v2468
    %3560 = vmatpush.bf16.msra.mxu0 %v2464
    %3561 = vmatpush.bf16.msra.mxu0 %v2460
    %3562 = vmatpush.bf16.msra.mxu0 %v2456
    %3563 = vmatpush.bf16.msra.mxu0 %v2452
    %3564 = vmatpush.bf16.msra.mxu0 %v2448
    %3565 = vmatpush.bf16.msra.mxu0 %v2444
    %3566 = vmatmul.bf16.gmra.mxu0 %v614
    %v3567 = vpop.f32.mrf.mxu0
    %v3568 = vadd.f32 %v3555, %v3567
    %v3569 = vpop.f32.mrf.mxu0
    %3570 = vdwg.mxu0
    %3571 = vmatpush.bf16.msra.mxu0 %v2504
    %3572 = vmatpush.bf16.msra.mxu0 %v2500
    %3573 = vmatpush.bf16.msra.mxu0 %v2496
    %3574 = vmatpush.bf16.msra.mxu0 %v2492
    %3575 = vmatpush.bf16.msra.mxu0 %v2488
    %3576 = vmatpush.bf16.msra.mxu0 %v2484
    %3577 = vmatpush.bf16.msra.mxu0 %v2480
    %3578 = vmatpush.bf16.msra.mxu0 %v2476
    %3579 = vmatmul.bf16.gmra.mxu0 %v615
    %v3580 = vpop.f32.mrf.mxu0
    %v3581 = vadd.f32 %v3568, %v3580
    %v3582 = vpop.f32.mrf.mxu0
    %3583 = vdwg.mxu0
    %3584 = vmatpush.bf16.msra.mxu0 %v2536
    %3585 = vmatpush.bf16.msra.mxu0 %v2532
    %3586 = vmatpush.bf16.msra.mxu0 %v2528
    %3587 = vmatpush.bf16.msra.mxu0 %v2524
    %3588 = vmatpush.bf16.msra.mxu0 %v2520
    %3589 = vmatpush.bf16.msra.mxu0 %v2516
    %3590 = vmatpush.bf16.msra.mxu0 %v2512
    %3591 = vmatpush.bf16.msra.mxu0 %v2508
    %3592 = vmatmul.bf16.gmra.mxu0 %v616
    %v3593 = vpop.f32.mrf.mxu0
    %v3594 = vadd.f32 %v3581, %v3593
    %v3595 = vpop.f32.mrf.mxu0
    %3596 = vdwg.mxu0
    %3597 = vmatpush.bf16.msra.mxu0 %v2568
    %3598 = vmatpush.bf16.msra.mxu0 %v2564
    %3599 = vmatpush.bf16.msra.mxu0 %v2560
    %3600 = vmatpush.bf16.msra.mxu0 %v2556
    %3601 = vmatpush.bf16.msra.mxu0 %v2552
    %3602 = vmatpush.bf16.msra.mxu0 %v2548
    %3603 = vmatpush.bf16.msra.mxu0 %v2544
    %3604 = vmatpush.bf16.msra.mxu0 %v2540
    %3605 = vmatmul.bf16.gmra.mxu0 %v617
    %v3606 = vpop.f32.mrf.mxu0
    %v3607 = vadd.f32 %v3594, %v3606
    %v3608 = vpop.f32.mrf.mxu0
    %3609 = vdwg.mxu0
    %3610 = vmatpush.bf16.msra.mxu0 %v2600
    %3611 = vmatpush.bf16.msra.mxu0 %v2596
    %3612 = vmatpush.bf16.msra.mxu0 %v2592
    %3613 = vmatpush.bf16.msra.mxu0 %v2588
    %3614 = vmatpush.bf16.msra.mxu0 %v2584
    %3615 = vmatpush.bf16.msra.mxu0 %v2580
    %3616 = vmatpush.bf16.msra.mxu0 %v2576
    %3617 = vmatpush.bf16.msra.mxu0 %v2572
    %3618 = vmatmul.bf16.gmra.mxu0 %v618
    %v3619 = vpop.f32.mrf.mxu0
    %v3620 = vadd.f32 %v3607, %v3619
    %v3621 = vpop.f32.mrf.mxu0
    %3622 = vdwg.mxu0
    %3623 = vmatpush.bf16.msra.mxu0 %v2632
    %3624 = vmatpush.bf16.msra.mxu0 %v2628
    %3625 = vmatpush.bf16.msra.mxu0 %v2624
    %3626 = vmatpush.bf16.msra.mxu0 %v2620
    %3627 = vmatpush.bf16.msra.mxu0 %v2616
    %3628 = vmatpush.bf16.msra.mxu0 %v2612
    %3629 = vmatpush.bf16.msra.mxu0 %v2608
    %3630 = vmatpush.bf16.msra.mxu0 %v2604
    %3631 = vmatmul.bf16.gmra.mxu0 %v619
    %v3632 = vpop.f32.mrf.mxu0
    %v3633 = vadd.f32 %v3620, %v3632
    %v3634 = vpop.f32.mrf.mxu0
    %3635 = vdwg.mxu0
    %3636 = vmatpush.bf16.msra.mxu0 %v2664
    %3637 = vmatpush.bf16.msra.mxu0 %v2660
    %3638 = vmatpush.bf16.msra.mxu0 %v2656
    %3639 = vmatpush.bf16.msra.mxu0 %v2652
    %3640 = vmatpush.bf16.msra.mxu0 %v2648
    %3641 = vmatpush.bf16.msra.mxu0 %v2644
    %3642 = vmatpush.bf16.msra.mxu0 %v2640
    %3643 = vmatpush.bf16.msra.mxu0 %v2636
    %3644 = vmatmul.bf16.gmra.mxu0 %v622
    %v3645 = vpop.f32.mrf.mxu0
    %v3646 = vadd.f32 %v3633, %v3645
    %v3647 = vpop.f32.mrf.mxu0
    %3648 = vdwg.mxu0
    %3649 = vmatpush.bf16.msra.mxu0 %v2696
    %3650 = vmatpush.bf16.msra.mxu0 %v2692
    %3651 = vmatpush.bf16.msra.mxu0 %v2688
    %3652 = vmatpush.bf16.msra.mxu0 %v2684
    %3653 = vmatpush.bf16.msra.mxu0 %v2680
    %3654 = vmatpush.bf16.msra.mxu0 %v2676
    %3655 = vmatpush.bf16.msra.mxu0 %v2672
    %3656 = vmatpush.bf16.msra.mxu0 %v2668
    %3657 = vmatmul.bf16.gmra.mxu0 %v623
    %v3658 = vpop.f32.mrf.mxu0
    %v3659 = vadd.f32 %v3646, %v3658
    %v3660 = vpop.f32.mrf.mxu0
    %3661 = vdwg.mxu0
    %3662 = vmatpush.bf16.msra.mxu0 %v2728
    %3663 = vmatpush.bf16.msra.mxu0 %v2724
    %3664 = vmatpush.bf16.msra.mxu0 %v2720
    %3665 = vmatpush.bf16.msra.mxu0 %v2716
    %3666 = vmatpush.bf16.msra.mxu0 %v2712
    %3667 = vmatpush.bf16.msra.mxu0 %v2708
    %3668 = vmatpush.bf16.msra.mxu0 %v2704
    %3669 = vmatpush.bf16.msra.mxu0 %v2700
    %3670 = vmatmul.bf16.gmra.mxu0 %v624
    %v3671 = vpop.f32.mrf.mxu0
    %v3672 = vadd.f32 %v3659, %v3671
    %v3673 = vpop.f32.mrf.mxu0
    %3674 = vdwg.mxu0
    %3675 = vmatpush.bf16.msra.mxu0 %v2760
    %3676 = vmatpush.bf16.msra.mxu0 %v2756
    %3677 = vmatpush.bf16.msra.mxu0 %v2752
    %3678 = vmatpush.bf16.msra.mxu0 %v2748
    %3679 = vmatpush.bf16.msra.mxu0 %v2744
    %3680 = vmatpush.bf16.msra.mxu0 %v2740
    %3681 = vmatpush.bf16.msra.mxu0 %v2736
    %3682 = vmatpush.bf16.msra.mxu0 %v2732
    %3683 = vmatmul.bf16.gmra.mxu0 %v625
    %v3684 = vpop.f32.mrf.mxu0
    %v3685 = vadd.f32 %v3672, %v3684
    %v3686 = vpop.f32.mrf.mxu0
    %3687 = vdwg.mxu0
    %3688 = vmatpush.bf16.msra.mxu0 %v2792
    %3689 = vmatpush.bf16.msra.mxu0 %v2788
    %3690 = vmatpush.bf16.msra.mxu0 %v2784
    %3691 = vmatpush.bf16.msra.mxu0 %v2780
    %3692 = vmatpush.bf16.msra.mxu0 %v2776
    %3693 = vmatpush.bf16.msra.mxu0 %v2772
    %3694 = vmatpush.bf16.msra.mxu0 %v2768
    %3695 = vmatpush.bf16.msra.mxu0 %v2764
    %3696 = vmatmul.bf16.gmra.mxu0 %v626
    %v3697 = vpop.f32.mrf.mxu0
    %v3698 = vadd.f32 %v3685, %v3697
    %v3699 = vpop.f32.mrf.mxu0
    %3700 = vdwg.mxu0
    %3701 = vmatpush.bf16.msra.mxu0 %v2824
    %3702 = vmatpush.bf16.msra.mxu0 %v2820
    %3703 = vmatpush.bf16.msra.mxu0 %v2816
    %3704 = vmatpush.bf16.msra.mxu0 %v2812
    %3705 = vmatpush.bf16.msra.mxu0 %v2808
    %3706 = vmatpush.bf16.msra.mxu0 %v2804
    %3707 = vmatpush.bf16.msra.mxu0 %v2800
    %3708 = vmatpush.bf16.msra.mxu0 %v2796
    %3709 = vmatmul.bf16.gmra.mxu0 %v627
    %v3710 = vpop.f32.mrf.mxu0
    %v3711 = vadd.f32 %v3698, %v3710
    %v3712 = vpop.f32.mrf.mxu0
    %3713 = vdwg.mxu0
    %3714 = vmatpush.bf16.msra.mxu0 %v2856
    %3715 = vmatpush.bf16.msra.mxu0 %v2852
    %3716 = vmatpush.bf16.msra.mxu0 %v2848
    %3717 = vmatpush.bf16.msra.mxu0 %v2844
    %3718 = vmatpush.bf16.msra.mxu0 %v2840
    %3719 = vmatpush.bf16.msra.mxu0 %v2836
    %3720 = vmatpush.bf16.msra.mxu0 %v2832
    %3721 = vmatpush.bf16.msra.mxu0 %v2828
    %3722 = vmatmul.bf16.gmra.mxu0 %v628
    %v3723 = vpop.f32.mrf.mxu0
    %v3724 = vadd.f32 %v3711, %v3723
    %v3725 = vpop.f32.mrf.mxu0
    %3726 = vdwg.mxu0
    %3727 = vmatpush.bf16.msra.mxu0 %v2888
    %3728 = vmatpush.bf16.msra.mxu0 %v2884
    %3729 = vmatpush.bf16.msra.mxu0 %v2880
    %3730 = vmatpush.bf16.msra.mxu0 %v2876
    %3731 = vmatpush.bf16.msra.mxu0 %v2872
    %3732 = vmatpush.bf16.msra.mxu0 %v2868
    %3733 = vmatpush.bf16.msra.mxu0 %v2864
    %3734 = vmatpush.bf16.msra.mxu0 %v2860
    %3735 = vmatmul.bf16.gmra.mxu0 %v629
    %v3736 = vpop.f32.mrf.mxu0
    %v3737 = vadd.f32 %v3724, %v3736
    %v3738 = vpop.f32.mrf.mxu0
    %3739 = vdwg.mxu0
    %3740 = vmatpush.bf16.msra.mxu0 %v2920
    %3741 = vmatpush.bf16.msra.mxu0 %v2916
    %3742 = vmatpush.bf16.msra.mxu0 %v2912
    %3743 = vmatpush.bf16.msra.mxu0 %v2908
    %3744 = vmatpush.bf16.msra.mxu0 %v2904
    %3745 = vmatpush.bf16.msra.mxu0 %v2900
    %3746 = vmatpush.bf16.msra.mxu0 %v2896
    %3747 = vmatpush.bf16.msra.mxu0 %v2892
    %3748 = vmatmul.bf16.gmra.mxu0 %v632
    %v3749 = vpop.f32.mrf.mxu0
    %v3750 = vadd.f32 %v3737, %v3749
    %v3751 = vpop.f32.mrf.mxu0
    %3752 = vdwg.mxu0
    %3753 = vmatpush.bf16.msra.mxu0 %v2952
    %3754 = vmatpush.bf16.msra.mxu0 %v2948
    %3755 = vmatpush.bf16.msra.mxu0 %v2944
    %3756 = vmatpush.bf16.msra.mxu0 %v2940
    %3757 = vmatpush.bf16.msra.mxu0 %v2936
    %3758 = vmatpush.bf16.msra.mxu0 %v2932
    %3759 = vmatpush.bf16.msra.mxu0 %v2928
    %3760 = vmatpush.bf16.msra.mxu0 %v2924
    %3761 = vmatmul.bf16.gmra.mxu0 %v633
    %v3762 = vpop.f32.mrf.mxu0
    %v3763 = vadd.f32 %v3750, %v3762
    %v3764 = vpop.f32.mrf.mxu0
    %3765 = vdwg.mxu0
    %3766 = vmatpush.bf16.msra.mxu0 %v2409
    %3767 = vmatpush.bf16.msra.mxu0 %v2405
    %3768 = vmatpush.bf16.msra.mxu0 %v2401
    %3769 = vmatpush.bf16.msra.mxu0 %v2397
    %3770 = vmatpush.bf16.msra.mxu0 %v2393
    %3771 = vmatpush.bf16.msra.mxu0 %v2389
    %3772 = vmatpush.bf16.msra.mxu0 %v2385
    %3773 = vmatpush.bf16.msra.mxu0 %v2381
    %3774 = vmatmul.bf16.gmra.mxu0 %v612
    %v3775 = vpop.f32.mrf.mxu0
    %v3776 = vadd.f32 %v603, %v3775
    %v3777 = vpop.f32.mrf.mxu0
    %3778 = vdwg.mxu0
    %3779 = vmatpush.bf16.msra.mxu0 %v2441
    %3780 = vmatpush.bf16.msra.mxu0 %v2437
    %3781 = vmatpush.bf16.msra.mxu0 %v2433
    %3782 = vmatpush.bf16.msra.mxu0 %v2429
    %3783 = vmatpush.bf16.msra.mxu0 %v2425
    %3784 = vmatpush.bf16.msra.mxu0 %v2421
    %3785 = vmatpush.bf16.msra.mxu0 %v2417
    %3786 = vmatpush.bf16.msra.mxu0 %v2413
    %3787 = vmatmul.bf16.gmra.mxu0 %v613
    %v3788 = vpop.f32.mrf.mxu0
    %v3789 = vadd.f32 %v3776, %v3788
    %v3790 = vpop.f32.mrf.mxu0
    %3791 = vdwg.mxu0
    %3792 = vmatpush.bf16.msra.mxu0 %v2473
    %3793 = vmatpush.bf16.msra.mxu0 %v2469
    %3794 = vmatpush.bf16.msra.mxu0 %v2465
    %3795 = vmatpush.bf16.msra.mxu0 %v2461
    %3796 = vmatpush.bf16.msra.mxu0 %v2457
    %3797 = vmatpush.bf16.msra.mxu0 %v2453
    %3798 = vmatpush.bf16.msra.mxu0 %v2449
    %3799 = vmatpush.bf16.msra.mxu0 %v2445
    %3800 = vmatmul.bf16.gmra.mxu0 %v614
    %v3801 = vpop.f32.mrf.mxu0
    %v3802 = vadd.f32 %v3789, %v3801
    %v3803 = vpop.f32.mrf.mxu0
    %3804 = vdwg.mxu0
    %3805 = vmatpush.bf16.msra.mxu0 %v2505
    %3806 = vmatpush.bf16.msra.mxu0 %v2501
    %3807 = vmatpush.bf16.msra.mxu0 %v2497
    %3808 = vmatpush.bf16.msra.mxu0 %v2493
    %3809 = vmatpush.bf16.msra.mxu0 %v2489
    %3810 = vmatpush.bf16.msra.mxu0 %v2485
    %3811 = vmatpush.bf16.msra.mxu0 %v2481
    %3812 = vmatpush.bf16.msra.mxu0 %v2477
    %3813 = vmatmul.bf16.gmra.mxu0 %v615
    %v3814 = vpop.f32.mrf.mxu0
    %v3815 = vadd.f32 %v3802, %v3814
    %v3816 = vpop.f32.mrf.mxu0
    %3817 = vdwg.mxu0
    %3818 = vmatpush.bf16.msra.mxu0 %v2537
    %3819 = vmatpush.bf16.msra.mxu0 %v2533
    %3820 = vmatpush.bf16.msra.mxu0 %v2529
    %3821 = vmatpush.bf16.msra.mxu0 %v2525
    %3822 = vmatpush.bf16.msra.mxu0 %v2521
    %3823 = vmatpush.bf16.msra.mxu0 %v2517
    %3824 = vmatpush.bf16.msra.mxu0 %v2513
    %3825 = vmatpush.bf16.msra.mxu0 %v2509
    %3826 = vmatmul.bf16.gmra.mxu0 %v616
    %v3827 = vpop.f32.mrf.mxu0
    %v3828 = vadd.f32 %v3815, %v3827
    %v3829 = vpop.f32.mrf.mxu0
    %3830 = vdwg.mxu0
    %3831 = vmatpush.bf16.msra.mxu0 %v2569
    %3832 = vmatpush.bf16.msra.mxu0 %v2565
    %3833 = vmatpush.bf16.msra.mxu0 %v2561
    %3834 = vmatpush.bf16.msra.mxu0 %v2557
    %3835 = vmatpush.bf16.msra.mxu0 %v2553
    %3836 = vmatpush.bf16.msra.mxu0 %v2549
    %3837 = vmatpush.bf16.msra.mxu0 %v2545
    %3838 = vmatpush.bf16.msra.mxu0 %v2541
    %3839 = vmatmul.bf16.gmra.mxu0 %v617
    %v3840 = vpop.f32.mrf.mxu0
    %v3841 = vadd.f32 %v3828, %v3840
    %v3842 = vpop.f32.mrf.mxu0
    %3843 = vdwg.mxu0
    %3844 = vmatpush.bf16.msra.mxu0 %v2601
    %3845 = vmatpush.bf16.msra.mxu0 %v2597
    %3846 = vmatpush.bf16.msra.mxu0 %v2593
    %3847 = vmatpush.bf16.msra.mxu0 %v2589
    %3848 = vmatpush.bf16.msra.mxu0 %v2585
    %3849 = vmatpush.bf16.msra.mxu0 %v2581
    %3850 = vmatpush.bf16.msra.mxu0 %v2577
    %3851 = vmatpush.bf16.msra.mxu0 %v2573
    %3852 = vmatmul.bf16.gmra.mxu0 %v618
    %v3853 = vpop.f32.mrf.mxu0
    %v3854 = vadd.f32 %v3841, %v3853
    %v3855 = vpop.f32.mrf.mxu0
    %3856 = vdwg.mxu0
    %3857 = vmatpush.bf16.msra.mxu0 %v2633
    %3858 = vmatpush.bf16.msra.mxu0 %v2629
    %3859 = vmatpush.bf16.msra.mxu0 %v2625
    %3860 = vmatpush.bf16.msra.mxu0 %v2621
    %3861 = vmatpush.bf16.msra.mxu0 %v2617
    %3862 = vmatpush.bf16.msra.mxu0 %v2613
    %3863 = vmatpush.bf16.msra.mxu0 %v2609
    %3864 = vmatpush.bf16.msra.mxu0 %v2605
    %3865 = vmatmul.bf16.gmra.mxu0 %v619
    %v3866 = vpop.f32.mrf.mxu0
    %v3867 = vadd.f32 %v3854, %v3866
    %v3868 = vpop.f32.mrf.mxu0
    %3869 = vdwg.mxu0
    %3870 = vmatpush.bf16.msra.mxu0 %v2665
    %3871 = vmatpush.bf16.msra.mxu0 %v2661
    %3872 = vmatpush.bf16.msra.mxu0 %v2657
    %3873 = vmatpush.bf16.msra.mxu0 %v2653
    %3874 = vmatpush.bf16.msra.mxu0 %v2649
    %3875 = vmatpush.bf16.msra.mxu0 %v2645
    %3876 = vmatpush.bf16.msra.mxu0 %v2641
    %3877 = vmatpush.bf16.msra.mxu0 %v2637
    %3878 = vmatmul.bf16.gmra.mxu0 %v622
    %v3879 = vpop.f32.mrf.mxu0
    %v3880 = vadd.f32 %v3867, %v3879
    %v3881 = vpop.f32.mrf.mxu0
    %3882 = vdwg.mxu0
    %3883 = vmatpush.bf16.msra.mxu0 %v2697
    %3884 = vmatpush.bf16.msra.mxu0 %v2693
    %3885 = vmatpush.bf16.msra.mxu0 %v2689
    %3886 = vmatpush.bf16.msra.mxu0 %v2685
    %3887 = vmatpush.bf16.msra.mxu0 %v2681
    %3888 = vmatpush.bf16.msra.mxu0 %v2677
    %3889 = vmatpush.bf16.msra.mxu0 %v2673
    %3890 = vmatpush.bf16.msra.mxu0 %v2669
    %3891 = vmatmul.bf16.gmra.mxu0 %v623
    %v3892 = vpop.f32.mrf.mxu0
    %v3893 = vadd.f32 %v3880, %v3892
    %v3894 = vpop.f32.mrf.mxu0
    %3895 = vdwg.mxu0
    %3896 = vmatpush.bf16.msra.mxu0 %v2729
    %3897 = vmatpush.bf16.msra.mxu0 %v2725
    %3898 = vmatpush.bf16.msra.mxu0 %v2721
    %3899 = vmatpush.bf16.msra.mxu0 %v2717
    %3900 = vmatpush.bf16.msra.mxu0 %v2713
    %3901 = vmatpush.bf16.msra.mxu0 %v2709
    %3902 = vmatpush.bf16.msra.mxu0 %v2705
    %3903 = vmatpush.bf16.msra.mxu0 %v2701
    %3904 = vmatmul.bf16.gmra.mxu0 %v624
    %v3905 = vpop.f32.mrf.mxu0
    %v3906 = vadd.f32 %v3893, %v3905
    %v3907 = vpop.f32.mrf.mxu0
    %3908 = vdwg.mxu0
    %3909 = vmatpush.bf16.msra.mxu0 %v2761
    %3910 = vmatpush.bf16.msra.mxu0 %v2757
    %3911 = vmatpush.bf16.msra.mxu0 %v2753
    %3912 = vmatpush.bf16.msra.mxu0 %v2749
    %3913 = vmatpush.bf16.msra.mxu0 %v2745
    %3914 = vmatpush.bf16.msra.mxu0 %v2741
    %3915 = vmatpush.bf16.msra.mxu0 %v2737
    %3916 = vmatpush.bf16.msra.mxu0 %v2733
    %3917 = vmatmul.bf16.gmra.mxu0 %v625
    %v3918 = vpop.f32.mrf.mxu0
    %v3919 = vadd.f32 %v3906, %v3918
    %v3920 = vpop.f32.mrf.mxu0
    %3921 = vdwg.mxu0
    %3922 = vmatpush.bf16.msra.mxu0 %v2793
    %3923 = vmatpush.bf16.msra.mxu0 %v2789
    %3924 = vmatpush.bf16.msra.mxu0 %v2785
    %3925 = vmatpush.bf16.msra.mxu0 %v2781
    %3926 = vmatpush.bf16.msra.mxu0 %v2777
    %3927 = vmatpush.bf16.msra.mxu0 %v2773
    %3928 = vmatpush.bf16.msra.mxu0 %v2769
    %3929 = vmatpush.bf16.msra.mxu0 %v2765
    %3930 = vmatmul.bf16.gmra.mxu0 %v626
    %v3931 = vpop.f32.mrf.mxu0
    %v3932 = vadd.f32 %v3919, %v3931
    %v3933 = vpop.f32.mrf.mxu0
    %3934 = vdwg.mxu0
    %3935 = vmatpush.bf16.msra.mxu0 %v2825
    %3936 = vmatpush.bf16.msra.mxu0 %v2821
    %3937 = vmatpush.bf16.msra.mxu0 %v2817
    %3938 = vmatpush.bf16.msra.mxu0 %v2813
    %3939 = vmatpush.bf16.msra.mxu0 %v2809
    %3940 = vmatpush.bf16.msra.mxu0 %v2805
    %3941 = vmatpush.bf16.msra.mxu0 %v2801
    %3942 = vmatpush.bf16.msra.mxu0 %v2797
    %3943 = vmatmul.bf16.gmra.mxu0 %v627
    %v3944 = vpop.f32.mrf.mxu0
    %v3945 = vadd.f32 %v3932, %v3944
    %v3946 = vpop.f32.mrf.mxu0
    %3947 = vdwg.mxu0
    %3948 = vmatpush.bf16.msra.mxu0 %v2857
    %3949 = vmatpush.bf16.msra.mxu0 %v2853
    %3950 = vmatpush.bf16.msra.mxu0 %v2849
    %3951 = vmatpush.bf16.msra.mxu0 %v2845
    %3952 = vmatpush.bf16.msra.mxu0 %v2841
    %3953 = vmatpush.bf16.msra.mxu0 %v2837
    %3954 = vmatpush.bf16.msra.mxu0 %v2833
    %3955 = vmatpush.bf16.msra.mxu0 %v2829
    %3956 = vmatmul.bf16.gmra.mxu0 %v628
    %v3957 = vpop.f32.mrf.mxu0
    %v3958 = vadd.f32 %v3945, %v3957
    %v3959 = vpop.f32.mrf.mxu0
    %3960 = vdwg.mxu0
    %3961 = vmatpush.bf16.msra.mxu0 %v2889
    %3962 = vmatpush.bf16.msra.mxu0 %v2885
    %3963 = vmatpush.bf16.msra.mxu0 %v2881
    %3964 = vmatpush.bf16.msra.mxu0 %v2877
    %3965 = vmatpush.bf16.msra.mxu0 %v2873
    %3966 = vmatpush.bf16.msra.mxu0 %v2869
    %3967 = vmatpush.bf16.msra.mxu0 %v2865
    %3968 = vmatpush.bf16.msra.mxu0 %v2861
    %3969 = vmatmul.bf16.gmra.mxu0 %v629
    %v3970 = vpop.f32.mrf.mxu0
    %v3971 = vadd.f32 %v3958, %v3970
    %v3972 = vpop.f32.mrf.mxu0
    %3973 = vdwg.mxu0
    %3974 = vmatpush.bf16.msra.mxu0 %v2921
    %3975 = vmatpush.bf16.msra.mxu0 %v2917
    %3976 = vmatpush.bf16.msra.mxu0 %v2913
    %3977 = vmatpush.bf16.msra.mxu0 %v2909
    %3978 = vmatpush.bf16.msra.mxu0 %v2905
    %3979 = vmatpush.bf16.msra.mxu0 %v2901
    %3980 = vmatpush.bf16.msra.mxu0 %v2897
    %3981 = vmatpush.bf16.msra.mxu0 %v2893
    %3982 = vmatmul.bf16.gmra.mxu0 %v632
    %v3983 = vpop.f32.mrf.mxu0
    %v3984 = vadd.f32 %v3971, %v3983
    %v3985 = vpop.f32.mrf.mxu0
    %3986 = vdwg.mxu0
    %3987 = vmatpush.bf16.msra.mxu0 %v2953
    %3988 = vmatpush.bf16.msra.mxu0 %v2949
    %3989 = vmatpush.bf16.msra.mxu0 %v2945
    %3990 = vmatpush.bf16.msra.mxu0 %v2941
    %3991 = vmatpush.bf16.msra.mxu0 %v2937
    %3992 = vmatpush.bf16.msra.mxu0 %v2933
    %3993 = vmatpush.bf16.msra.mxu0 %v2929
    %3994 = vmatpush.bf16.msra.mxu0 %v2925
    %3995 = vmatmul.bf16.gmra.mxu0 %v633
    %v3996 = vpop.f32.mrf.mxu0
    %v3997 = vadd.f32 %v3984, %v3996
    %v3998 = vpop.f32.mrf.mxu0
    %3999 = vdwg.mxu0
    %4000 = vmatpush.bf16.msra.mxu0 %v2410
    %4001 = vmatpush.bf16.msra.mxu0 %v2406
    %4002 = vmatpush.bf16.msra.mxu0 %v2402
    %4003 = vmatpush.bf16.msra.mxu0 %v2398
    %4004 = vmatpush.bf16.msra.mxu0 %v2394
    %4005 = vmatpush.bf16.msra.mxu0 %v2390
    %4006 = vmatpush.bf16.msra.mxu0 %v2386
    %4007 = vmatpush.bf16.msra.mxu0 %v2382
    %4008 = vmatmul.bf16.gmra.mxu0 %v612
    %v4009 = vpop.f32.mrf.mxu0
    %v4010 = vadd.f32 %v604, %v4009
    %v4011 = vpop.f32.mrf.mxu0
    %4012 = vdwg.mxu0
    %4013 = vmatpush.bf16.msra.mxu0 %v2442
    %4014 = vmatpush.bf16.msra.mxu0 %v2438
    %4015 = vmatpush.bf16.msra.mxu0 %v2434
    %4016 = vmatpush.bf16.msra.mxu0 %v2430
    %4017 = vmatpush.bf16.msra.mxu0 %v2426
    %4018 = vmatpush.bf16.msra.mxu0 %v2422
    %4019 = vmatpush.bf16.msra.mxu0 %v2418
    %4020 = vmatpush.bf16.msra.mxu0 %v2414
    %4021 = vmatmul.bf16.gmra.mxu0 %v613
    %v4022 = vpop.f32.mrf.mxu0
    %v4023 = vadd.f32 %v4010, %v4022
    %v4024 = vpop.f32.mrf.mxu0
    %4025 = vdwg.mxu0
    %4026 = vmatpush.bf16.msra.mxu0 %v2474
    %4027 = vmatpush.bf16.msra.mxu0 %v2470
    %4028 = vmatpush.bf16.msra.mxu0 %v2466
    %4029 = vmatpush.bf16.msra.mxu0 %v2462
    %4030 = vmatpush.bf16.msra.mxu0 %v2458
    %4031 = vmatpush.bf16.msra.mxu0 %v2454
    %4032 = vmatpush.bf16.msra.mxu0 %v2450
    %4033 = vmatpush.bf16.msra.mxu0 %v2446
    %4034 = vmatmul.bf16.gmra.mxu0 %v614
    %v4035 = vpop.f32.mrf.mxu0
    %v4036 = vadd.f32 %v4023, %v4035
    %v4037 = vpop.f32.mrf.mxu0
    %4038 = vdwg.mxu0
    %4039 = vmatpush.bf16.msra.mxu0 %v2506
    %4040 = vmatpush.bf16.msra.mxu0 %v2502
    %4041 = vmatpush.bf16.msra.mxu0 %v2498
    %4042 = vmatpush.bf16.msra.mxu0 %v2494
    %4043 = vmatpush.bf16.msra.mxu0 %v2490
    %4044 = vmatpush.bf16.msra.mxu0 %v2486
    %4045 = vmatpush.bf16.msra.mxu0 %v2482
    %4046 = vmatpush.bf16.msra.mxu0 %v2478
    %4047 = vmatmul.bf16.gmra.mxu0 %v615
    %v4048 = vpop.f32.mrf.mxu0
    %v4049 = vadd.f32 %v4036, %v4048
    %v4050 = vpop.f32.mrf.mxu0
    %4051 = vdwg.mxu0
    %4052 = vmatpush.bf16.msra.mxu0 %v2538
    %4053 = vmatpush.bf16.msra.mxu0 %v2534
    %4054 = vmatpush.bf16.msra.mxu0 %v2530
    %4055 = vmatpush.bf16.msra.mxu0 %v2526
    %4056 = vmatpush.bf16.msra.mxu0 %v2522
    %4057 = vmatpush.bf16.msra.mxu0 %v2518
    %4058 = vmatpush.bf16.msra.mxu0 %v2514
    %4059 = vmatpush.bf16.msra.mxu0 %v2510
    %4060 = vmatmul.bf16.gmra.mxu0 %v616
    %v4061 = vpop.f32.mrf.mxu0
    %v4062 = vadd.f32 %v4049, %v4061
    %v4063 = vpop.f32.mrf.mxu0
    %4064 = vdwg.mxu0
    %4065 = vmatpush.bf16.msra.mxu0 %v2570
    %4066 = vmatpush.bf16.msra.mxu0 %v2566
    %4067 = vmatpush.bf16.msra.mxu0 %v2562
    %4068 = vmatpush.bf16.msra.mxu0 %v2558
    %4069 = vmatpush.bf16.msra.mxu0 %v2554
    %4070 = vmatpush.bf16.msra.mxu0 %v2550
    %4071 = vmatpush.bf16.msra.mxu0 %v2546
    %4072 = vmatpush.bf16.msra.mxu0 %v2542
    %4073 = vmatmul.bf16.gmra.mxu0 %v617
    %v4074 = vpop.f32.mrf.mxu0
    %v4075 = vadd.f32 %v4062, %v4074
    %v4076 = vpop.f32.mrf.mxu0
    %4077 = vdwg.mxu0
    %4078 = vmatpush.bf16.msra.mxu0 %v2602
    %4079 = vmatpush.bf16.msra.mxu0 %v2598
    %4080 = vmatpush.bf16.msra.mxu0 %v2594
    %4081 = vmatpush.bf16.msra.mxu0 %v2590
    %4082 = vmatpush.bf16.msra.mxu0 %v2586
    %4083 = vmatpush.bf16.msra.mxu0 %v2582
    %4084 = vmatpush.bf16.msra.mxu0 %v2578
    %4085 = vmatpush.bf16.msra.mxu0 %v2574
    %4086 = vmatmul.bf16.gmra.mxu0 %v618
    %v4087 = vpop.f32.mrf.mxu0
    %v4088 = vadd.f32 %v4075, %v4087
    %v4089 = vpop.f32.mrf.mxu0
    %4090 = vdwg.mxu0
    %4091 = vmatpush.bf16.msra.mxu0 %v2634
    %4092 = vmatpush.bf16.msra.mxu0 %v2630
    %4093 = vmatpush.bf16.msra.mxu0 %v2626
    %4094 = vmatpush.bf16.msra.mxu0 %v2622
    %4095 = vmatpush.bf16.msra.mxu0 %v2618
    %4096 = vmatpush.bf16.msra.mxu0 %v2614
    %4097 = vmatpush.bf16.msra.mxu0 %v2610
    %4098 = vmatpush.bf16.msra.mxu0 %v2606
    %4099 = vmatmul.bf16.gmra.mxu0 %v619
    %v4100 = vpop.f32.mrf.mxu0
    %v4101 = vadd.f32 %v4088, %v4100
    %v4102 = vpop.f32.mrf.mxu0
    %4103 = vdwg.mxu0
    %4104 = vmatpush.bf16.msra.mxu0 %v2666
    %4105 = vmatpush.bf16.msra.mxu0 %v2662
    %4106 = vmatpush.bf16.msra.mxu0 %v2658
    %4107 = vmatpush.bf16.msra.mxu0 %v2654
    %4108 = vmatpush.bf16.msra.mxu0 %v2650
    %4109 = vmatpush.bf16.msra.mxu0 %v2646
    %4110 = vmatpush.bf16.msra.mxu0 %v2642
    %4111 = vmatpush.bf16.msra.mxu0 %v2638
    %4112 = vmatmul.bf16.gmra.mxu0 %v622
    %v4113 = vpop.f32.mrf.mxu0
    %v4114 = vadd.f32 %v4101, %v4113
    %v4115 = vpop.f32.mrf.mxu0
    %4116 = vdwg.mxu0
    %4117 = vmatpush.bf16.msra.mxu0 %v2698
    %4118 = vmatpush.bf16.msra.mxu0 %v2694
    %4119 = vmatpush.bf16.msra.mxu0 %v2690
    %4120 = vmatpush.bf16.msra.mxu0 %v2686
    %4121 = vmatpush.bf16.msra.mxu0 %v2682
    %4122 = vmatpush.bf16.msra.mxu0 %v2678
    %4123 = vmatpush.bf16.msra.mxu0 %v2674
    %4124 = vmatpush.bf16.msra.mxu0 %v2670
    %4125 = vmatmul.bf16.gmra.mxu0 %v623
    %v4126 = vpop.f32.mrf.mxu0
    %v4127 = vadd.f32 %v4114, %v4126
    %v4128 = vpop.f32.mrf.mxu0
    %4129 = vdwg.mxu0
    %4130 = vmatpush.bf16.msra.mxu0 %v2730
    %4131 = vmatpush.bf16.msra.mxu0 %v2726
    %4132 = vmatpush.bf16.msra.mxu0 %v2722
    %4133 = vmatpush.bf16.msra.mxu0 %v2718
    %4134 = vmatpush.bf16.msra.mxu0 %v2714
    %4135 = vmatpush.bf16.msra.mxu0 %v2710
    %4136 = vmatpush.bf16.msra.mxu0 %v2706
    %4137 = vmatpush.bf16.msra.mxu0 %v2702
    %4138 = vmatmul.bf16.gmra.mxu0 %v624
    %v4139 = vpop.f32.mrf.mxu0
    %v4140 = vadd.f32 %v4127, %v4139
    %v4141 = vpop.f32.mrf.mxu0
    %4142 = vdwg.mxu0
    %4143 = vmatpush.bf16.msra.mxu0 %v2762
    %4144 = vmatpush.bf16.msra.mxu0 %v2758
    %4145 = vmatpush.bf16.msra.mxu0 %v2754
    %4146 = vmatpush.bf16.msra.mxu0 %v2750
    %4147 = vmatpush.bf16.msra.mxu0 %v2746
    %4148 = vmatpush.bf16.msra.mxu0 %v2742
    %4149 = vmatpush.bf16.msra.mxu0 %v2738
    %4150 = vmatpush.bf16.msra.mxu0 %v2734
    %4151 = vmatmul.bf16.gmra.mxu0 %v625
    %v4152 = vpop.f32.mrf.mxu0
    %v4153 = vadd.f32 %v4140, %v4152
    %v4154 = vpop.f32.mrf.mxu0
    %4155 = vdwg.mxu0
    %4156 = vmatpush.bf16.msra.mxu0 %v2794
    %4157 = vmatpush.bf16.msra.mxu0 %v2790
    %4158 = vmatpush.bf16.msra.mxu0 %v2786
    %4159 = vmatpush.bf16.msra.mxu0 %v2782
    %4160 = vmatpush.bf16.msra.mxu0 %v2778
    %4161 = vmatpush.bf16.msra.mxu0 %v2774
    %4162 = vmatpush.bf16.msra.mxu0 %v2770
    %4163 = vmatpush.bf16.msra.mxu0 %v2766
    %4164 = vmatmul.bf16.gmra.mxu0 %v626
    %v4165 = vpop.f32.mrf.mxu0
    %v4166 = vadd.f32 %v4153, %v4165
    %v4167 = vpop.f32.mrf.mxu0
    %4168 = vdwg.mxu0
    %4169 = vmatpush.bf16.msra.mxu0 %v2826
    %4170 = vmatpush.bf16.msra.mxu0 %v2822
    %4171 = vmatpush.bf16.msra.mxu0 %v2818
    %4172 = vmatpush.bf16.msra.mxu0 %v2814
    %4173 = vmatpush.bf16.msra.mxu0 %v2810
    %4174 = vmatpush.bf16.msra.mxu0 %v2806
    %4175 = vmatpush.bf16.msra.mxu0 %v2802
    %4176 = vmatpush.bf16.msra.mxu0 %v2798
    %4177 = vmatmul.bf16.gmra.mxu0 %v627
    %v4178 = vpop.f32.mrf.mxu0
    %v4179 = vadd.f32 %v4166, %v4178
    %v4180 = vpop.f32.mrf.mxu0
    %4181 = vdwg.mxu0
    %4182 = vmatpush.bf16.msra.mxu0 %v2858
    %4183 = vmatpush.bf16.msra.mxu0 %v2854
    %4184 = vmatpush.bf16.msra.mxu0 %v2850
    %4185 = vmatpush.bf16.msra.mxu0 %v2846
    %4186 = vmatpush.bf16.msra.mxu0 %v2842
    %4187 = vmatpush.bf16.msra.mxu0 %v2838
    %4188 = vmatpush.bf16.msra.mxu0 %v2834
    %4189 = vmatpush.bf16.msra.mxu0 %v2830
    %4190 = vmatmul.bf16.gmra.mxu0 %v628
    %v4191 = vpop.f32.mrf.mxu0
    %v4192 = vadd.f32 %v4179, %v4191
    %v4193 = vpop.f32.mrf.mxu0
    %4194 = vdwg.mxu0
    %4195 = vmatpush.bf16.msra.mxu0 %v2890
    %4196 = vmatpush.bf16.msra.mxu0 %v2886
    %4197 = vmatpush.bf16.msra.mxu0 %v2882
    %4198 = vmatpush.bf16.msra.mxu0 %v2878
    %4199 = vmatpush.bf16.msra.mxu0 %v2874
    %4200 = vmatpush.bf16.msra.mxu0 %v2870
    %4201 = vmatpush.bf16.msra.mxu0 %v2866
    %4202 = vmatpush.bf16.msra.mxu0 %v2862
    %4203 = vmatmul.bf16.gmra.mxu0 %v629
    %v4204 = vpop.f32.mrf.mxu0
    %v4205 = vadd.f32 %v4192, %v4204
    %v4206 = vpop.f32.mrf.mxu0
    %4207 = vdwg.mxu0
    %4208 = vmatpush.bf16.msra.mxu0 %v2922
    %4209 = vmatpush.bf16.msra.mxu0 %v2918
    %4210 = vmatpush.bf16.msra.mxu0 %v2914
    %4211 = vmatpush.bf16.msra.mxu0 %v2910
    %4212 = vmatpush.bf16.msra.mxu0 %v2906
    %4213 = vmatpush.bf16.msra.mxu0 %v2902
    %4214 = vmatpush.bf16.msra.mxu0 %v2898
    %4215 = vmatpush.bf16.msra.mxu0 %v2894
    %4216 = vmatmul.bf16.gmra.mxu0 %v632
    %v4217 = vpop.f32.mrf.mxu0
    %v4218 = vadd.f32 %v4205, %v4217
    %v4219 = vpop.f32.mrf.mxu0
    %4220 = vdwg.mxu0
    %4221 = vmatpush.bf16.msra.mxu0 %v2954
    %4222 = vmatpush.bf16.msra.mxu0 %v2950
    %4223 = vmatpush.bf16.msra.mxu0 %v2946
    %4224 = vmatpush.bf16.msra.mxu0 %v2942
    %4225 = vmatpush.bf16.msra.mxu0 %v2938
    %4226 = vmatpush.bf16.msra.mxu0 %v2934
    %4227 = vmatpush.bf16.msra.mxu0 %v2930
    %4228 = vmatpush.bf16.msra.mxu0 %v2926
    %4229 = vmatmul.bf16.gmra.mxu0 %v633
    %v4230 = vpop.f32.mrf.mxu0
    %v4231 = vadd.f32 %v4218, %v4230
    %v4232 = vpop.f32.mrf.mxu0
    %4233 = vdwg.mxu0
    %4234 = vmatpush.bf16.msra.mxu0 %v2411
    %4235 = vmatpush.bf16.msra.mxu0 %v2407
    %4236 = vmatpush.bf16.msra.mxu0 %v2403
    %4237 = vmatpush.bf16.msra.mxu0 %v2399
    %4238 = vmatpush.bf16.msra.mxu0 %v2395
    %4239 = vmatpush.bf16.msra.mxu0 %v2391
    %4240 = vmatpush.bf16.msra.mxu0 %v2387
    %4241 = vmatpush.bf16.msra.mxu0 %v2383
    %4242 = vmatmul.bf16.gmra.mxu0 %v612
    %v4243 = vpop.f32.mrf.mxu0
    %v4244 = vadd.f32 %v605, %v4243
    %v4245 = vpop.f32.mrf.mxu0
    %4246 = vdwg.mxu0
    %4247 = vmatpush.bf16.msra.mxu0 %v2443
    %4248 = vmatpush.bf16.msra.mxu0 %v2439
    %4249 = vmatpush.bf16.msra.mxu0 %v2435
    %4250 = vmatpush.bf16.msra.mxu0 %v2431
    %4251 = vmatpush.bf16.msra.mxu0 %v2427
    %4252 = vmatpush.bf16.msra.mxu0 %v2423
    %4253 = vmatpush.bf16.msra.mxu0 %v2419
    %4254 = vmatpush.bf16.msra.mxu0 %v2415
    %4255 = vmatmul.bf16.gmra.mxu0 %v613
    %v4256 = vpop.f32.mrf.mxu0
    %v4257 = vadd.f32 %v4244, %v4256
    %v4258 = vpop.f32.mrf.mxu0
    %4259 = vdwg.mxu0
    %4260 = vmatpush.bf16.msra.mxu0 %v2475
    %4261 = vmatpush.bf16.msra.mxu0 %v2471
    %4262 = vmatpush.bf16.msra.mxu0 %v2467
    %4263 = vmatpush.bf16.msra.mxu0 %v2463
    %4264 = vmatpush.bf16.msra.mxu0 %v2459
    %4265 = vmatpush.bf16.msra.mxu0 %v2455
    %4266 = vmatpush.bf16.msra.mxu0 %v2451
    %4267 = vmatpush.bf16.msra.mxu0 %v2447
    %4268 = vmatmul.bf16.gmra.mxu0 %v614
    %v4269 = vpop.f32.mrf.mxu0
    %v4270 = vadd.f32 %v4257, %v4269
    %v4271 = vpop.f32.mrf.mxu0
    %4272 = vdwg.mxu0
    %4273 = vmatpush.bf16.msra.mxu0 %v2507
    %4274 = vmatpush.bf16.msra.mxu0 %v2503
    %4275 = vmatpush.bf16.msra.mxu0 %v2499
    %4276 = vmatpush.bf16.msra.mxu0 %v2495
    %4277 = vmatpush.bf16.msra.mxu0 %v2491
    %4278 = vmatpush.bf16.msra.mxu0 %v2487
    %4279 = vmatpush.bf16.msra.mxu0 %v2483
    %4280 = vmatpush.bf16.msra.mxu0 %v2479
    %4281 = vmatmul.bf16.gmra.mxu0 %v615
    %v4282 = vpop.f32.mrf.mxu0
    %v4283 = vadd.f32 %v4270, %v4282
    %v4284 = vpop.f32.mrf.mxu0
    %4285 = vdwg.mxu0
    %4286 = vmatpush.bf16.msra.mxu0 %v2539
    %4287 = vmatpush.bf16.msra.mxu0 %v2535
    %4288 = vmatpush.bf16.msra.mxu0 %v2531
    %4289 = vmatpush.bf16.msra.mxu0 %v2527
    %4290 = vmatpush.bf16.msra.mxu0 %v2523
    %4291 = vmatpush.bf16.msra.mxu0 %v2519
    %4292 = vmatpush.bf16.msra.mxu0 %v2515
    %4293 = vmatpush.bf16.msra.mxu0 %v2511
    %4294 = vmatmul.bf16.gmra.mxu0 %v616
    %v4295 = vpop.f32.mrf.mxu0
    %v4296 = vadd.f32 %v4283, %v4295
    %v4297 = vpop.f32.mrf.mxu0
    %4298 = vdwg.mxu0
    %4299 = vmatpush.bf16.msra.mxu0 %v2571
    %4300 = vmatpush.bf16.msra.mxu0 %v2567
    %4301 = vmatpush.bf16.msra.mxu0 %v2563
    %4302 = vmatpush.bf16.msra.mxu0 %v2559
    %4303 = vmatpush.bf16.msra.mxu0 %v2555
    %4304 = vmatpush.bf16.msra.mxu0 %v2551
    %4305 = vmatpush.bf16.msra.mxu0 %v2547
    %4306 = vmatpush.bf16.msra.mxu0 %v2543
    %4307 = vmatmul.bf16.gmra.mxu0 %v617
    %v4308 = vpop.f32.mrf.mxu0
    %v4309 = vadd.f32 %v4296, %v4308
    %v4310 = vpop.f32.mrf.mxu0
    %4311 = vdwg.mxu0
    %4312 = vmatpush.bf16.msra.mxu0 %v2603
    %4313 = vmatpush.bf16.msra.mxu0 %v2599
    %4314 = vmatpush.bf16.msra.mxu0 %v2595
    %4315 = vmatpush.bf16.msra.mxu0 %v2591
    %4316 = vmatpush.bf16.msra.mxu0 %v2587
    %4317 = vmatpush.bf16.msra.mxu0 %v2583
    %4318 = vmatpush.bf16.msra.mxu0 %v2579
    %4319 = vmatpush.bf16.msra.mxu0 %v2575
    %4320 = vmatmul.bf16.gmra.mxu0 %v618
    %v4321 = vpop.f32.mrf.mxu0
    %v4322 = vadd.f32 %v4309, %v4321
    %v4323 = vpop.f32.mrf.mxu0
    %4324 = vdwg.mxu0
    %4325 = vmatpush.bf16.msra.mxu0 %v2635
    %4326 = vmatpush.bf16.msra.mxu0 %v2631
    %4327 = vmatpush.bf16.msra.mxu0 %v2627
    %4328 = vmatpush.bf16.msra.mxu0 %v2623
    %4329 = vmatpush.bf16.msra.mxu0 %v2619
    %4330 = vmatpush.bf16.msra.mxu0 %v2615
    %4331 = vmatpush.bf16.msra.mxu0 %v2611
    %4332 = vmatpush.bf16.msra.mxu0 %v2607
    %4333 = vmatmul.bf16.gmra.mxu0 %v619
    %v4334 = vpop.f32.mrf.mxu0
    %v4335 = vadd.f32 %v4322, %v4334
    %v4336 = vpop.f32.mrf.mxu0
    %4337 = vdwg.mxu0
    %4338 = vmatpush.bf16.msra.mxu0 %v2667
    %4339 = vmatpush.bf16.msra.mxu0 %v2663
    %4340 = vmatpush.bf16.msra.mxu0 %v2659
    %4341 = vmatpush.bf16.msra.mxu0 %v2655
    %4342 = vmatpush.bf16.msra.mxu0 %v2651
    %4343 = vmatpush.bf16.msra.mxu0 %v2647
    %4344 = vmatpush.bf16.msra.mxu0 %v2643
    %4345 = vmatpush.bf16.msra.mxu0 %v2639
    %4346 = vmatmul.bf16.gmra.mxu0 %v622
    %v4347 = vpop.f32.mrf.mxu0
    %v4348 = vadd.f32 %v4335, %v4347
    %v4349 = vpop.f32.mrf.mxu0
    %4350 = vdwg.mxu0
    %4351 = vmatpush.bf16.msra.mxu0 %v2699
    %4352 = vmatpush.bf16.msra.mxu0 %v2695
    %4353 = vmatpush.bf16.msra.mxu0 %v2691
    %4354 = vmatpush.bf16.msra.mxu0 %v2687
    %4355 = vmatpush.bf16.msra.mxu0 %v2683
    %4356 = vmatpush.bf16.msra.mxu0 %v2679
    %4357 = vmatpush.bf16.msra.mxu0 %v2675
    %4358 = vmatpush.bf16.msra.mxu0 %v2671
    %4359 = vmatmul.bf16.gmra.mxu0 %v623
    %v4360 = vpop.f32.mrf.mxu0
    %v4361 = vadd.f32 %v4348, %v4360
    %v4362 = vpop.f32.mrf.mxu0
    %4363 = vdwg.mxu0
    %4364 = vmatpush.bf16.msra.mxu0 %v2731
    %4365 = vmatpush.bf16.msra.mxu0 %v2727
    %4366 = vmatpush.bf16.msra.mxu0 %v2723
    %4367 = vmatpush.bf16.msra.mxu0 %v2719
    %4368 = vmatpush.bf16.msra.mxu0 %v2715
    %4369 = vmatpush.bf16.msra.mxu0 %v2711
    %4370 = vmatpush.bf16.msra.mxu0 %v2707
    %4371 = vmatpush.bf16.msra.mxu0 %v2703
    %4372 = vmatmul.bf16.gmra.mxu0 %v624
    %v4373 = vpop.f32.mrf.mxu0
    %v4374 = vadd.f32 %v4361, %v4373
    %v4375 = vpop.f32.mrf.mxu0
    %4376 = vdwg.mxu0
    %4377 = vmatpush.bf16.msra.mxu0 %v2763
    %4378 = vmatpush.bf16.msra.mxu0 %v2759
    %4379 = vmatpush.bf16.msra.mxu0 %v2755
    %4380 = vmatpush.bf16.msra.mxu0 %v2751
    %4381 = vmatpush.bf16.msra.mxu0 %v2747
    %4382 = vmatpush.bf16.msra.mxu0 %v2743
    %4383 = vmatpush.bf16.msra.mxu0 %v2739
    %4384 = vmatpush.bf16.msra.mxu0 %v2735
    %4385 = vmatmul.bf16.gmra.mxu0 %v625
    %v4386 = vpop.f32.mrf.mxu0
    %v4387 = vadd.f32 %v4374, %v4386
    %v4388 = vpop.f32.mrf.mxu0
    %4389 = vdwg.mxu0
    %4390 = vmatpush.bf16.msra.mxu0 %v2795
    %4391 = vmatpush.bf16.msra.mxu0 %v2791
    %4392 = vmatpush.bf16.msra.mxu0 %v2787
    %4393 = vmatpush.bf16.msra.mxu0 %v2783
    %4394 = vmatpush.bf16.msra.mxu0 %v2779
    %4395 = vmatpush.bf16.msra.mxu0 %v2775
    %4396 = vmatpush.bf16.msra.mxu0 %v2771
    %4397 = vmatpush.bf16.msra.mxu0 %v2767
    %4398 = vmatmul.bf16.gmra.mxu0 %v626
    %v4399 = vpop.f32.mrf.mxu0
    %v4400 = vadd.f32 %v4387, %v4399
    %v4401 = vpop.f32.mrf.mxu0
    %4402 = vdwg.mxu0
    %4403 = vmatpush.bf16.msra.mxu0 %v2827
    %4404 = vmatpush.bf16.msra.mxu0 %v2823
    %4405 = vmatpush.bf16.msra.mxu0 %v2819
    %4406 = vmatpush.bf16.msra.mxu0 %v2815
    %4407 = vmatpush.bf16.msra.mxu0 %v2811
    %4408 = vmatpush.bf16.msra.mxu0 %v2807
    %4409 = vmatpush.bf16.msra.mxu0 %v2803
    %4410 = vmatpush.bf16.msra.mxu0 %v2799
    %4411 = vmatmul.bf16.gmra.mxu0 %v627
    %v4412 = vpop.f32.mrf.mxu0
    %v4413 = vadd.f32 %v4400, %v4412
    %v4414 = vpop.f32.mrf.mxu0
    %4415 = vdwg.mxu0
    %4416 = vmatpush.bf16.msra.mxu0 %v2859
    %4417 = vmatpush.bf16.msra.mxu0 %v2855
    %4418 = vmatpush.bf16.msra.mxu0 %v2851
    %4419 = vmatpush.bf16.msra.mxu0 %v2847
    %4420 = vmatpush.bf16.msra.mxu0 %v2843
    %4421 = vmatpush.bf16.msra.mxu0 %v2839
    %4422 = vmatpush.bf16.msra.mxu0 %v2835
    %4423 = vmatpush.bf16.msra.mxu0 %v2831
    %4424 = vmatmul.bf16.gmra.mxu0 %v628
    %v4425 = vpop.f32.mrf.mxu0
    %v4426 = vadd.f32 %v4413, %v4425
    %v4427 = vpop.f32.mrf.mxu0
    %4428 = vdwg.mxu0
    %4429 = vmatpush.bf16.msra.mxu0 %v2891
    %4430 = vmatpush.bf16.msra.mxu0 %v2887
    %4431 = vmatpush.bf16.msra.mxu0 %v2883
    %4432 = vmatpush.bf16.msra.mxu0 %v2879
    %4433 = vmatpush.bf16.msra.mxu0 %v2875
    %4434 = vmatpush.bf16.msra.mxu0 %v2871
    %4435 = vmatpush.bf16.msra.mxu0 %v2867
    %4436 = vmatpush.bf16.msra.mxu0 %v2863
    %4437 = vmatmul.bf16.gmra.mxu0 %v629
    %v4438 = vpop.f32.mrf.mxu0
    %v4439 = vadd.f32 %v4426, %v4438
    %v4440 = vpop.f32.mrf.mxu0
    %4441 = vdwg.mxu0
    %4442 = vmatpush.bf16.msra.mxu0 %v2923
    %4443 = vmatpush.bf16.msra.mxu0 %v2919
    %4444 = vmatpush.bf16.msra.mxu0 %v2915
    %4445 = vmatpush.bf16.msra.mxu0 %v2911
    %4446 = vmatpush.bf16.msra.mxu0 %v2907
    %4447 = vmatpush.bf16.msra.mxu0 %v2903
    %4448 = vmatpush.bf16.msra.mxu0 %v2899
    %4449 = vmatpush.bf16.msra.mxu0 %v2895
    %4450 = vmatmul.bf16.gmra.mxu0 %v632
    %v4451 = vpop.f32.mrf.mxu0
    %v4452 = vadd.f32 %v4439, %v4451
    %v4453 = vpop.f32.mrf.mxu0
    %4454 = vdwg.mxu0
    %4455 = vmatpush.bf16.msra.mxu0 %v2955
    %4456 = vmatpush.bf16.msra.mxu0 %v2951
    %4457 = vmatpush.bf16.msra.mxu0 %v2947
    %4458 = vmatpush.bf16.msra.mxu0 %v2943
    %4459 = vmatpush.bf16.msra.mxu0 %v2939
    %4460 = vmatpush.bf16.msra.mxu0 %v2935
    %4461 = vmatpush.bf16.msra.mxu0 %v2931
    %4462 = vmatpush.bf16.msra.mxu0 %v2927
    %4463 = vmatmul.bf16.gmra.mxu0 %v633
    %v4464 = vpop.f32.mrf.mxu0
    %v4465 = vadd.f32 %v4452, %v4464
    %v4466 = vpop.f32.mrf.mxu0
    %4467 = vdwg.mxu0
    %v4468 = vmax.f32 %v3763, 0.0
    %v4469 = vmax.f32 %v3997, 0.0
    %v4470 = vmax.f32 %v4231, 0.0
    %v4471 = vmax.f32 %v4465, 0.0
    %v4472 = vpack.c.bf16 %v4468, %v4468
    %v4473 = vpack.c.bf16 %v4469, %v4469
    %v4474 = vpack.c.bf16 %v4470, %v4470
    %v4475 = vpack.c.bf16 %v4471, %v4471
    %v4476 = vld [vmem:[%s3] sm:$0xf]
    %v4477 = vld [vmem:[%s3 + $0x4] sm:$0xf]
    %v4478 = vld [vmem:[%s3 + $0x8] sm:$0xf]
    %v4479 = vld [vmem:[%s3 + $0xc] sm:$0xf]
    %v4480 = vld [vmem:[%s3 + $0x10] sm:$0xf]
    %v4481 = vld [vmem:[%s3 + $0x14] sm:$0xf]
    %v4482 = vld [vmem:[%s3 + $0x18] sm:$0xf]
    %v4483 = vld [vmem:[%s3 + $0x1c] sm:$0xf]
    %v4484 = vld [vmem:[%s3 + $0x20] sm:$0xf]
    %v4485 = vld [vmem:[%s3 + $0x24] sm:$0xf]
    %v4486 = vld [vmem:[%s3 + $0x28] sm:$0xf]
    %v4487 = vld [vmem:[%s3 + $0x2c] sm:$0xf]
    %v4488 = vld [vmem:[%s3 + $0x30] sm:$0xf]
    %v4489 = vld [vmem:[%s3 + $0x34] sm:$0xf]
    %v4490 = vld [vmem:[%s3 + $0x38] sm:$0xf]
    %v4491 = vld [vmem:[%s3 + $0x3c] sm:$0xf]
    %v4492 = vld [vmem:[%s3 + $0x40] sm:$0xf]
    %v4493 = vld [vmem:[%s3 + $0x44] sm:$0xf]
    %v4494 = vld [vmem:[%s3 + $0x48] sm:$0xf]
    %v4495 = vld [vmem:[%s3 + $0x4c] sm:$0xf]
    %v4496 = vld [vmem:[%s3 + $0x50] sm:$0xf]
    %v4497 = vld [vmem:[%s3 + $0x54] sm:$0xf]
    %v4498 = vld [vmem:[%s3 + $0x58] sm:$0xf]
    %v4499 = vld [vmem:[%s3 + $0x5c] sm:$0xf]
    %v4500 = vld [vmem:[%s3 + $0x60] sm:$0xf]
    %v4501 = vld [vmem:[%s3 + $0x64] sm:$0xf]
    %v4502 = vld [vmem:[%s3 + $0x68] sm:$0xf]
    %v4503 = vld [vmem:[%s3 + $0x6c] sm:$0xf]
    %v4504 = vld [vmem:[%s3 + $0x70] sm:$0xf]
    %v4505 = vld [vmem:[%s3 + $0x74] sm:$0xf]
    %v4506 = vld [vmem:[%s3 + $0x78] sm:$0xf]
    %v4507 = vld [vmem:[%s3 + $0x7c] sm:$0xf]
    %v4508 = vld [vmem:[%s3 + $0x80] sm:$0xf]
    %v4509 = vld [vmem:[%s3 + $0x84] sm:$0xf]
    %v4510 = vld [vmem:[%s3 + $0x88] sm:$0xf]
    %v4511 = vld [vmem:[%s3 + $0x8c] sm:$0xf]
    %v4512 = vld [vmem:[%s3 + $0x90] sm:$0xf]
    %v4513 = vld [vmem:[%s3 + $0x94] sm:$0xf]
    %v4514 = vld [vmem:[%s3 + $0x98] sm:$0xf]
    %v4515 = vld [vmem:[%s3 + $0x9c] sm:$0xf]
    %v4516 = vld [vmem:[%s3 + $0xa0] sm:$0xf]
    %v4517 = vld [vmem:[%s3 + $0xa4] sm:$0xf]
    %v4518 = vld [vmem:[%s3 + $0xa8] sm:$0xf]
    %v4519 = vld [vmem:[%s3 + $0xac] sm:$0xf]
    %v4520 = vld [vmem:[%s3 + $0xb0] sm:$0xf]
    %v4521 = vld [vmem:[%s3 + $0xb4] sm:$0xf]
    %v4522 = vld [vmem:[%s3 + $0xb8] sm:$0xf]
    %v4523 = vld [vmem:[%s3 + $0xbc] sm:$0xf]
    %v4524 = vld [vmem:[%s3 + $0xc0] sm:$0xf]
    %v4525 = vld [vmem:[%s3 + $0xc4] sm:$0xf]
    %v4526 = vld [vmem:[%s3 + $0xc8] sm:$0xf]
    %v4527 = vld [vmem:[%s3 + $0xcc] sm:$0xf]
    %v4528 = vld [vmem:[%s3 + $0xd0] sm:$0xf]
    %v4529 = vld [vmem:[%s3 + $0xd4] sm:$0xf]
    %v4530 = vld [vmem:[%s3 + $0xd8] sm:$0xf]
    %v4531 = vld [vmem:[%s3 + $0xdc] sm:$0xf]
    %v4532 = vld [vmem:[%s3 + $0xe0] sm:$0xf]
    %v4533 = vld [vmem:[%s3 + $0xe4] sm:$0xf]
    %v4534 = vld [vmem:[%s3 + $0xe8] sm:$0xf]
    %v4535 = vld [vmem:[%s3 + $0xec] sm:$0xf]
    %v4536 = vld [vmem:[%s3 + $0xf0] sm:$0xf]
    %v4537 = vld [vmem:[%s3 + $0xf4] sm:$0xf]
    %v4538 = vld [vmem:[%s3 + $0xf8] sm:$0xf]
    %v4539 = vld [vmem:[%s3 + $0xfc] sm:$0xf]
    %v4540 = vld [vmem:[%s4] sm:$0x1]
    %v4542 = vperm.slane %v4540, 0
    %v4608 = vunpack.c.l.b16 %v4476
    %v4609 = vunpack.c.l.b16 %v4477
    %v4610 = vunpack.c.l.b16 %v4478
    %v4611 = vunpack.c.l.b16 %v4479
    %v4612 = vunpack.c.l.b16 %v4480
    %v4613 = vunpack.c.l.b16 %v4481
    %v4614 = vunpack.c.l.b16 %v4482
    %v4615 = vunpack.c.l.b16 %v4483
    %v4616 = vunpack.c.l.b16 %v4484
    %v4617 = vunpack.c.l.b16 %v4485
    %v4618 = vunpack.c.l.b16 %v4486
    %v4619 = vunpack.c.l.b16 %v4487
    %v4620 = vunpack.c.l.b16 %v4488
    %v4621 = vunpack.c.l.b16 %v4489
    %v4622 = vunpack.c.l.b16 %v4490
    %v4623 = vunpack.c.l.b16 %v4491
    %v4624 = vunpack.c.l.b16 %v4492
    %v4625 = vunpack.c.l.b16 %v4493
    %v4626 = vunpack.c.l.b16 %v4494
    %v4627 = vunpack.c.l.b16 %v4495
    %v4628 = vunpack.c.l.b16 %v4496
    %v4629 = vunpack.c.l.b16 %v4497
    %v4630 = vunpack.c.l.b16 %v4498
    %v4631 = vunpack.c.l.b16 %v4499
    %v4632 = vunpack.c.l.b16 %v4500
    %v4633 = vunpack.c.l.b16 %v4501
    %v4634 = vunpack.c.l.b16 %v4502
    %v4635 = vunpack.c.l.b16 %v4503
    %v4636 = vunpack.c.l.b16 %v4504
    %v4637 = vunpack.c.l.b16 %v4505
    %v4638 = vunpack.c.l.b16 %v4506
    %v4639 = vunpack.c.l.b16 %v4507
    %v4640 = vunpack.c.l.b16 %v4508
    %v4641 = vunpack.c.l.b16 %v4509
    %v4642 = vunpack.c.l.b16 %v4510
    %v4643 = vunpack.c.l.b16 %v4511
    %v4644 = vunpack.c.l.b16 %v4512
    %v4645 = vunpack.c.l.b16 %v4513
    %v4646 = vunpack.c.l.b16 %v4514
    %v4647 = vunpack.c.l.b16 %v4515
    %v4648 = vunpack.c.l.b16 %v4516
    %v4649 = vunpack.c.l.b16 %v4517
    %v4650 = vunpack.c.l.b16 %v4518
    %v4651 = vunpack.c.l.b16 %v4519
    %v4652 = vunpack.c.l.b16 %v4520
    %v4653 = vunpack.c.l.b16 %v4521
    %v4654 = vunpack.c.l.b16 %v4522
    %v4655 = vunpack.c.l.b16 %v4523
    %v4656 = vunpack.c.l.b16 %v4524
    %v4657 = vunpack.c.l.b16 %v4525
    %v4658 = vunpack.c.l.b16 %v4526
    %v4659 = vunpack.c.l.b16 %v4527
    %v4660 = vunpack.c.l.b16 %v4528
    %v4661 = vunpack.c.l.b16 %v4529
    %v4662 = vunpack.c.l.b16 %v4530
    %v4663 = vunpack.c.l.b16 %v4531
    %v4664 = vunpack.c.l.b16 %v4532
    %v4665 = vunpack.c.l.b16 %v4533
    %v4666 = vunpack.c.l.b16 %v4534
    %v4667 = vunpack.c.l.b16 %v4535
    %v4668 = vunpack.c.l.b16 %v4536
    %v4669 = vunpack.c.l.b16 %v4537
    %v4670 = vunpack.c.l.b16 %v4538
    %v4671 = vunpack.c.l.b16 %v4539
    %v4672 = vpack.c.b16 %v4609, %v4608
    %v4673 = vpack.c.b16 %v4611, %v4610
    %v4674 = vpack.c.b16 %v4613, %v4612
    %v4675 = vpack.c.b16 %v4615, %v4614
    %v4676 = vpack.c.b16 %v4617, %v4616
    %v4677 = vpack.c.b16 %v4619, %v4618
    %v4678 = vpack.c.b16 %v4621, %v4620
    %v4679 = vpack.c.b16 %v4623, %v4622
    %v4680 = vpack.c.b16 %v4625, %v4624
    %v4681 = vpack.c.b16 %v4627, %v4626
    %v4682 = vpack.c.b16 %v4629, %v4628
    %v4683 = vpack.c.b16 %v4631, %v4630
    %v4684 = vpack.c.b16 %v4633, %v4632
    %v4685 = vpack.c.b16 %v4635, %v4634
    %v4686 = vpack.c.b16 %v4637, %v4636
    %v4687 = vpack.c.b16 %v4639, %v4638
    %v4688 = vpack.c.b16 %v4641, %v4640
    %v4689 = vpack.c.b16 %v4643, %v4642
    %v4690 = vpack.c.b16 %v4645, %v4644
    %v4691 = vpack.c.b16 %v4647, %v4646
    %v4692 = vpack.c.b16 %v4649, %v4648
    %v4693 = vpack.c.b16 %v4651, %v4650
    %v4694 = vpack.c.b16 %v4653, %v4652
    %v4695 = vpack.c.b16 %v4655, %v4654
    %v4696 = vpack.c.b16 %v4657, %v4656
    %v4697 = vpack.c.b16 %v4659, %v4658
    %v4698 = vpack.c.b16 %v4661, %v4660
    %v4699 = vpack.c.b16 %v4663, %v4662
    %v4700 = vpack.c.b16 %v4665, %v4664
    %v4701 = vpack.c.b16 %v4667, %v4666
    %v4702 = vpack.c.b16 %v4669, %v4668
    %v4703 = vpack.c.b16 %v4671, %v4670
    %4736 = vmatpush.bf16.msra.mxu0 %v4679
    %4737 = vmatpush.bf16.msra.mxu0 %v4678
    %4738 = vmatpush.bf16.msra.mxu0 %v4677
    %4739 = vmatpush.bf16.msra.mxu0 %v4676
    %4740 = vmatpush.bf16.msra.mxu0 %v4675
    %4741 = vmatpush.bf16.msra.mxu0 %v4674
    %4742 = vmatpush.bf16.msra.mxu0 %v4673
    %4743 = vmatpush.bf16.msra.mxu0 %v4672
    %4744 = vmatmul.bf16.gmra.mxu0 %v4472
    %v4745 = vpop.f32.mrf.mxu0
    %v4746 = vadd.f32 %v4542, %v4745
    %v4747 = vpop.f32.mrf.mxu0
    %4748 = vdwg.mxu0
    %4749 = vmatpush.bf16.msra.mxu0 %v4687
    %4750 = vmatpush.bf16.msra.mxu0 %v4686
    %4751 = vmatpush.bf16.msra.mxu0 %v4685
    %4752 = vmatpush.bf16.msra.mxu0 %v4684
    %4753 = vmatpush.bf16.msra.mxu0 %v4683
    %4754 = vmatpush.bf16.msra.mxu0 %v4682
    %4755 = vmatpush.bf16.msra.mxu0 %v4681
    %4756 = vmatpush.bf16.msra.mxu0 %v4680
    %4757 = vmatmul.bf16.gmra.mxu0 %v4473
    %v4758 = vpop.f32.mrf.mxu0
    %v4759 = vadd.f32 %v4746, %v4758
    %v4760 = vpop.f32.mrf.mxu0
    %4761 = vdwg.mxu0
    %4762 = vmatpush.bf16.msra.mxu0 %v4695
    %4763 = vmatpush.bf16.msra.mxu0 %v4694
    %4764 = vmatpush.bf16.msra.mxu0 %v4693
    %4765 = vmatpush.bf16.msra.mxu0 %v4692
    %4766 = vmatpush.bf16.msra.mxu0 %v4691
    %4767 = vmatpush.bf16.msra.mxu0 %v4690
    %4768 = vmatpush.bf16.msra.mxu0 %v4689
    %4769 = vmatpush.bf16.msra.mxu0 %v4688
    %4770 = vmatmul.bf16.gmra.mxu0 %v4474
    %v4771 = vpop.f32.mrf.mxu0
    %v4772 = vadd.f32 %v4759, %v4771
    %v4773 = vpop.f32.mrf.mxu0
    %4774 = vdwg.mxu0
    %4775 = vmatpush.bf16.msra.mxu0 %v4703
    %4776 = vmatpush.bf16.msra.mxu0 %v4702
    %4777 = vmatpush.bf16.msra.mxu0 %v4701
    %4778 = vmatpush.bf16.msra.mxu0 %v4700
    %4779 = vmatpush.bf16.msra.mxu0 %v4699
    %4780 = vmatpush.bf16.msra.mxu0 %v4698
    %4781 = vmatpush.bf16.msra.mxu0 %v4697
    %4782 = vmatpush.bf16.msra.mxu0 %v4696
    %4783 = vmatmul.bf16.gmra.mxu0 %v4475
    %v4784 = vpop.f32.mrf.mxu0
    %v4785 = vadd.f32 %v4772, %v4784
    %v4786 = vpop.f32.mrf.mxu0
    %4787 = vdwg.mxu0
    %vm4788 = vcmask 25600
    %4789 = vst.msk [vmem:[#allocation2] sm:$0x3] %vm4788, %v4785
    // Predicated region
    $region22: #{dqn_forward.7} parent=1 // pred_check
      _
    $region23: #{dqn_forward.7} parent=1 // pred_check_branch
      %4791 = sbr.rel (0) target = $region25
    $region24: #{dqn_forward.7} parent=1 // pred_region
      %4793 = vsyncadd [#allocation3], 0
      %s4795 = sshll.u32 [#allocation2], 4
      %s4796 = int_to_ptr.vmem [resolvable:$true] %s4795
      %s4797 = sshll.u32 %s5, 4
      %s4798 = int_to_ptr.hbm [resolvable:$true] %s4797
      %4800 = dma.vmem_to_hbm [thread:$0]  %s4796, 32, %s4798, [#allocation3]
    $region25: #{dqn_forward.7} parent=1 // pred_fallthru
      _
    // Predicated region
    $region26: #{dqn_forward.7} parent=1 // pred_check
      _
    $region27: #{dqn_forward.7} parent=1 // pred_check_branch
      %4802 = sbr.rel (0) target = $region29
    $region28: #{dqn_forward.7} parent=1 // pred_region
      %4804 = dma.done [#allocation3], 32
    $region29: #{dqn_forward.7} parent=1 // pred_fallthru
      _
    %4805 = vsyncpa [#allocation3], 1

</llo_original>
